<compile_context>
chip_gen: v7x
topology: tpu7x:2x2x1
jax: 0.10.0
libtpu: 0.0.40
codegen_flags: <defaults>
</compile_context>

<pallas_src>
import functools

import jax
import jax.numpy as jnp
from jax.experimental import pallas as pl
from jax.experimental.pallas import tpu as pltpu

F_PAD = 128  # every feature dimension padded to one full 128-lane vreg width


# ----------------------------- Pallas kernel ------------------------------ #

def fused_arma_kernel(*refs, layer_specs):
    """Entire ARMA forward in a single kernel invocation (no grid).

    refs = (x, adj, slab_0 .. slab_{L-1}, bias_all, out)
      x        : f32  [NP, F_PAD]       node features, N and F zero-padded
      adj      : bf16 [NP, NP]          dense normalized adjacency, padded
      slab_l   : bf16 [(2+K_l)*F_PAD, K_l*F_PAD]
                   rows [0      :F_PAD ) = init_w packed over stacks
                   rows [F_PAD  :2F_PAD) = root_w packed over stacks
                   rows [2F_PAD :      ) = block-diagonal t=1 weight
      bias_all : f32  [L, K_max*F_PAD]  per-layer packed bias rows
      out      : f32  [NP, F_PAD]

    layer_specs: static tuple of (num_stacks, inner_relu, final_relu).
    All matmuls are bf16 on the MXU with f32 accumulation.
    """
    x_ref, adj_ref = refs[0], refs[1]
    bias_ref = refs[-2]
    out_ref = refs[-1]
    slab_refs = refs[2:-2]

    adj = adj_ref[...]                       # bf16 [NP, NP]
    h = x_ref[...]                           # f32  [NP, F_PAD]
    bias_all = bias_ref[...]                 # f32  [L, K_max*F_PAD]

    for l, (k_stacks, inner_relu, final_relu) in enumerate(layer_specs):
        kf = k_stacks * F_PAD
        slab_ref = slab_refs[l]
        iw = slab_ref[0:F_PAD, :]                     # bf16 [F_PAD, kf]
        rw = slab_ref[F_PAD:2 * F_PAD, :]             # bf16 [F_PAD, kf]
        w_bd = slab_ref[2 * F_PAD:2 * F_PAD + kf, :]  # bf16 [kf, kf]
        bias = bias_all[l:l + 1, 0:kf]                # f32  [1, kf]

        h_bf = h.astype(jnp.bfloat16)

        # 1) A @ h, computed once and reused by all K stacks (reassociation:
        #    A @ (x @ W) == (A @ x) @ W).
        ax = jnp.dot(adj, h_bf,
                     preferred_element_type=jnp.float32).astype(jnp.bfloat16)

        # 2) root / skip term for ALL stacks in one matmul; reused at t=0, t=1.
        root = jnp.dot(h_bf, rw, preferred_element_type=jnp.float32) + bias

        # 3) t = 0 for all stacks.
        h0 = jnp.dot(ax, iw, preferred_element_type=jnp.float32) + root
        if inner_relu:
            h0 = jnp.maximum(h0, 0.0)

        # 4) per-stack h0_k @ w_k via the block-diagonal packed weight.
        g = jnp.dot(h0.astype(jnp.bfloat16), w_bd,
                    preferred_element_type=jnp.float32)

        # 5) t = 1 propagation for all stacks.
        h1 = jnp.dot(adj, g.astype(jnp.bfloat16),
                     preferred_element_type=jnp.float32) + root
        if inner_relu:
            h1 = jnp.maximum(h1, 0.0)

        # mean over stacks: VPU sum of K lane-aligned slices, scaled once.
        if k_stacks == 1:
            h = h1
        else:
            hsum = h1[:, 0:F_PAD]
            for k in range(1, k_stacks):
                hsum = hsum + h1[:, k * F_PAD:(k + 1) * F_PAD]
            h = hsum * (1.0 / k_stacks)

        if final_relu:
            h = jnp.maximum(h, 0.0)

    out_ref[...] = h                          # single lane-dense f32 store


# ------------------------------ host-side glue ----------------------------- #

def pad_graph_inputs(x, adj):
    """Pad node dim to a multiple of 128 (lane-dense adjacency tile)."""
    n = x.shape[0]
    n_pad = ((n + 127) // 128) * 128
    x_pad = jnp.pad(x, ((0, n_pad - n), (0, F_PAD - x.shape[1])))
    adj_pad = jnp.pad(adj, ((0, n_pad - n), (0, n_pad - n))).astype(jnp.bfloat16)
    return x_pad, adj_pad


def arma_forward_pallas(x, adj, slabs, bias_all, layer_specs):
    """One pallas_call for the whole network. Returns padded [NP, F_PAD] f32."""
    x_pad, adj_pad = pad_graph_inputs(x, adj)
    n_pad = x_pad.shape[0]

    inputs = [x_pad, adj_pad, *slabs, bias_all]   # 6 DMAs total (L = 3)
    kernel = functools.partial(fused_arma_kernel, layer_specs=layer_specs)
    vmem = pl.BlockSpec(memory_space=pltpu.MemorySpace.VMEM)
    return pl.pallas_call(
        kernel,
        out_shape=jax.ShapeDtypeStruct((n_pad, F_PAD), jnp.float32),
        in_specs=[vmem] * len(inputs),
        out_specs=vmem,
    )(*inputs)


def gcn_norm_dense(edge_index, num_nodes, edge_weight=None):
    """Dense D^{-1/2} A D^{-1/2} (no self loops), matching PyG gcn_norm.

    Degree is taken from dst (PyG convention); the edge list built in main is
    explicitly symmetrized, so this equals the symmetric normalization.
    """
    src, dst = edge_index[0], edge_index[1]
    if edge_weight is None:
        edge_weight = jnp.ones(src.shape[0], dtype=jnp.float32)
    deg = jnp.zeros((num_nodes,), jnp.float32).at[dst].add(edge_weight)
    dinv = jnp.where(deg > 0, 1.0 / jnp.sqrt(deg), 0.0)
    norm = dinv[src] * edge_weight * dinv[dst]
    adj = jnp.zeros((num_nodes, num_nodes), jnp.float32).at[dst, src].add(norm)
    return adj


def make_arma_conv_params(key, in_ch, out_ch, num_stacks):
    """Deterministic glorot-style init; shared_weights=True so T-dim is dropped."""
    k1, k2, k3 = jax.random.split(key, 3)

    def glorot(k, shape):
        fan_in, fan_out = shape[-2], shape[-1]
        lim = jnp.sqrt(6.0 / (fan_in + fan_out))
        return jax.random.uniform(k, shape, jnp.float32, -lim, lim)

    init_w = glorot(k1, (num_stacks, in_ch, out_ch))
    w = glorot(k2, (num_stacks, out_ch, out_ch))
    root_w = glorot(k3, (num_stacks, in_ch, out_ch))
    bias = jnp.zeros((num_stacks, 1, out_ch), jnp.float32)
    return (init_w, w, root_w, bias)


def pack_layer(params, f_pad):
    """Host-side weight packing for one ARMAConv layer.

    Returns:
      slab     : bf16 [(2+K)*f_pad, K*f_pad]  (init_w | root_w | blockdiag(w))
      bias_row : f32  [K*f_pad]
    """
    iw, w, rw, b = params
    K = iw.shape[0]

    def pad3(a):
        return jnp.pad(a, ((0, 0), (0, f_pad - a.shape[1]), (0, f_pad - a.shape[2])))

    iw_p, w_p, rw_p = pad3(iw), pad3(w), pad3(rw)
    iw_packed = jnp.concatenate(list(iw_p), axis=1)        # [f_pad, K*f_pad]
    rw_packed = jnp.concatenate(list(rw_p), axis=1)        # [f_pad, K*f_pad]

    w_bd = jnp.zeros((K * f_pad, K * f_pad), jnp.float32)  # block-diagonal t=1 weight
    for k in range(K):
        w_bd = w_bd.at[k * f_pad:(k + 1) * f_pad, k * f_pad:(k + 1) * f_pad].set(w_p[k])

    slab = jnp.concatenate([iw_packed, rw_packed, w_bd], axis=0).astype(jnp.bfloat16)
    bias_row = jnp.concatenate(
        [jnp.pad(b[k, 0], (0, f_pad - b.shape[2])) for k in range(K)])
    return slab, bias_row


# ----------------------- references for correctness ------------------------ #

def arma_conv_ref(x, adj, params, *, inner_relu, final_relu):
    """Pure-f32 reference for one ARMAConv layer (original operation order)."""
    init_w, w, root_w, bias = params
    root = jnp.einsum("nf,kfo->kno", x, root_w) + bias
    h = jnp.einsum("nf,kfo->kno", x, init_w)
    h = jnp.einsum("nm,kmo->kno", adj, h) + root
    if inner_relu:
        h = jax.nn.relu(h)
    h = jnp.einsum("kno,kop->knp", h, w)
    h = jnp.einsum("nm,kmo->kno", adj, h) + root
    if inner_relu:
        h = jax.nn.relu(h)
    out = h.mean(axis=0)
    return jax.nn.relu(out) if final_relu else out


def arma_forward_ref(x, adj, params):
    # F.dropout(p=0.5 / 0.25) in eval mode -> identity
    x = arma_conv_ref(x, adj, params["conv1"], inner_relu=True, final_relu=True)
    for p in params["convs"]:
        x = arma_conv_ref(x, adj, p, inner_relu=True, final_relu=True)
    return arma_conv_ref(x, adj, params["conv2"], inner_relu=False, final_relu=False)


def arma_forward_mimic(x, adj, slabs, bias_all, layer_specs):
    """Plain-JAX mirror of the exact kernel math (same packing / bf16 casts)."""
    h, adj_pad = pad_graph_inputs(x, adj)
    for l, (k_stacks, inner_relu, final_relu) in enumerate(layer_specs):
        kf = k_stacks * F_PAD
        slab = slabs[l]
        iw = slab[0:F_PAD]
        rw = slab[F_PAD:2 * F_PAD]
        w_bd = slab[2 * F_PAD:2 * F_PAD + kf]
        bias = bias_all[l:l + 1, 0:kf]

        h_bf = h.astype(jnp.bfloat16)
        ax = jnp.dot(adj_pad, h_bf,
                     preferred_element_type=jnp.float32).astype(jnp.bfloat16)
        root = jnp.dot(h_bf, rw, preferred_element_type=jnp.float32) + bias
        h0 = jnp.dot(ax, iw, preferred_element_type=jnp.float32) + root
        if inner_relu:
            h0 = jnp.maximum(h0, 0.0)
        g = jnp.dot(h0.astype(jnp.bfloat16), w_bd, preferred_element_type=jnp.float32)
        h1 = jnp.dot(adj_pad, g.astype(jnp.bfloat16),
                     preferred_element_type=jnp.float32) + root
        if inner_relu:
            h1 = jnp.maximum(h1, 0.0)
        if k_stacks == 1:
            h = h1
        else:
            h = sum(h1[:, k * F_PAD:(k + 1) * F_PAD] for k in range(k_stacks)) \
                * (1.0 / k_stacks)
        if final_relu:
            h = jnp.maximum(h, 0.0)
    return h


# ---------------------------------- main ----------------------------------- #

if __name__ == "__main__":
    N, IN_CH, HIDDEN, OUT_CH, LAYER_NUM = 16, 8, 32, 4, 3

    key = jax.random.PRNGKey(0)
    k_x, k_e, k_p = jax.random.split(key, 3)

    # node features
    x = jax.random.normal(k_x, (N, IN_CH), jnp.float32)

    # edges: ring graph + a few random edges, symmetrized
    ring_src = jnp.arange(N, dtype=jnp.int32)
    ring_dst = (ring_src + 1) % N
    r_src = jax.random.randint(k_e, (8,), 0, N, dtype=jnp.int32)
    r_dst = (r_src + jax.random.randint(jax.random.fold_in(k_e, 1), (8,), 1, N,
                                        dtype=jnp.int32)) % N
    src = jnp.concatenate([ring_src, ring_dst, r_src, r_dst])
    dst = jnp.concatenate([ring_dst, ring_src, r_dst, r_src])
    edge_index = jnp.stack([src, dst])          # [2, 48]

    adj = gcn_norm_dense(edge_index, N)

    # deterministic parameters (ARMAConv.__init__ shapes, shared_weights=True)
    kp = jax.random.split(k_p, LAYER_NUM)
    params = {
        "conv1": make_arma_conv_params(kp[0], IN_CH, HIDDEN, num_stacks=3),
        "convs": [make_arma_conv_params(kp[1 + i], HIDDEN, HIDDEN, num_stacks=1)
                  for i in range(LAYER_NUM - 2)],
        "conv2": make_arma_conv_params(kp[-1], IN_CH if LAYER_NUM == 1 else HIDDEN,
                                       OUT_CH, num_stacks=3),
    }

    # (params, inner_relu, final_relu) per layer, in forward order
    raw_layers = [(params["conv1"], True, True)]
    for p in params["convs"]:
        raw_layers.append((p, True, True))
    raw_layers.append((params["conv2"], False, False))

    # host-side packing: one bf16 weight slab per layer + one f32 bias table
    slabs, bias_rows = [], []
    for (p, _, _) in raw_layers:
        slab, brow = pack_layer(p, F_PAD)
        slabs.append(slab)
        bias_rows.append(brow)
    kf_max = max(br.shape[0] for br in bias_rows)
    bias_all = jnp.stack([jnp.pad(br, (0, kf_max - br.shape[0]))
                          for br in bias_rows])                 # [L, K_max*F_PAD]

    layer_specs = tuple((p[0].shape[0], ir, fr) for (p, ir, fr) in raw_layers)

    @jax.jit
    def run(x, adj, slabs, bias_all):
        return arma_forward_pallas(x, adj, slabs, bias_all, layer_specs)

    out_pad = jax.block_until_ready(run(x, adj, slabs, bias_all))
    out = out_pad[:N, :OUT_CH]

    # 1) tight check vs a plain-JAX mirror of the exact kernel math (bf16 MXU)
    mimic = arma_forward_mimic(x, adj, slabs, bias_all, layer_specs)[:N, :OUT_CH]
    # 2) loose check vs the original full-f32 ARMA reference (bf16 input bound)
    ref = arma_forward_ref(x, adj, params)

    assert out.shape == (N, OUT_CH)
    assert jnp.allclose(out, mimic, rtol=2e-3, atol=2e-3), \
        "mismatch vs bf16-equivalent JAX reference"
    assert jnp.allclose(out, ref, rtol=1e-1, atol=1e-1), \
        "mismatch vs f32 ARMA reference beyond bf16 precision bound"

    print("KERNEL_OK")
</pallas_src>

<mosaic_0001>
module attributes {stable_mosaic.version = 11 : i64} {
  func.func @fused_arma_kernel(%arg0: memref<128x128xf32, #tpu.memory_space<vmem>>, %arg1: memref<128x128xbf16, #tpu.memory_space<vmem>>, %arg2: memref<640x384xbf16, #tpu.memory_space<vmem>>, %arg3: memref<384x128xbf16, #tpu.memory_space<vmem>>, %arg4: memref<640x384xbf16, #tpu.memory_space<vmem>>, %arg5: memref<3x384xf32, #tpu.memory_space<vmem>>, %arg6: memref<128x128xf32, #tpu.memory_space<vmem>>) attributes {dimension_semantics = [], scalar_prefetch = 0 : i64, scratch_operands = 0 : i64, tpu.core_type = #tpu.core_type<tc>} {
    %c0 = arith.constant 0 : index
    %c0_0 = arith.constant 0 : index
    %0 = vector.load %arg1[%c0, %c0_0] : memref<128x128xbf16, #tpu.memory_space<vmem>>, vector<128x128xbf16>
    %c0_1 = arith.constant 0 : index
    %c0_2 = arith.constant 0 : index
    %1 = vector.load %arg0[%c0_1, %c0_2] : memref<128x128xf32, #tpu.memory_space<vmem>>, vector<128x128xf32>
    %c0_3 = arith.constant 0 : index
    %c0_4 = arith.constant 0 : index
    %2 = vector.load %arg5[%c0_3, %c0_4] : memref<3x384xf32, #tpu.memory_space<vmem>>, vector<3x384xf32>
    %c0_5 = arith.constant 0 : index
    %c0_6 = arith.constant 0 : index
    %3 = vector.load %arg2[%c0_5, %c0_6] : memref<640x384xbf16, #tpu.memory_space<vmem>>, vector<128x384xbf16>
    %c128 = arith.constant 128 : index
    %c0_7 = arith.constant 0 : index
    %4 = vector.load %arg2[%c128, %c0_7] : memref<640x384xbf16, #tpu.memory_space<vmem>>, vector<128x384xbf16>
    %c256 = arith.constant 256 : index
    %c0_8 = arith.constant 0 : index
    %5 = vector.load %arg2[%c256, %c0_8] : memref<640x384xbf16, #tpu.memory_space<vmem>>, vector<384x384xbf16>
    %6 = vector.extract_strided_slice %2 {offsets = [0, 0], sizes = [1, 384], strides = [1, 1]} : vector<3x384xf32> to vector<1x384xf32>
    %7 = arith.truncf %1 : vector<128x128xf32> to vector<128x128xbf16>
    %cst = arith.constant dense<0.000000e+00> : vector<128x128xf32>
    %8 = tpu.matmul %0, %7, %cst {dimension_numbers = #tpu.dot_dimension_numbers<[1], [0], [0], [1], [0, 0, 1, 1], [], []>} : vector<128x128xbf16>, vector<128x128xbf16>, vector<128x128xf32> -> vector<128x128xf32>
    %9 = arith.truncf %8 : vector<128x128xf32> to vector<128x128xbf16>
    %cst_9 = arith.constant dense<0.000000e+00> : vector<128x384xf32>
    %10 = tpu.matmul %7, %4, %cst_9 {dimension_numbers = #tpu.dot_dimension_numbers<[1], [0], [0], [1], [0, 0, 1, 1], [], []>} : vector<128x128xbf16>, vector<128x384xbf16>, vector<128x384xf32> -> vector<128x384xf32>
    %11 = vector.broadcast %6 : vector<1x384xf32> to vector<128x384xf32>
    %12 = arith.addf %10, %11 : vector<128x384xf32>
    %cst_10 = arith.constant dense<0.000000e+00> : vector<128x384xf32>
    %13 = tpu.matmul %9, %3, %cst_10 {dimension_numbers = #tpu.dot_dimension_numbers<[1], [0], [0], [1], [0, 0, 1, 1], [], []>} : vector<128x128xbf16>, vector<128x384xbf16>, vector<128x384xf32> -> vector<128x384xf32>
    %14 = arith.addf %13, %12 : vector<128x384xf32>
    %cst_11 = arith.constant 0.000000e+00 : f32
    %15 = vector.broadcast %cst_11 : f32 to vector<128x384xf32>
    %16 = arith.maximumf %14, %15 : vector<128x384xf32>
    %17 = arith.truncf %16 : vector<128x384xf32> to vector<128x384xbf16>
    %cst_12 = arith.constant dense<0.000000e+00> : vector<128x384xf32>
    %18 = tpu.matmul %17, %5, %cst_12 {dimension_numbers = #tpu.dot_dimension_numbers<[1], [0], [0], [1], [0, 0, 1, 1], [], []>} : vector<128x384xbf16>, vector<384x384xbf16>, vector<128x384xf32> -> vector<128x384xf32>
    %19 = arith.truncf %18 : vector<128x384xf32> to vector<128x384xbf16>
    %cst_13 = arith.constant dense<0.000000e+00> : vector<128x384xf32>
    %20 = tpu.matmul %0, %19, %cst_13 {dimension_numbers = #tpu.dot_dimension_numbers<[1], [0], [0], [1], [0, 0, 1, 1], [], []>} : vector<128x128xbf16>, vector<128x384xbf16>, vector<128x384xf32> -> vector<128x384xf32>
    %21 = arith.addf %20, %12 : vector<128x384xf32>
    %cst_14 = arith.constant 0.000000e+00 : f32
    %22 = vector.broadcast %cst_14 : f32 to vector<128x384xf32>
    %23 = arith.maximumf %21, %22 : vector<128x384xf32>
    %24 = vector.extract_strided_slice %23 {offsets = [0, 0], sizes = [128, 128], strides = [1, 1]} : vector<128x384xf32> to vector<128x128xf32>
    %25 = vector.extract_strided_slice %23 {offsets = [0, 128], sizes = [128, 128], strides = [1, 1]} : vector<128x384xf32> to vector<128x128xf32>
    %26 = arith.addf %24, %25 : vector<128x128xf32>
    %27 = vector.extract_strided_slice %23 {offsets = [0, 256], sizes = [128, 128], strides = [1, 1]} : vector<128x384xf32> to vector<128x128xf32>
    %28 = arith.addf %26, %27 : vector<128x128xf32>
    %cst_15 = arith.constant 0.333333343 : f32
    %29 = vector.broadcast %cst_15 : f32 to vector<128x128xf32>
    %30 = arith.mulf %28, %29 : vector<128x128xf32>
    %cst_16 = arith.constant 0.000000e+00 : f32
    %31 = vector.broadcast %cst_16 : f32 to vector<128x128xf32>
    %32 = arith.maximumf %30, %31 : vector<128x128xf32>
    %c0_17 = arith.constant 0 : index
    %c0_18 = arith.constant 0 : index
    %33 = vector.load %arg3[%c0_17, %c0_18] : memref<384x128xbf16, #tpu.memory_space<vmem>>, vector<128x128xbf16>
    %c128_19 = arith.constant 128 : index
    %c0_20 = arith.constant 0 : index
    %34 = vector.load %arg3[%c128_19, %c0_20] : memref<384x128xbf16, #tpu.memory_space<vmem>>, vector<128x128xbf16>
    %c256_21 = arith.constant 256 : index
    %c0_22 = arith.constant 0 : index
    %35 = vector.load %arg3[%c256_21, %c0_22] : memref<384x128xbf16, #tpu.memory_space<vmem>>, vector<128x128xbf16>
    %36 = vector.extract_strided_slice %2 {offsets = [1, 0], sizes = [1, 128], strides = [1, 1]} : vector<3x384xf32> to vector<1x128xf32>
    %37 = arith.truncf %32 : vector<128x128xf32> to vector<128x128xbf16>
    %cst_23 = arith.constant dense<0.000000e+00> : vector<128x128xf32>
    %38 = tpu.matmul %0, %37, %cst_23 {dimension_numbers = #tpu.dot_dimension_numbers<[1], [0], [0], [1], [0, 0, 1, 1], [], []>} : vector<128x128xbf16>, vector<128x128xbf16>, vector<128x128xf32> -> vector<128x128xf32>
    %39 = arith.truncf %38 : vector<128x128xf32> to vector<128x128xbf16>
    %cst_24 = arith.constant dense<0.000000e+00> : vector<128x128xf32>
    %40 = tpu.matmul %37, %34, %cst_24 {dimension_numbers = #tpu.dot_dimension_numbers<[1], [0], [0], [1], [0, 0, 1, 1], [], []>} : vector<128x128xbf16>, vector<128x128xbf16>, vector<128x128xf32> -> vector<128x128xf32>
    %41 = vector.broadcast %36 : vector<1x128xf32> to vector<128x128xf32>
    %42 = arith.addf %40, %41 : vector<128x128xf32>
    %cst_25 = arith.constant dense<0.000000e+00> : vector<128x128xf32>
    %43 = tpu.matmul %39, %33, %cst_25 {dimension_numbers = #tpu.dot_dimension_numbers<[1], [0], [0], [1], [0, 0, 1, 1], [], []>} : vector<128x128xbf16>, vector<128x128xbf16>, vector<128x128xf32> -> vector<128x128xf32>
    %44 = arith.addf %43, %42 : vector<128x128xf32>
    %cst_26 = arith.constant 0.000000e+00 : f32
    %45 = vector.broadcast %cst_26 : f32 to vector<128x128xf32>
    %46 = arith.maximumf %44, %45 : vector<128x128xf32>
    %47 = arith.truncf %46 : vector<128x128xf32> to vector<128x128xbf16>
    %cst_27 = arith.constant dense<0.000000e+00> : vector<128x128xf32>
    %48 = tpu.matmul %47, %35, %cst_27 {dimension_numbers = #tpu.dot_dimension_numbers<[1], [0], [0], [1], [0, 0, 1, 1], [], []>} : vector<128x128xbf16>, vector<128x128xbf16>, vector<128x128xf32> -> vector<128x128xf32>
    %49 = arith.truncf %48 : vector<128x128xf32> to vector<128x128xbf16>
    %cst_28 = arith.constant dense<0.000000e+00> : vector<128x128xf32>
    %50 = tpu.matmul %0, %49, %cst_28 {dimension_numbers = #tpu.dot_dimension_numbers<[1], [0], [0], [1], [0, 0, 1, 1], [], []>} : vector<128x128xbf16>, vector<128x128xbf16>, vector<128x128xf32> -> vector<128x128xf32>
    %51 = arith.addf %50, %42 : vector<128x128xf32>
    %cst_29 = arith.constant 0.000000e+00 : f32
    %52 = vector.broadcast %cst_29 : f32 to vector<128x128xf32>
    %53 = arith.maximumf %51, %52 : vector<128x128xf32>
    %cst_30 = arith.constant 0.000000e+00 : f32
    %54 = vector.broadcast %cst_30 : f32 to vector<128x128xf32>
    %55 = arith.maximumf %53, %54 : vector<128x128xf32>
    %c0_31 = arith.constant 0 : index
    %c0_32 = arith.constant 0 : index
    %56 = vector.load %arg4[%c0_31, %c0_32] : memref<640x384xbf16, #tpu.memory_space<vmem>>, vector<128x384xbf16>
    %c128_33 = arith.constant 128 : index
    %c0_34 = arith.constant 0 : index
    %57 = vector.load %arg4[%c128_33, %c0_34] : memref<640x384xbf16, #tpu.memory_space<vmem>>, vector<128x384xbf16>
    %c256_35 = arith.constant 256 : index
    %c0_36 = arith.constant 0 : index
    %58 = vector.load %arg4[%c256_35, %c0_36] : memref<640x384xbf16, #tpu.memory_space<vmem>>, vector<384x384xbf16>
    %59 = vector.extract_strided_slice %2 {offsets = [2, 0], sizes = [1, 384], strides = [1, 1]} : vector<3x384xf32> to vector<1x384xf32>
    %60 = arith.truncf %55 : vector<128x128xf32> to vector<128x128xbf16>
    %cst_37 = arith.constant dense<0.000000e+00> : vector<128x128xf32>
    %61 = tpu.matmul %0, %60, %cst_37 {dimension_numbers = #tpu.dot_dimension_numbers<[1], [0], [0], [1], [0, 0, 1, 1], [], []>} : vector<128x128xbf16>, vector<128x128xbf16>, vector<128x128xf32> -> vector<128x128xf32>
    %62 = arith.truncf %61 : vector<128x128xf32> to vector<128x128xbf16>
    %cst_38 = arith.constant dense<0.000000e+00> : vector<128x384xf32>
    %63 = tpu.matmul %60, %57, %cst_38 {dimension_numbers = #tpu.dot_dimension_numbers<[1], [0], [0], [1], [0, 0, 1, 1], [], []>} : vector<128x128xbf16>, vector<128x384xbf16>, vector<128x384xf32> -> vector<128x384xf32>
    %64 = vector.broadcast %59 : vector<1x384xf32> to vector<128x384xf32>
    %65 = arith.addf %63, %64 : vector<128x384xf32>
    %cst_39 = arith.constant dense<0.000000e+00> : vector<128x384xf32>
    %66 = tpu.matmul %62, %56, %cst_39 {dimension_numbers = #tpu.dot_dimension_numbers<[1], [0], [0], [1], [0, 0, 1, 1], [], []>} : vector<128x128xbf16>, vector<128x384xbf16>, vector<128x384xf32> -> vector<128x384xf32>
    %67 = arith.addf %66, %65 : vector<128x384xf32>
    %68 = arith.truncf %67 : vector<128x384xf32> to vector<128x384xbf16>
    %cst_40 = arith.constant dense<0.000000e+00> : vector<128x384xf32>
    %69 = tpu.matmul %68, %58, %cst_40 {dimension_numbers = #tpu.dot_dimension_numbers<[1], [0], [0], [1], [0, 0, 1, 1], [], []>} : vector<128x384xbf16>, vector<384x384xbf16>, vector<128x384xf32> -> vector<128x384xf32>
    %70 = arith.truncf %69 : vector<128x384xf32> to vector<128x384xbf16>
    %cst_41 = arith.constant dense<0.000000e+00> : vector<128x384xf32>
    %71 = tpu.matmul %0, %70, %cst_41 {dimension_numbers = #tpu.dot_dimension_numbers<[1], [0], [0], [1], [0, 0, 1, 1], [], []>} : vector<128x128xbf16>, vector<128x384xbf16>, vector<128x384xf32> -> vector<128x384xf32>
    %72 = arith.addf %71, %65 : vector<128x384xf32>
    %73 = vector.extract_strided_slice %72 {offsets = [0, 0], sizes = [128, 128], strides = [1, 1]} : vector<128x384xf32> to vector<128x128xf32>
    %74 = vector.extract_strided_slice %72 {offsets = [0, 128], sizes = [128, 128], strides = [1, 1]} : vector<128x384xf32> to vector<128x128xf32>
    %75 = arith.addf %73, %74 : vector<128x128xf32>
    %76 = vector.extract_strided_slice %72 {offsets = [0, 256], sizes = [128, 128], strides = [1, 1]} : vector<128x384xf32> to vector<128x128xf32>
    %77 = arith.addf %75, %76 : vector<128x128xf32>
    %cst_42 = arith.constant 0.333333343 : f32
    %78 = vector.broadcast %cst_42 : f32 to vector<128x128xf32>
    %79 = arith.mulf %77, %78 : vector<128x128xf32>
    %c0_43 = arith.constant 0 : index
    %c0_44 = arith.constant 0 : index
    %80 = vector.load %arg6[%c0_43, %c0_44] : memref<128x128xf32, #tpu.memory_space<vmem>>, vector<128x128xf32>
    tpu.vector_store %arg6[%c0_43, %c0_44], %79 {strides = array<i32>} : memref<128x128xf32, #tpu.memory_space<vmem>>, vector<128x128xf32>,
    return
  }
}

</mosaic_0001>

<llo_original>
// kernel: run.1
$region0: #{run.1}
  #allocation0 [shape = 'u32[]', space=smem, size = 0x4, offset = 0x4, fixed_abs, tag = 'smem constant byte address 0x4 - core index']
  #allocation1 [shape = 'u32[144,128]{1,0:T(1,128)}', space=vmem, size = 0x12000, scoped, tag = 'internal scratch']
  %s0 = inlined_call_operand.vmem [shape: f32[128,128], index: 0, kind: input, shape index: {}]
  %s1 = inlined_call_operand.vmem [shape: bf16[128,128], index: 1, kind: input, shape index: {}]
  %s2 = inlined_call_operand.hbm [shape: bf16[640,384], index: 2, kind: input, shape index: {}]
  %s3 = inlined_call_operand.vmem [shape: bf16[384,128], index: 3, kind: input, shape index: {}]
  %s4 = inlined_call_operand.hbm [shape: bf16[640,384], index: 4, kind: input, shape index: {}]
  %s5 = inlined_call_operand.vmem [shape: f32[3,384], index: 5, kind: input, shape index: {}]
  %s6 = inlined_call_operand.hbm [shape: f32[128,128], index: 6, kind: output, shape index: {}]
  %s7 = sld [smem:[#allocation0]]
  $region42: #{run.1} parent=0
    _
  %s9 = ssub.s32 1, %s7
  %s10 = scalar_select 0, %s9, %s7
  $region1: #{run.1} parent=0
    #allocation2 [shape = 'u8[491520]{0}', space=vmem, size = 0x78000, scoped, tag = 'input window, operand 2, single buffered']
    #allocation3 [shape = 's32[1]{0}', space=sflag, size = 0x4, scoped, tag = 'scoped memory for run.1']
    #allocation4 [shape = 's32[1]{0}', space=sflag, size = 0x4, scoped, tag = 'scoped memory for run.1']
    #allocation5 [shape = 'u8[491520]{0}', space=vmem, size = 0x78000, scoped, tag = 'input window, operand 4, single buffered']
    #allocation6 [shape = 's32[1]{0}', space=sflag, size = 0x4, scoped, tag = 'scoped memory for run.1']
    #allocation7 [shape = 'u8[65536]{0}', space=vmem, size = 0x10000, scoped, tag = 'output window, operand 0, single buffered']
    %11 = vsyncpa [#allocation3], 0
    %12 = vsyncpa [#allocation6], 0
    %13 = vsyncpa [#allocation4], 0
    // Predicated region
    $region2: #{run.1} parent=1 // pred_check
      _
    $region3: #{run.1} parent=1 // pred_check_branch
      %15 = sbr.rel (0) target = $region5
    $region4: #{run.1} parent=1 // pred_region
      _
    $region5: #{run.1} parent=1 // pred_fallthru
      _
    // Predicated region
    $region6: #{run.1} parent=1 // pred_check
      _
    $region7: #{run.1} parent=1 // pred_check_branch
      %17 = sbr.rel (0) target = $region9
    $region8: #{run.1} parent=1 // pred_region
      _
    $region9: #{run.1} parent=1 // pred_fallthru
      _
    // Predicated region
    $region10: #{run.1} parent=1 // pred_check
      _
    $region11: #{run.1} parent=1 // pred_check_branch
      %19 = sbr.rel (0) target = $region13
    $region12: #{run.1} parent=1 // pred_region
      %s21 = ssub.s32 15360, 15360
      %22 = vsyncadd [#allocation3], %s21
      %s23 = sshll.u32 [#allocation2], 4
      %s24 = int_to_ptr.vmem [resolvable:$true] %s23
      %29 = dma.hbm_to_vmem [thread:$0]  %s2, 15360, %s24, [#allocation3], 192, 192, 12
    $region13: #{run.1} parent=1 // pred_fallthru
      _
    // Predicated region
    $region14: #{run.1} parent=1 // pred_check
      _
    $region15: #{run.1} parent=1 // pred_check_branch
      %31 = sbr.rel (0) target = $region17
    $region16: #{run.1} parent=1 // pred_region
      _
    $region17: #{run.1} parent=1 // pred_fallthru
      _
    // Predicated region
    $region18: #{run.1} parent=1 // pred_check
      _
    $region19: #{run.1} parent=1 // pred_check_branch
      %33 = sbr.rel (0) target = $region21
    $region20: #{run.1} parent=1 // pred_region
      %s35 = ssub.s32 15360, 15360
      %36 = vsyncadd [#allocation6], %s35
      %s37 = sshll.u32 [#allocation5], 4
      %s38 = int_to_ptr.vmem [resolvable:$true] %s37
      %43 = dma.hbm_to_vmem [thread:$0]  %s4, 15360, %s38, [#allocation6], 192, 192, 12
    $region21: #{run.1} parent=1 // pred_fallthru
      _
    // Predicated region
    $region22: #{run.1} parent=1 // pred_check
      _
    $region23: #{run.1} parent=1 // pred_check_branch
      %45 = sbr.rel (0) target = $region25
    $region24: #{run.1} parent=1 // pred_region
      _
    $region25: #{run.1} parent=1 // pred_fallthru
      _
    // Predicated region
    $region26: #{run.1} parent=1 // pred_check
      _
    $region27: #{run.1} parent=1 // pred_check_branch
      %47 = sbr.rel (0) target = $region29
    $region28: #{run.1} parent=1 // pred_region
      %48 = dma.done [#allocation3], 15360
    $region29: #{run.1} parent=1 // pred_fallthru
      _
    // Predicated region
    $region30: #{run.1} parent=1 // pred_check
      _
    $region31: #{run.1} parent=1 // pred_check_branch
      %50 = sbr.rel (0) target = $region33
    $region32: #{run.1} parent=1 // pred_region
      %51 = dma.done [#allocation6], 15360
    $region33: #{run.1} parent=1 // pred_fallthru
      _
    %v53 = vld [vmem:[%s1] sm:$0xf]
    %v54 = vld [vmem:[%s1 + $0x4] sm:$0xf]
    %v55 = vld [vmem:[%s1 + $0x8] sm:$0xf]
    %v56 = vld [vmem:[%s1 + $0xc] sm:$0xf]
    %v57 = vld [vmem:[%s1 + $0x10] sm:$0xf]
    %v58 = vld [vmem:[%s1 + $0x14] sm:$0xf]
    %v59 = vld [vmem:[%s1 + $0x18] sm:$0xf]
    %v60 = vld [vmem:[%s1 + $0x1c] sm:$0xf]
    %v61 = vld [vmem:[%s1 + $0x20] sm:$0xf]
    %v62 = vld [vmem:[%s1 + $0x24] sm:$0xf]
    %v63 = vld [vmem:[%s1 + $0x28] sm:$0xf]
    %v64 = vld [vmem:[%s1 + $0x2c] sm:$0xf]
    %v65 = vld [vmem:[%s1 + $0x30] sm:$0xf]
    %v66 = vld [vmem:[%s1 + $0x34] sm:$0xf]
    %v67 = vld [vmem:[%s1 + $0x38] sm:$0xf]
    %v68 = vld [vmem:[%s1 + $0x3c] sm:$0xf]
    %v69 = vld [vmem:[%s0] sm:$0xff]
    %v70 = vld [vmem:[%s0 + $0x8] sm:$0xff]
    %v71 = vld [vmem:[%s0 + $0x10] sm:$0xff]
    %v72 = vld [vmem:[%s0 + $0x18] sm:$0xff]
    %v73 = vld [vmem:[%s0 + $0x20] sm:$0xff]
    %v74 = vld [vmem:[%s0 + $0x28] sm:$0xff]
    %v75 = vld [vmem:[%s0 + $0x30] sm:$0xff]
    %v76 = vld [vmem:[%s0 + $0x38] sm:$0xff]
    %v77 = vld [vmem:[%s0 + $0x40] sm:$0xff]
    %v78 = vld [vmem:[%s0 + $0x48] sm:$0xff]
    %v79 = vld [vmem:[%s0 + $0x50] sm:$0xff]
    %v80 = vld [vmem:[%s0 + $0x58] sm:$0xff]
    %v81 = vld [vmem:[%s0 + $0x60] sm:$0xff]
    %v82 = vld [vmem:[%s0 + $0x68] sm:$0xff]
    %v83 = vld [vmem:[%s0 + $0x70] sm:$0xff]
    %v84 = vld [vmem:[%s0 + $0x78] sm:$0xff]
    %v85 = vld [vmem:[%s5] sm:$0x77]
    %v86 = vld [vmem:[%s5 + $0x8] sm:$0x7]
    %v87 = vld [vmem:[#allocation2] sm:$0xff]
    %v88 = vld [vmem:[#allocation2 + $0x8] sm:$0xf]
    %v89 = vld [vmem:[#allocation2 + $0xc] sm:$0xff]
    %v90 = vld [vmem:[#allocation2 + $0x14] sm:$0xf]
    %v91 = vld [vmem:[#allocation2 + $0x18] sm:$0xff]
    %v92 = vld [vmem:[#allocation2 + $0x20] sm:$0xf]
    %v93 = vld [vmem:[#allocation2 + $0x24] sm:$0xff]
    %v94 = vld [vmem:[#allocation2 + $0x2c] sm:$0xf]
    %v95 = vld [vmem:[#allocation2 + $0x30] sm:$0xff]
    %v96 = vld [vmem:[#allocation2 + $0x38] sm:$0xf]
    %v97 = vld [vmem:[#allocation2 + $0x3c] sm:$0xff]
    %v98 = vld [vmem:[#allocation2 + $0x44] sm:$0xf]
    %v99 = vld [vmem:[#allocation2 + $0x48] sm:$0xff]
    %v100 = vld [vmem:[#allocation2 + $0x50] sm:$0xf]
    %v101 = vld [vmem:[#allocation2 + $0x54] sm:$0xff]
    %v102 = vld [vmem:[#allocation2 + $0x5c] sm:$0xf]
    %v103 = vld [vmem:[#allocation2 + $0x60] sm:$0xff]
    %v104 = vld [vmem:[#allocation2 + $0x68] sm:$0xf]
    %v105 = vld [vmem:[#allocation2 + $0x6c] sm:$0xff]
    %v106 = vld [vmem:[#allocation2 + $0x74] sm:$0xf]
    %v107 = vld [vmem:[#allocation2 + $0x78] sm:$0xff]
    %v108 = vld [vmem:[#allocation2 + $0x80] sm:$0xf]
    %v109 = vld [vmem:[#allocation2 + $0x84] sm:$0xff]
    %v110 = vld [vmem:[#allocation2 + $0x8c] sm:$0xf]
    %v111 = vld [vmem:[#allocation2 + $0x90] sm:$0xff]
    %v112 = vld [vmem:[#allocation2 + $0x98] sm:$0xf]
    %v113 = vld [vmem:[#allocation2 + $0x9c] sm:$0xff]
    %v114 = vld [vmem:[#allocation2 + $0xa4] sm:$0xf]
    %v115 = vld [vmem:[#allocation2 + $0xa8] sm:$0xff]
    %v116 = vld [vmem:[#allocation2 + $0xb0] sm:$0xf]
    %v117 = vld [vmem:[#allocation2 + $0xb4] sm:$0xff]
    %v118 = vld [vmem:[#allocation2 + $0xbc] sm:$0xf]
    %v119 = vld [vmem:[#allocation2 + $0xc0] sm:$0xff]
    %v120 = vld [vmem:[#allocation2 + $0xc8] sm:$0xf]
    %v121 = vld [vmem:[#allocation2 + $0xcc] sm:$0xff]
    %v122 = vld [vmem:[#allocation2 + $0xd4] sm:$0xf]
    %v123 = vld [vmem:[#allocation2 + $0xd8] sm:$0xff]
    %v124 = vld [vmem:[#allocation2 + $0xe0] sm:$0xf]
    %v125 = vld [vmem:[#allocation2 + $0xe4] sm:$0xff]
    %v126 = vld [vmem:[#allocation2 + $0xec] sm:$0xf]
    %v127 = vld [vmem:[#allocation2 + $0xf0] sm:$0xff]
    %v128 = vld [vmem:[#allocation2 + $0xf8] sm:$0xf]
    %v129 = vld [vmem:[#allocation2 + $0xfc] sm:$0xff]
    %v130 = vld [vmem:[#allocation2 + $0x104] sm:$0xf]
    %v131 = vld [vmem:[#allocation2 + $0x108] sm:$0xff]
    %v132 = vld [vmem:[#allocation2 + $0x110] sm:$0xf]
    %v133 = vld [vmem:[#allocation2 + $0x114] sm:$0xff]
    %v134 = vld [vmem:[#allocation2 + $0x11c] sm:$0xf]
    %v135 = vld [vmem:[#allocation2 + $0x120] sm:$0xff]
    %v136 = vld [vmem:[#allocation2 + $0x128] sm:$0xf]
    %v137 = vld [vmem:[#allocation2 + $0x12c] sm:$0xff]
    %v138 = vld [vmem:[#allocation2 + $0x134] sm:$0xf]
    %v139 = vld [vmem:[#allocation2 + $0x138] sm:$0xff]
    %v140 = vld [vmem:[#allocation2 + $0x140] sm:$0xf]
    %v141 = vld [vmem:[#allocation2 + $0x144] sm:$0xff]
    %v142 = vld [vmem:[#allocation2 + $0x14c] sm:$0xf]
    %v143 = vld [vmem:[#allocation2 + $0x150] sm:$0xff]
    %v144 = vld [vmem:[#allocation2 + $0x158] sm:$0xf]
    %v145 = vld [vmem:[#allocation2 + $0x15c] sm:$0xff]
    %v146 = vld [vmem:[#allocation2 + $0x164] sm:$0xf]
    %v147 = vld [vmem:[#allocation2 + $0x168] sm:$0xff]
    %v148 = vld [vmem:[#allocation2 + $0x170] sm:$0xf]
    %v149 = vld [vmem:[#allocation2 + $0x174] sm:$0xff]
    %v150 = vld [vmem:[#allocation2 + $0x17c] sm:$0xf]
    %v151 = vld [vmem:[#allocation2 + $0x180] sm:$0xff]
    %v152 = vld [vmem:[#allocation2 + $0x188] sm:$0xf]
    %v153 = vld [vmem:[#allocation2 + $0x18c] sm:$0xff]
    %v154 = vld [vmem:[#allocation2 + $0x194] sm:$0xf]
    %v155 = vld [vmem:[#allocation2 + $0x198] sm:$0xff]
    %v156 = vld [vmem:[#allocation2 + $0x1a0] sm:$0xf]
    %v157 = vld [vmem:[#allocation2 + $0x1a4] sm:$0xff]
    %v158 = vld [vmem:[#allocation2 + $0x1ac] sm:$0xf]
    %v159 = vld [vmem:[#allocation2 + $0x1b0] sm:$0xff]
    %v160 = vld [vmem:[#allocation2 + $0x1b8] sm:$0xf]
    %v161 = vld [vmem:[#allocation2 + $0x1bc] sm:$0xff]
    %v162 = vld [vmem:[#allocation2 + $0x1c4] sm:$0xf]
    %v163 = vld [vmem:[#allocation2 + $0x1c8] sm:$0xff]
    %v164 = vld [vmem:[#allocation2 + $0x1d0] sm:$0xf]
    %v165 = vld [vmem:[#allocation2 + $0x1d4] sm:$0xff]
    %v166 = vld [vmem:[#allocation2 + $0x1dc] sm:$0xf]
    %v167 = vld [vmem:[#allocation2 + $0x1e0] sm:$0xff]
    %v168 = vld [vmem:[#allocation2 + $0x1e8] sm:$0xf]
    %v169 = vld [vmem:[#allocation2 + $0x1ec] sm:$0xff]
    %v170 = vld [vmem:[#allocation2 + $0x1f4] sm:$0xf]
    %v171 = vld [vmem:[#allocation2 + $0x1f8] sm:$0xff]
    %v172 = vld [vmem:[#allocation2 + $0x200] sm:$0xf]
    %v173 = vld [vmem:[#allocation2 + $0x204] sm:$0xff]
    %v174 = vld [vmem:[#allocation2 + $0x20c] sm:$0xf]
    %v175 = vld [vmem:[#allocation2 + $0x210] sm:$0xff]
    %v176 = vld [vmem:[#allocation2 + $0x218] sm:$0xf]
    %v177 = vld [vmem:[#allocation2 + $0x21c] sm:$0xff]
    %v178 = vld [vmem:[#allocation2 + $0x224] sm:$0xf]
    %v179 = vld [vmem:[#allocation2 + $0x228] sm:$0xff]
    %v180 = vld [vmem:[#allocation2 + $0x230] sm:$0xf]
    %v181 = vld [vmem:[#allocation2 + $0x234] sm:$0xff]
    %v182 = vld [vmem:[#allocation2 + $0x23c] sm:$0xf]
    %v183 = vld [vmem:[#allocation2 + $0x240] sm:$0xff]
    %v184 = vld [vmem:[#allocation2 + $0x248] sm:$0xf]
    %v185 = vld [vmem:[#allocation2 + $0x24c] sm:$0xff]
    %v186 = vld [vmem:[#allocation2 + $0x254] sm:$0xf]
    %v187 = vld [vmem:[#allocation2 + $0x258] sm:$0xff]
    %v188 = vld [vmem:[#allocation2 + $0x260] sm:$0xf]
    %v189 = vld [vmem:[#allocation2 + $0x264] sm:$0xff]
    %v190 = vld [vmem:[#allocation2 + $0x26c] sm:$0xf]
    %v191 = vld [vmem:[#allocation2 + $0x270] sm:$0xff]
    %v192 = vld [vmem:[#allocation2 + $0x278] sm:$0xf]
    %v193 = vld [vmem:[#allocation2 + $0x27c] sm:$0xff]
    %v194 = vld [vmem:[#allocation2 + $0x284] sm:$0xf]
    %v195 = vld [vmem:[#allocation2 + $0x288] sm:$0xff]
    %v196 = vld [vmem:[#allocation2 + $0x290] sm:$0xf]
    %v197 = vld [vmem:[#allocation2 + $0x294] sm:$0xff]
    %v198 = vld [vmem:[#allocation2 + $0x29c] sm:$0xf]
    %v199 = vld [vmem:[#allocation2 + $0x2a0] sm:$0xff]
    %v200 = vld [vmem:[#allocation2 + $0x2a8] sm:$0xf]
    %v201 = vld [vmem:[#allocation2 + $0x2ac] sm:$0xff]
    %v202 = vld [vmem:[#allocation2 + $0x2b4] sm:$0xf]
    %v203 = vld [vmem:[#allocation2 + $0x2b8] sm:$0xff]
    %v204 = vld [vmem:[#allocation2 + $0x2c0] sm:$0xf]
    %v205 = vld [vmem:[#allocation2 + $0x2c4] sm:$0xff]
    %v206 = vld [vmem:[#allocation2 + $0x2cc] sm:$0xf]
    %v207 = vld [vmem:[#allocation2 + $0x2d0] sm:$0xff]
    %v208 = vld [vmem:[#allocation2 + $0x2d8] sm:$0xf]
    %v209 = vld [vmem:[#allocation2 + $0x2dc] sm:$0xff]
    %v210 = vld [vmem:[#allocation2 + $0x2e4] sm:$0xf]
    %v211 = vld [vmem:[#allocation2 + $0x2e8] sm:$0xff]
    %v212 = vld [vmem:[#allocation2 + $0x2f0] sm:$0xf]
    %v213 = vld [vmem:[#allocation2 + $0x2f4] sm:$0xff]
    %v214 = vld [vmem:[#allocation2 + $0x2fc] sm:$0xf]
    %v215 = vld [vmem:[#allocation2 + $0x300] sm:$0xff]
    %v216 = vld [vmem:[#allocation2 + $0x308] sm:$0xf]
    %v217 = vld [vmem:[#allocation2 + $0x30c] sm:$0xff]
    %v218 = vld [vmem:[#allocation2 + $0x314] sm:$0xf]
    %v219 = vld [vmem:[#allocation2 + $0x318] sm:$0xff]
    %v220 = vld [vmem:[#allocation2 + $0x320] sm:$0xf]
    %v221 = vld [vmem:[#allocation2 + $0x324] sm:$0xff]
    %v222 = vld [vmem:[#allocation2 + $0x32c] sm:$0xf]
    %v223 = vld [vmem:[#allocation2 + $0x330] sm:$0xff]
    %v224 = vld [vmem:[#allocation2 + $0x338] sm:$0xf]
    %v225 = vld [vmem:[#allocation2 + $0x33c] sm:$0xff]
    %v226 = vld [vmem:[#allocation2 + $0x344] sm:$0xf]
    %v227 = vld [vmem:[#allocation2 + $0x348] sm:$0xff]
    %v228 = vld [vmem:[#allocation2 + $0x350] sm:$0xf]
    %v229 = vld [vmem:[#allocation2 + $0x354] sm:$0xff]
    %v230 = vld [vmem:[#allocation2 + $0x35c] sm:$0xf]
    %v231 = vld [vmem:[#allocation2 + $0x360] sm:$0xff]
    %v232 = vld [vmem:[#allocation2 + $0x368] sm:$0xf]
    %v233 = vld [vmem:[#allocation2 + $0x36c] sm:$0xff]
    %v234 = vld [vmem:[#allocation2 + $0x374] sm:$0xf]
    %v235 = vld [vmem:[#allocation2 + $0x378] sm:$0xff]
    %v236 = vld [vmem:[#allocation2 + $0x380] sm:$0xf]
    %v237 = vld [vmem:[#allocation2 + $0x384] sm:$0xff]
    %v238 = vld [vmem:[#allocation2 + $0x38c] sm:$0xf]
    %v239 = vld [vmem:[#allocation2 + $0x390] sm:$0xff]
    %v240 = vld [vmem:[#allocation2 + $0x398] sm:$0xf]
    %v241 = vld [vmem:[#allocation2 + $0x39c] sm:$0xff]
    %v242 = vld [vmem:[#allocation2 + $0x3a4] sm:$0xf]
    %v243 = vld [vmem:[#allocation2 + $0x3a8] sm:$0xff]
    %v244 = vld [vmem:[#allocation2 + $0x3b0] sm:$0xf]
    %v245 = vld [vmem:[#allocation2 + $0x3b4] sm:$0xff]
    %v246 = vld [vmem:[#allocation2 + $0x3bc] sm:$0xf]
    %v247 = vpack.c.bf16 %v70, %v69
    %v248 = vpack.c.bf16 %v72, %v71
    %v249 = vpack.c.bf16 %v74, %v73
    %v250 = vpack.c.bf16 %v76, %v75
    %v251 = vpack.c.bf16 %v78, %v77
    %v252 = vpack.c.bf16 %v80, %v79
    %v253 = vpack.c.bf16 %v82, %v81
    %v254 = vpack.c.bf16 %v84, %v83
    %v271 = vunpack.c.l.b16 %v53
    %v272 = vunpack.c.l.b16 %v54
    %v273 = vunpack.c.l.b16 %v55
    %v274 = vunpack.c.l.b16 %v56
    %v275 = vunpack.c.l.b16 %v57
    %v276 = vunpack.c.l.b16 %v58
    %v277 = vunpack.c.l.b16 %v59
    %v278 = vunpack.c.l.b16 %v60
    %v279 = vunpack.c.l.b16 %v61
    %v280 = vunpack.c.l.b16 %v62
    %v281 = vunpack.c.l.b16 %v63
    %v282 = vunpack.c.l.b16 %v64
    %v283 = vunpack.c.l.b16 %v65
    %v284 = vunpack.c.l.b16 %v66
    %v285 = vunpack.c.l.b16 %v67
    %v286 = vunpack.c.l.b16 %v68
    %v287 = vpack.c.b16 %v272, %v271
    %v288 = vpack.c.b16 %v274, %v273
    %v289 = vpack.c.b16 %v276, %v275
    %v290 = vpack.c.b16 %v278, %v277
    %v291 = vpack.c.b16 %v280, %v279
    %v292 = vpack.c.b16 %v282, %v281
    %v293 = vpack.c.b16 %v284, %v283
    %v294 = vpack.c.b16 %v286, %v285
    %303 = vmatprep.subr.bf16.mxu0 0
    %304 = vmatpush1.bf16.msra.mxu0 %v247
    %305 = vmatprep.subr.bf16.mxu0 0
    %306 = vmatpush1.bf16.msra.mxu0 %v248
    %307 = vmatprep.subr.bf16.mxu0 0
    %308 = vmatpush1.bf16.msra.mxu0 %v249
    %309 = vmatprep.subr.bf16.mxu0 0
    %310 = vmatpush1.bf16.msra.mxu0 %v250
    %311 = vmatprep.subr.bf16.mxu0 0
    %312 = vmatpush1.bf16.msra.mxu0 %v251
    %313 = vmatprep.subr.bf16.mxu0 0
    %314 = vmatpush1.bf16.msra.mxu0 %v252
    %315 = vmatprep.subr.bf16.mxu0 0
    %316 = vmatpush1.bf16.msra.mxu0 %v253
    %317 = vmatprep.subr.bf16.mxu0 0
    %318 = vmatpush1.bf16.msra.mxu0 %v254
    %319 = vmatprep.subr.bf16.mxu0 0
    %320 = vmatpush1.bf16.msra.mxu0 0
    %321 = vmatprep.subr.bf16.mxu0 0
    %322 = vmatpush1.bf16.msra.mxu0 0
    %323 = vmatprep.subr.bf16.mxu0 0
    %324 = vmatpush1.bf16.msra.mxu0 0
    %325 = vmatprep.subr.bf16.mxu0 0
    %326 = vmatpush1.bf16.msra.mxu0 0
    %327 = vmatprep.subr.bf16.mxu0 0
    %328 = vmatpush1.bf16.msra.mxu0 0
    %329 = vmatprep.subr.bf16.mxu0 0
    %330 = vmatpush1.bf16.msra.mxu0 0
    %331 = vmatprep.subr.bf16.mxu0 0
    %332 = vmatpush1.bf16.msra.mxu0 0
    %333 = vmatprep.subr.bf16.mxu0 0
    %334 = vmatpush1.bf16.msra.mxu0 0
    %335 = vmatprep.mubr.bf16.mxu0 0
    %336 = vmatmul.mubr.bf16.gmra.mrb[0].mxu0 %v287
    %v337 = vpop.f32.mrb[0].mxu0
    %v338 = vadd.f32 0.0, %v337
    %v339 = vpop.f32.mrb[0].mxu0
    %v340 = vpop.f32.mrb[0].mxu0
    %v341 = vadd.f32 0.0, %v340
    %v342 = vpop.f32.mrb[0].mxu0
    %343 = vmatprep.mubr.bf16.mxu0 0
    %344 = vmatmul.mubr.bf16.gmra.mrb[0].mxu0 %v288
    %v345 = vpop.f32.mrb[0].mxu0
    %v346 = vadd.f32 0.0, %v345
    %v347 = vpop.f32.mrb[0].mxu0
    %v348 = vpop.f32.mrb[0].mxu0
    %v349 = vadd.f32 0.0, %v348
    %v350 = vpop.f32.mrb[0].mxu0
    %351 = vmatprep.mubr.bf16.mxu0 0
    %352 = vmatmul.mubr.bf16.gmra.mrb[0].mxu0 %v289
    %v353 = vpop.f32.mrb[0].mxu0
    %v354 = vadd.f32 0.0, %v353
    %v355 = vpop.f32.mrb[0].mxu0
    %v356 = vpop.f32.mrb[0].mxu0
    %v357 = vadd.f32 0.0, %v356
    %v358 = vpop.f32.mrb[0].mxu0
    %359 = vmatprep.mubr.bf16.mxu0 0
    %360 = vmatmul.mubr.bf16.gmra.mrb[0].mxu0 %v290
    %v361 = vpop.f32.mrb[0].mxu0
    %v362 = vadd.f32 0.0, %v361
    %v363 = vpop.f32.mrb[0].mxu0
    %v364 = vpop.f32.mrb[0].mxu0
    %v365 = vadd.f32 0.0, %v364
    %v366 = vpop.f32.mrb[0].mxu0
    %367 = vmatprep.mubr.bf16.mxu0 0
    %368 = vmatmul.mubr.bf16.gmra.mrb[0].mxu0 %v291
    %v369 = vpop.f32.mrb[0].mxu0
    %v370 = vadd.f32 0.0, %v369
    %v371 = vpop.f32.mrb[0].mxu0
    %v372 = vpop.f32.mrb[0].mxu0
    %v373 = vadd.f32 0.0, %v372
    %v374 = vpop.f32.mrb[0].mxu0
    %375 = vmatprep.mubr.bf16.mxu0 0
    %376 = vmatmul.mubr.bf16.gmra.mrb[0].mxu0 %v292
    %v377 = vpop.f32.mrb[0].mxu0
    %v378 = vadd.f32 0.0, %v377
    %v379 = vpop.f32.mrb[0].mxu0
    %v380 = vpop.f32.mrb[0].mxu0
    %v381 = vadd.f32 0.0, %v380
    %v382 = vpop.f32.mrb[0].mxu0
    %383 = vmatprep.mubr.bf16.mxu0 0
    %384 = vmatmul.mubr.bf16.gmra.mrb[0].mxu0 %v293
    %v385 = vpop.f32.mrb[0].mxu0
    %v386 = vadd.f32 0.0, %v385
    %v387 = vpop.f32.mrb[0].mxu0
    %v388 = vpop.f32.mrb[0].mxu0
    %v389 = vadd.f32 0.0, %v388
    %v390 = vpop.f32.mrb[0].mxu0
    %391 = vmatprep.mubr.bf16.mxu0 0
    %392 = vmatmul.mubr.bf16.gmra.mrb[0].mxu0 %v294
    %v393 = vpop.f32.mrb[0].mxu0
    %v394 = vadd.f32 0.0, %v393
    %v395 = vpop.f32.mrb[0].mxu0
    %v396 = vpop.f32.mrb[0].mxu0
    %v397 = vadd.f32 0.0, %v396
    %v398 = vpop.f32.mrb[0].mxu0
    %399 = vdwg.mxu0
    %v400 = vpack.c.bf16 %v341, %v338
    %v401 = vpack.c.bf16 %v349, %v346
    %v402 = vpack.c.bf16 %v357, %v354
    %v403 = vpack.c.bf16 %v365, %v362
    %v404 = vpack.c.bf16 %v373, %v370
    %v405 = vpack.c.bf16 %v381, %v378
    %v406 = vpack.c.bf16 %v389, %v386
    %v407 = vpack.c.bf16 %v397, %v394
    %v410 = vlaneseq
    %v411 = vshrl.u32 %v410, 7
    %v412 = vsub.s32 0, %v411
    %v413 = vrot.slane %v85, %v412
    %v414 = vlaneseq
    %v415 = vshrl.u32 %v414, 7
    %v416 = vsub.s32 4, %v415
    %v417 = vrot.slane %v85, %v416
    %v418 = vlaneseq
    %v419 = vshrl.u32 %v418, 7
    %v420 = vsub.s32 0, %v419
    %v421 = vrot.slane %v86, %v420
    %v425 = vlaneseq
    %v426 = vshrl.u32 %v425, 7
    %v427 = vsub.s32 0, %v426
    %v428 = vrot.slane %v413, %v427
    %v429 = vlaneseq
    %v430 = vshrl.u32 %v429, 7
    %v431 = vsub.s32 0, %v430
    %v432 = vrot.slane %v417, %v431
    %v433 = vlaneseq
    %v434 = vshrl.u32 %v433, 7
    %v435 = vsub.s32 0, %v434
    %v436 = vrot.slane %v421, %v435
    %v469 = vunpack.c.l.b16 %v119
    %v470 = vunpack.c.h.b16 %v119
    %v471 = vunpack.c.l.b16 %v120
    %v472 = vunpack.c.l.b16 %v121
    %v473 = vunpack.c.h.b16 %v121
    %v474 = vunpack.c.l.b16 %v122
    %v475 = vunpack.c.l.b16 %v123
    %v476 = vunpack.c.h.b16 %v123
    %v477 = vunpack.c.l.b16 %v124
    %v478 = vunpack.c.l.b16 %v125
    %v479 = vunpack.c.h.b16 %v125
    %v480 = vunpack.c.l.b16 %v126
    %v481 = vunpack.c.l.b16 %v127
    %v482 = vunpack.c.h.b16 %v127
    %v483 = vunpack.c.l.b16 %v128
    %v484 = vunpack.c.l.b16 %v129
    %v485 = vunpack.c.h.b16 %v129
    %v486 = vunpack.c.l.b16 %v130
    %v487 = vunpack.c.l.b16 %v131
    %v488 = vunpack.c.h.b16 %v131
    %v489 = vunpack.c.l.b16 %v132
    %v490 = vunpack.c.l.b16 %v133
    %v491 = vunpack.c.h.b16 %v133
    %v492 = vunpack.c.l.b16 %v134
    %v493 = vunpack.c.l.b16 %v135
    %v494 = vunpack.c.h.b16 %v135
    %v495 = vunpack.c.l.b16 %v136
    %v496 = vunpack.c.l.b16 %v137
    %v497 = vunpack.c.h.b16 %v137
    %v498 = vunpack.c.l.b16 %v138
    %v499 = vunpack.c.l.b16 %v139
    %v500 = vunpack.c.h.b16 %v139
    %v501 = vunpack.c.l.b16 %v140
    %v502 = vunpack.c.l.b16 %v141
    %v503 = vunpack.c.h.b16 %v141
    %v504 = vunpack.c.l.b16 %v142
    %v505 = vunpack.c.l.b16 %v143
    %v506 = vunpack.c.h.b16 %v143
    %v507 = vunpack.c.l.b16 %v144
    %v508 = vunpack.c.l.b16 %v145
    %v509 = vunpack.c.h.b16 %v145
    %v510 = vunpack.c.l.b16 %v146
    %v511 = vunpack.c.l.b16 %v147
    %v512 = vunpack.c.h.b16 %v147
    %v513 = vunpack.c.l.b16 %v148
    %v514 = vunpack.c.l.b16 %v149
    %v515 = vunpack.c.h.b16 %v149
    %v516 = vunpack.c.l.b16 %v150
    %v517 = vpack.c.b16 %v472, %v469
    %v518 = vpack.c.b16 %v473, %v470
    %v519 = vpack.c.b16 %v474, %v471
    %v520 = vpack.c.b16 %v478, %v475
    %v521 = vpack.c.b16 %v479, %v476
    %v522 = vpack.c.b16 %v480, %v477
    %v523 = vpack.c.b16 %v484, %v481
    %v524 = vpack.c.b16 %v485, %v482
    %v525 = vpack.c.b16 %v486, %v483
    %v526 = vpack.c.b16 %v490, %v487
    %v527 = vpack.c.b16 %v491, %v488
    %v528 = vpack.c.b16 %v492, %v489
    %v529 = vpack.c.b16 %v496, %v493
    %v530 = vpack.c.b16 %v497, %v494
    %v531 = vpack.c.b16 %v498, %v495
    %v532 = vpack.c.b16 %v502, %v499
    %v533 = vpack.c.b16 %v503, %v500
    %v534 = vpack.c.b16 %v504, %v501
    %v535 = vpack.c.b16 %v508, %v505
    %v536 = vpack.c.b16 %v509, %v506
    %v537 = vpack.c.b16 %v510, %v507
    %v538 = vpack.c.b16 %v514, %v511
    %v539 = vpack.c.b16 %v515, %v512
    %v540 = vpack.c.b16 %v516, %v513
    %565 = vmatprep.subr.bf16.mxu0 %v518
    %566 = vmatpush1.bf16.msra.mxu0 %v517
    %567 = vmatprep.subr.bf16.mxu0 %v521
    %568 = vmatpush1.bf16.msra.mxu0 %v520
    %569 = vmatprep.subr.bf16.mxu0 %v524
    %570 = vmatpush1.bf16.msra.mxu0 %v523
    %571 = vmatprep.subr.bf16.mxu0 %v527
    %572 = vmatpush1.bf16.msra.mxu0 %v526
    %573 = vmatprep.subr.bf16.mxu0 %v530
    %574 = vmatpush1.bf16.msra.mxu0 %v529
    %575 = vmatprep.subr.bf16.mxu0 %v533
    %576 = vmatpush1.bf16.msra.mxu0 %v532
    %577 = vmatprep.subr.bf16.mxu0 %v536
    %578 = vmatpush1.bf16.msra.mxu0 %v535
    %579 = vmatprep.subr.bf16.mxu0 %v539
    %580 = vmatpush1.bf16.msra.mxu0 %v538
    %581 = vmatprep.subr.bf16.mxu0 0
    %582 = vmatpush1.bf16.msra.mxu0 0
    %583 = vmatprep.subr.bf16.mxu0 0
    %584 = vmatpush1.bf16.msra.mxu0 0
    %585 = vmatprep.subr.bf16.mxu0 0
    %586 = vmatpush1.bf16.msra.mxu0 0
    %587 = vmatprep.subr.bf16.mxu0 0
    %588 = vmatpush1.bf16.msra.mxu0 0
    %589 = vmatprep.subr.bf16.mxu0 0
    %590 = vmatpush1.bf16.msra.mxu0 0
    %591 = vmatprep.subr.bf16.mxu0 0
    %592 = vmatpush1.bf16.msra.mxu0 0
    %593 = vmatprep.subr.bf16.mxu0 0
    %594 = vmatpush1.bf16.msra.mxu0 0
    %595 = vmatprep.subr.bf16.mxu0 0
    %596 = vmatpush1.bf16.msra.mxu0 0
    %597 = vmatprep.mubr.bf16.mxu0 0
    %598 = vmatmul.mubr.bf16.gmra.mrb[0].mxu0 %v247
    %v599 = vpop.f32.mrb[0].mxu0
    %v600 = vadd.f32 %v428, %v599
    %v601 = vpop.f32.mrb[0].mxu0
    %v602 = vadd.f32 %v432, %v601
    %v603 = vpop.f32.mrb[0].mxu0
    %v604 = vadd.f32 %v428, %v603
    %v605 = vpop.f32.mrb[0].mxu0
    %v606 = vadd.f32 %v432, %v605
    %607 = vmatprep.mubr.bf16.mxu0 0
    %608 = vmatmul.mubr.bf16.gmra.mrb[0].mxu0 %v248
    %v609 = vpop.f32.mrb[0].mxu0
    %v610 = vadd.f32 %v428, %v609
    %v611 = vpop.f32.mrb[0].mxu0
    %v612 = vadd.f32 %v432, %v611
    %v613 = vpop.f32.mrb[0].mxu0
    %v614 = vadd.f32 %v428, %v613
    %v615 = vpop.f32.mrb[0].mxu0
    %v616 = vadd.f32 %v432, %v615
    %617 = vmatprep.mubr.bf16.mxu0 0
    %618 = vmatmul.mubr.bf16.gmra.mrb[0].mxu0 %v249
    %v619 = vpop.f32.mrb[0].mxu0
    %v620 = vadd.f32 %v428, %v619
    %v621 = vpop.f32.mrb[0].mxu0
    %v622 = vadd.f32 %v432, %v621
    %v623 = vpop.f32.mrb[0].mxu0
    %v624 = vadd.f32 %v428, %v623
    %v625 = vpop.f32.mrb[0].mxu0
    %v626 = vadd.f32 %v432, %v625
    %627 = vmatprep.mubr.bf16.mxu0 0
    %628 = vmatmul.mubr.bf16.gmra.mrb[0].mxu0 %v250
    %v629 = vpop.f32.mrb[0].mxu0
    %v630 = vadd.f32 %v428, %v629
    %v631 = vpop.f32.mrb[0].mxu0
    %v632 = vadd.f32 %v432, %v631
    %v633 = vpop.f32.mrb[0].mxu0
    %v634 = vadd.f32 %v428, %v633
    %v635 = vpop.f32.mrb[0].mxu0
    %v636 = vadd.f32 %v432, %v635
    %637 = vmatprep.mubr.bf16.mxu0 0
    %638 = vmatmul.mubr.bf16.gmra.mrb[0].mxu0 %v251
    %v639 = vpop.f32.mrb[0].mxu0
    %v640 = vadd.f32 %v428, %v639
    %v641 = vpop.f32.mrb[0].mxu0
    %v642 = vadd.f32 %v432, %v641
    %v643 = vpop.f32.mrb[0].mxu0
    %v644 = vadd.f32 %v428, %v643
    %v645 = vpop.f32.mrb[0].mxu0
    %v646 = vadd.f32 %v432, %v645
    %647 = vmatprep.mubr.bf16.mxu0 0
    %648 = vmatmul.mubr.bf16.gmra.mrb[0].mxu0 %v252
    %v649 = vpop.f32.mrb[0].mxu0
    %v650 = vadd.f32 %v428, %v649
    %v651 = vpop.f32.mrb[0].mxu0
    %v652 = vadd.f32 %v432, %v651
    %v653 = vpop.f32.mrb[0].mxu0
    %v654 = vadd.f32 %v428, %v653
    %v655 = vpop.f32.mrb[0].mxu0
    %v656 = vadd.f32 %v432, %v655
    %657 = vmatprep.mubr.bf16.mxu0 0
    %658 = vmatmul.mubr.bf16.gmra.mrb[0].mxu0 %v253
    %v659 = vpop.f32.mrb[0].mxu0
    %v660 = vadd.f32 %v428, %v659
    %v661 = vpop.f32.mrb[0].mxu0
    %v662 = vadd.f32 %v432, %v661
    %v663 = vpop.f32.mrb[0].mxu0
    %v664 = vadd.f32 %v428, %v663
    %v665 = vpop.f32.mrb[0].mxu0
    %v666 = vadd.f32 %v432, %v665
    %667 = vmatprep.mubr.bf16.mxu0 0
    %668 = vmatmul.mubr.bf16.gmra.mrb[0].mxu0 %v254
    %v669 = vpop.f32.mrb[0].mxu0
    %v670 = vadd.f32 %v428, %v669
    %v671 = vpop.f32.mrb[0].mxu0
    %v672 = vadd.f32 %v432, %v671
    %v673 = vpop.f32.mrb[0].mxu0
    %v674 = vadd.f32 %v428, %v673
    %v675 = vpop.f32.mrb[0].mxu0
    %v676 = vadd.f32 %v432, %v675
    %677 = vdwg.mxu0
    %678 = vmatprep.subr.bf16.mxu0 0
    %679 = vmatpush1.bf16.msra.mxu0 %v519
    %680 = vmatprep.subr.bf16.mxu0 0
    %681 = vmatpush1.bf16.msra.mxu0 %v522
    %682 = vmatprep.subr.bf16.mxu0 0
    %683 = vmatpush1.bf16.msra.mxu0 %v525
    %684 = vmatprep.subr.bf16.mxu0 0
    %685 = vmatpush1.bf16.msra.mxu0 %v528
    %686 = vmatprep.subr.bf16.mxu0 0
    %687 = vmatpush1.bf16.msra.mxu0 %v531
    %688 = vmatprep.subr.bf16.mxu0 0
    %689 = vmatpush1.bf16.msra.mxu0 %v534
    %690 = vmatprep.subr.bf16.mxu0 0
    %691 = vmatpush1.bf16.msra.mxu0 %v537
    %692 = vmatprep.subr.bf16.mxu0 0
    %693 = vmatpush1.bf16.msra.mxu0 %v540
    %694 = vmatprep.subr.bf16.mxu0 0
    %695 = vmatpush1.bf16.msra.mxu0 0
    %696 = vmatprep.subr.bf16.mxu0 0
    %697 = vmatpush1.bf16.msra.mxu0 0
    %698 = vmatprep.subr.bf16.mxu0 0
    %699 = vmatpush1.bf16.msra.mxu0 0
    %700 = vmatprep.subr.bf16.mxu0 0
    %701 = vmatpush1.bf16.msra.mxu0 0
    %702 = vmatprep.subr.bf16.mxu0 0
    %703 = vmatpush1.bf16.msra.mxu0 0
    %704 = vmatprep.subr.bf16.mxu0 0
    %705 = vmatpush1.bf16.msra.mxu0 0
    %706 = vmatprep.subr.bf16.mxu0 0
    %707 = vmatpush1.bf16.msra.mxu0 0
    %708 = vmatprep.subr.bf16.mxu0 0
    %709 = vmatpush1.bf16.msra.mxu0 0
    %710 = vmatprep.mubr.bf16.mxu0 0
    %711 = vmatmul.mubr.bf16.gmra.mrb[0].mxu0 %v247
    %v712 = vpop.f32.mrb[0].mxu0
    %v713 = vadd.f32 %v436, %v712
    %v714 = vpop.f32.mrb[0].mxu0
    %v715 = vpop.f32.mrb[0].mxu0
    %v716 = vadd.f32 %v436, %v715
    %v717 = vpop.f32.mrb[0].mxu0
    %718 = vmatprep.mubr.bf16.mxu0 0
    %719 = vmatmul.mubr.bf16.gmra.mrb[0].mxu0 %v248
    %v720 = vpop.f32.mrb[0].mxu0
    %v721 = vadd.f32 %v436, %v720
    %v722 = vpop.f32.mrb[0].mxu0
    %v723 = vpop.f32.mrb[0].mxu0
    %v724 = vadd.f32 %v436, %v723
    %v725 = vpop.f32.mrb[0].mxu0
    %726 = vmatprep.mubr.bf16.mxu0 0
    %727 = vmatmul.mubr.bf16.gmra.mrb[0].mxu0 %v249
    %v728 = vpop.f32.mrb[0].mxu0
    %v729 = vadd.f32 %v436, %v728
    %v730 = vpop.f32.mrb[0].mxu0
    %v731 = vpop.f32.mrb[0].mxu0
    %v732 = vadd.f32 %v436, %v731
    %v733 = vpop.f32.mrb[0].mxu0
    %734 = vmatprep.mubr.bf16.mxu0 0
    %735 = vmatmul.mubr.bf16.gmra.mrb[0].mxu0 %v250
    %v736 = vpop.f32.mrb[0].mxu0
    %v737 = vadd.f32 %v436, %v736
    %v738 = vpop.f32.mrb[0].mxu0
    %v739 = vpop.f32.mrb[0].mxu0
    %v740 = vadd.f32 %v436, %v739
    %v741 = vpop.f32.mrb[0].mxu0
    %742 = vmatprep.mubr.bf16.mxu0 0
    %743 = vmatmul.mubr.bf16.gmra.mrb[0].mxu0 %v251
    %v744 = vpop.f32.mrb[0].mxu0
    %v745 = vadd.f32 %v436, %v744
    %v746 = vpop.f32.mrb[0].mxu0
    %v747 = vpop.f32.mrb[0].mxu0
    %v748 = vadd.f32 %v436, %v747
    %v749 = vpop.f32.mrb[0].mxu0
    %750 = vmatprep.mubr.bf16.mxu0 0
    %751 = vmatmul.mubr.bf16.gmra.mrb[0].mxu0 %v252
    %v752 = vpop.f32.mrb[0].mxu0
    %v753 = vadd.f32 %v436, %v752
    %v754 = vpop.f32.mrb[0].mxu0
    %v755 = vpop.f32.mrb[0].mxu0
    %v756 = vadd.f32 %v436, %v755
    %v757 = vpop.f32.mrb[0].mxu0
    %758 = vmatprep.mubr.bf16.mxu0 0
    %759 = vmatmul.mubr.bf16.gmra.mrb[0].mxu0 %v253
    %v760 = vpop.f32.mrb[0].mxu0
    %v761 = vadd.f32 %v436, %v760
    %v762 = vpop.f32.mrb[0].mxu0
    %v763 = vpop.f32.mrb[0].mxu0
    %v764 = vadd.f32 %v436, %v763
    %v765 = vpop.f32.mrb[0].mxu0
    %766 = vmatprep.mubr.bf16.mxu0 0
    %767 = vmatmul.mubr.bf16.gmra.mrb[0].mxu0 %v254
    %v768 = vpop.f32.mrb[0].mxu0
    %v769 = vadd.f32 %v436, %v768
    %v770 = vpop.f32.mrb[0].mxu0
    %v771 = vpop.f32.mrb[0].mxu0
    %v772 = vadd.f32 %v436, %v771
    %v773 = vpop.f32.mrb[0].mxu0
    %774 = vdwg.mxu0
    %v807 = vunpack.c.l.b16 %v87
    %v808 = vunpack.c.h.b16 %v87
    %v809 = vunpack.c.l.b16 %v88
    %v810 = vunpack.c.l.b16 %v89
    %v811 = vunpack.c.h.b16 %v89
    %v812 = vunpack.c.l.b16 %v90
    %v813 = vunpack.c.l.b16 %v91
    %v814 = vunpack.c.h.b16 %v91
    %v815 = vunpack.c.l.b16 %v92
    %v816 = vunpack.c.l.b16 %v93
    %v817 = vunpack.c.h.b16 %v93
    %v818 = vunpack.c.l.b16 %v94
    %v819 = vunpack.c.l.b16 %v95
    %v820 = vunpack.c.h.b16 %v95
    %v821 = vunpack.c.l.b16 %v96
    %v822 = vunpack.c.l.b16 %v97
    %v823 = vunpack.c.h.b16 %v97
    %v824 = vunpack.c.l.b16 %v98
    %v825 = vunpack.c.l.b16 %v99
    %v826 = vunpack.c.h.b16 %v99
    %v827 = vunpack.c.l.b16 %v100
    %v828 = vunpack.c.l.b16 %v101
    %v829 = vunpack.c.h.b16 %v101
    %v830 = vunpack.c.l.b16 %v102
    %v831 = vunpack.c.l.b16 %v103
    %v832 = vunpack.c.h.b16 %v103
    %v833 = vunpack.c.l.b16 %v104
    %v834 = vunpack.c.l.b16 %v105
    %v835 = vunpack.c.h.b16 %v105
    %v836 = vunpack.c.l.b16 %v106
    %v837 = vunpack.c.l.b16 %v107
    %v838 = vunpack.c.h.b16 %v107
    %v839 = vunpack.c.l.b16 %v108
    %v840 = vunpack.c.l.b16 %v109
    %v841 = vunpack.c.h.b16 %v109
    %v842 = vunpack.c.l.b16 %v110
    %v843 = vunpack.c.l.b16 %v111
    %v844 = vunpack.c.h.b16 %v111
    %v845 = vunpack.c.l.b16 %v112
    %v846 = vunpack.c.l.b16 %v113
    %v847 = vunpack.c.h.b16 %v113
    %v848 = vunpack.c.l.b16 %v114
    %v849 = vunpack.c.l.b16 %v115
    %v850 = vunpack.c.h.b16 %v115
    %v851 = vunpack.c.l.b16 %v116
    %v852 = vunpack.c.l.b16 %v117
    %v853 = vunpack.c.h.b16 %v117
    %v854 = vunpack.c.l.b16 %v118
    %v855 = vpack.c.b16 %v810, %v807
    %v856 = vpack.c.b16 %v811, %v808
    %v857 = vpack.c.b16 %v812, %v809
    %v858 = vpack.c.b16 %v816, %v813
    %v859 = vpack.c.b16 %v817, %v814
    %v860 = vpack.c.b16 %v818, %v815
    %v861 = vpack.c.b16 %v822, %v819
    %v862 = vpack.c.b16 %v823, %v820
    %v863 = vpack.c.b16 %v824, %v821
    %v864 = vpack.c.b16 %v828, %v825
    %v865 = vpack.c.b16 %v829, %v826
    %v866 = vpack.c.b16 %v830, %v827
    %v867 = vpack.c.b16 %v834, %v831
    %v868 = vpack.c.b16 %v835, %v832
    %v869 = vpack.c.b16 %v836, %v833
    %v870 = vpack.c.b16 %v840, %v837
    %v871 = vpack.c.b16 %v841, %v838
    %v872 = vpack.c.b16 %v842, %v839
    %v873 = vpack.c.b16 %v846, %v843
    %v874 = vpack.c.b16 %v847, %v844
    %v875 = vpack.c.b16 %v848, %v845
    %v876 = vpack.c.b16 %v852, %v849
    %v877 = vpack.c.b16 %v853, %v850
    %v878 = vpack.c.b16 %v854, %v851
    %903 = vmatprep.subr.bf16.mxu0 %v856
    %904 = vmatpush1.bf16.msra.mxu0 %v855
    %905 = vmatprep.subr.bf16.mxu0 %v859
    %906 = vmatpush1.bf16.msra.mxu0 %v858
    %907 = vmatprep.subr.bf16.mxu0 %v862
    %908 = vmatpush1.bf16.msra.mxu0 %v861
    %909 = vmatprep.subr.bf16.mxu0 %v865
    %910 = vmatpush1.bf16.msra.mxu0 %v864
    %911 = vmatprep.subr.bf16.mxu0 %v868
    %912 = vmatpush1.bf16.msra.mxu0 %v867
    %913 = vmatprep.subr.bf16.mxu0 %v871
    %914 = vmatpush1.bf16.msra.mxu0 %v870
    %915 = vmatprep.subr.bf16.mxu0 %v874
    %916 = vmatpush1.bf16.msra.mxu0 %v873
    %917 = vmatprep.subr.bf16.mxu0 %v877
    %918 = vmatpush1.bf16.msra.mxu0 %v876
    %919 = vmatprep.subr.bf16.mxu0 0
    %920 = vmatpush1.bf16.msra.mxu0 0
    %921 = vmatprep.subr.bf16.mxu0 0
    %922 = vmatpush1.bf16.msra.mxu0 0
    %923 = vmatprep.subr.bf16.mxu0 0
    %924 = vmatpush1.bf16.msra.mxu0 0
    %925 = vmatprep.subr.bf16.mxu0 0
    %926 = vmatpush1.bf16.msra.mxu0 0
    %927 = vmatprep.subr.bf16.mxu0 0
    %928 = vmatpush1.bf16.msra.mxu0 0
    %929 = vmatprep.subr.bf16.mxu0 0
    %930 = vmatpush1.bf16.msra.mxu0 0
    %931 = vmatprep.subr.bf16.mxu0 0
    %932 = vmatpush1.bf16.msra.mxu0 0
    %933 = vmatprep.subr.bf16.mxu0 0
    %934 = vmatpush1.bf16.msra.mxu0 0
    %935 = vmatprep.mubr.bf16.mxu0 0
    %936 = vmatmul.mubr.bf16.gmra.mrb[0].mxu0 %v400
    %v937 = vpop.f32.mrb[0].mxu0
    %v938 = vadd.f32 %v600, %v937
    %v939 = vpop.f32.mrb[0].mxu0
    %v940 = vadd.f32 %v602, %v939
    %v941 = vpop.f32.mrb[0].mxu0
    %v942 = vadd.f32 %v604, %v941
    %v943 = vpop.f32.mrb[0].mxu0
    %v944 = vadd.f32 %v606, %v943
    %945 = vmatprep.mubr.bf16.mxu0 0
    %946 = vmatmul.mubr.bf16.gmra.mrb[0].mxu0 %v401
    %v947 = vpop.f32.mrb[0].mxu0
    %v948 = vadd.f32 %v610, %v947
    %v949 = vpop.f32.mrb[0].mxu0
    %v950 = vadd.f32 %v612, %v949
    %v951 = vpop.f32.mrb[0].mxu0
    %v952 = vadd.f32 %v614, %v951
    %v953 = vpop.f32.mrb[0].mxu0
    %v954 = vadd.f32 %v616, %v953
    %955 = vmatprep.mubr.bf16.mxu0 0
    %956 = vmatmul.mubr.bf16.gmra.mrb[0].mxu0 %v402
    %v957 = vpop.f32.mrb[0].mxu0
    %v958 = vadd.f32 %v620, %v957
    %v959 = vpop.f32.mrb[0].mxu0
    %v960 = vadd.f32 %v622, %v959
    %v961 = vpop.f32.mrb[0].mxu0
    %v962 = vadd.f32 %v624, %v961
    %v963 = vpop.f32.mrb[0].mxu0
    %v964 = vadd.f32 %v626, %v963
    %965 = vmatprep.mubr.bf16.mxu0 0
    %966 = vmatmul.mubr.bf16.gmra.mrb[0].mxu0 %v403
    %v967 = vpop.f32.mrb[0].mxu0
    %v968 = vadd.f32 %v630, %v967
    %v969 = vpop.f32.mrb[0].mxu0
    %v970 = vadd.f32 %v632, %v969
    %v971 = vpop.f32.mrb[0].mxu0
    %v972 = vadd.f32 %v634, %v971
    %v973 = vpop.f32.mrb[0].mxu0
    %v974 = vadd.f32 %v636, %v973
    %975 = vmatprep.mubr.bf16.mxu0 0
    %976 = vmatmul.mubr.bf16.gmra.mrb[0].mxu0 %v404
    %v977 = vpop.f32.mrb[0].mxu0
    %v978 = vadd.f32 %v640, %v977
    %v979 = vpop.f32.mrb[0].mxu0
    %v980 = vadd.f32 %v642, %v979
    %v981 = vpop.f32.mrb[0].mxu0
    %v982 = vadd.f32 %v644, %v981
    %v983 = vpop.f32.mrb[0].mxu0
    %v984 = vadd.f32 %v646, %v983
    %985 = vmatprep.mubr.bf16.mxu0 0
    %986 = vmatmul.mubr.bf16.gmra.mrb[0].mxu0 %v405
    %v987 = vpop.f32.mrb[0].mxu0
    %v988 = vadd.f32 %v650, %v987
    %v989 = vpop.f32.mrb[0].mxu0
    %v990 = vadd.f32 %v652, %v989
    %v991 = vpop.f32.mrb[0].mxu0
    %v992 = vadd.f32 %v654, %v991
    %v993 = vpop.f32.mrb[0].mxu0
    %v994 = vadd.f32 %v656, %v993
    %995 = vmatprep.mubr.bf16.mxu0 0
    %996 = vmatmul.mubr.bf16.gmra.mrb[0].mxu0 %v406
    %v997 = vpop.f32.mrb[0].mxu0
    %v998 = vadd.f32 %v660, %v997
    %v999 = vpop.f32.mrb[0].mxu0
    %v1000 = vadd.f32 %v662, %v999
    %v1001 = vpop.f32.mrb[0].mxu0
    %v1002 = vadd.f32 %v664, %v1001
    %v1003 = vpop.f32.mrb[0].mxu0
    %v1004 = vadd.f32 %v666, %v1003
    %1005 = vmatprep.mubr.bf16.mxu0 0
    %1006 = vmatmul.mubr.bf16.gmra.mrb[0].mxu0 %v407
    %v1007 = vpop.f32.mrb[0].mxu0
    %v1008 = vadd.f32 %v670, %v1007
    %v1009 = vpop.f32.mrb[0].mxu0
    %v1010 = vadd.f32 %v672, %v1009
    %v1011 = vpop.f32.mrb[0].mxu0
    %v1012 = vadd.f32 %v674, %v1011
    %v1013 = vpop.f32.mrb[0].mxu0
    %v1014 = vadd.f32 %v676, %v1013
    %1015 = vdwg.mxu0
    %1016 = vmatprep.subr.bf16.mxu0 0
    %1017 = vmatpush1.bf16.msra.mxu0 %v857
    %1018 = vmatprep.subr.bf16.mxu0 0
    %1019 = vmatpush1.bf16.msra.mxu0 %v860
    %1020 = vmatprep.subr.bf16.mxu0 0
    %1021 = vmatpush1.bf16.msra.mxu0 %v863
    %1022 = vmatprep.subr.bf16.mxu0 0
    %1023 = vmatpush1.bf16.msra.mxu0 %v866
    %1024 = vmatprep.subr.bf16.mxu0 0
    %1025 = vmatpush1.bf16.msra.mxu0 %v869
    %1026 = vmatprep.subr.bf16.mxu0 0
    %1027 = vmatpush1.bf16.msra.mxu0 %v872
    %1028 = vmatprep.subr.bf16.mxu0 0
    %1029 = vmatpush1.bf16.msra.mxu0 %v875
    %1030 = vmatprep.subr.bf16.mxu0 0
    %1031 = vmatpush1.bf16.msra.mxu0 %v878
    %1032 = vmatprep.subr.bf16.mxu0 0
    %1033 = vmatpush1.bf16.msra.mxu0 0
    %1034 = vmatprep.subr.bf16.mxu0 0
    %1035 = vmatpush1.bf16.msra.mxu0 0
    %1036 = vmatprep.subr.bf16.mxu0 0
    %1037 = vmatpush1.bf16.msra.mxu0 0
    %1038 = vmatprep.subr.bf16.mxu0 0
    %1039 = vmatpush1.bf16.msra.mxu0 0
    %1040 = vmatprep.subr.bf16.mxu0 0
    %1041 = vmatpush1.bf16.msra.mxu0 0
    %1042 = vmatprep.subr.bf16.mxu0 0
    %1043 = vmatpush1.bf16.msra.mxu0 0
    %1044 = vmatprep.subr.bf16.mxu0 0
    %1045 = vmatpush1.bf16.msra.mxu0 0
    %1046 = vmatprep.subr.bf16.mxu0 0
    %1047 = vmatpush1.bf16.msra.mxu0 0
    %1048 = vmatprep.mubr.bf16.mxu0 0
    %1049 = vmatmul.mubr.bf16.gmra.mrb[0].mxu0 %v400
    %v1050 = vpop.f32.mrb[0].mxu0
    %v1051 = vadd.f32 %v713, %v1050
    %v1052 = vpop.f32.mrb[0].mxu0
    %v1053 = vpop.f32.mrb[0].mxu0
    %v1054 = vadd.f32 %v716, %v1053
    %v1055 = vpop.f32.mrb[0].mxu0
    %1056 = vmatprep.mubr.bf16.mxu0 0
    %1057 = vmatmul.mubr.bf16.gmra.mrb[0].mxu0 %v401
    %v1058 = vpop.f32.mrb[0].mxu0
    %v1059 = vadd.f32 %v721, %v1058
    %v1060 = vpop.f32.mrb[0].mxu0
    %v1061 = vpop.f32.mrb[0].mxu0
    %v1062 = vadd.f32 %v724, %v1061
    %v1063 = vpop.f32.mrb[0].mxu0
    %1064 = vmatprep.mubr.bf16.mxu0 0
    %1065 = vmatmul.mubr.bf16.gmra.mrb[0].mxu0 %v402
    %v1066 = vpop.f32.mrb[0].mxu0
    %v1067 = vadd.f32 %v729, %v1066
    %v1068 = vpop.f32.mrb[0].mxu0
    %v1069 = vpop.f32.mrb[0].mxu0
    %v1070 = vadd.f32 %v732, %v1069
    %v1071 = vpop.f32.mrb[0].mxu0
    %1072 = vmatprep.mubr.bf16.mxu0 0
    %1073 = vmatmul.mubr.bf16.gmra.mrb[0].mxu0 %v403
    %v1074 = vpop.f32.mrb[0].mxu0
    %v1075 = vadd.f32 %v737, %v1074
    %v1076 = vpop.f32.mrb[0].mxu0
    %v1077 = vpop.f32.mrb[0].mxu0
    %v1078 = vadd.f32 %v740, %v1077
    %v1079 = vpop.f32.mrb[0].mxu0
    %1080 = vmatprep.mubr.bf16.mxu0 0
    %1081 = vmatmul.mubr.bf16.gmra.mrb[0].mxu0 %v404
    %v1082 = vpop.f32.mrb[0].mxu0
    %v1083 = vadd.f32 %v745, %v1082
    %v1084 = vpop.f32.mrb[0].mxu0
    %v1085 = vpop.f32.mrb[0].mxu0
    %v1086 = vadd.f32 %v748, %v1085
    %v1087 = vpop.f32.mrb[0].mxu0
    %1088 = vmatprep.mubr.bf16.mxu0 0
    %1089 = vmatmul.mubr.bf16.gmra.mrb[0].mxu0 %v405
    %v1090 = vpop.f32.mrb[0].mxu0
    %v1091 = vadd.f32 %v753, %v1090
    %v1092 = vpop.f32.mrb[0].mxu0
    %v1093 = vpop.f32.mrb[0].mxu0
    %v1094 = vadd.f32 %v756, %v1093
    %v1095 = vpop.f32.mrb[0].mxu0
    %1096 = vmatprep.mubr.bf16.mxu0 0
    %1097 = vmatmul.mubr.bf16.gmra.mrb[0].mxu0 %v406
    %v1098 = vpop.f32.mrb[0].mxu0
    %v1099 = vadd.f32 %v761, %v1098
    %v1100 = vpop.f32.mrb[0].mxu0
    %v1101 = vpop.f32.mrb[0].mxu0
    %v1102 = vadd.f32 %v764, %v1101
    %v1103 = vpop.f32.mrb[0].mxu0
    %1104 = vmatprep.mubr.bf16.mxu0 0
    %1105 = vmatmul.mubr.bf16.gmra.mrb[0].mxu0 %v407
    %v1106 = vpop.f32.mrb[0].mxu0
    %v1107 = vadd.f32 %v769, %v1106
    %v1108 = vpop.f32.mrb[0].mxu0
    %v1109 = vpop.f32.mrb[0].mxu0
    %v1110 = vadd.f32 %v772, %v1109
    %v1111 = vpop.f32.mrb[0].mxu0
    %1112 = vdwg.mxu0
    %v1113 = vmax.f32 %v938, 0.0
    %v1114 = vmax.f32 %v940, 0.0
    %v1115 = vmax.f32 %v1051, 0.0
    %v1116 = vmax.f32 %v942, 0.0
    %v1117 = vmax.f32 %v944, 0.0
    %v1118 = vmax.f32 %v1054, 0.0
    %v1119 = vmax.f32 %v948, 0.0
    %v1120 = vmax.f32 %v950, 0.0
    %v1121 = vmax.f32 %v1059, 0.0
    %v1122 = vmax.f32 %v952, 0.0
    %v1123 = vmax.f32 %v954, 0.0
    %v1124 = vmax.f32 %v1062, 0.0
    %v1125 = vmax.f32 %v958, 0.0
    %v1126 = vmax.f32 %v960, 0.0
    %v1127 = vmax.f32 %v1067, 0.0
    %v1128 = vmax.f32 %v962, 0.0
    %v1129 = vmax.f32 %v964, 0.0
    %v1130 = vmax.f32 %v1070, 0.0
    %v1131 = vmax.f32 %v968, 0.0
    %v1132 = vmax.f32 %v970, 0.0
    %v1133 = vmax.f32 %v1075, 0.0
    %v1134 = vmax.f32 %v972, 0.0
    %v1135 = vmax.f32 %v974, 0.0
    %v1136 = vmax.f32 %v1078, 0.0
    %v1137 = vmax.f32 %v978, 0.0
    %v1138 = vmax.f32 %v980, 0.0
    %v1139 = vmax.f32 %v1083, 0.0
    %v1140 = vmax.f32 %v982, 0.0
    %v1141 = vmax.f32 %v984, 0.0
    %v1142 = vmax.f32 %v1086, 0.0
    %v1143 = vmax.f32 %v988, 0.0
    %v1144 = vmax.f32 %v990, 0.0
    %v1145 = vmax.f32 %v1091, 0.0
    %v1146 = vmax.f32 %v992, 0.0
    %v1147 = vmax.f32 %v994, 0.0
    %v1148 = vmax.f32 %v1094, 0.0
    %v1149 = vmax.f32 %v998, 0.0
    %v1150 = vmax.f32 %v1000, 0.0
    %v1151 = vmax.f32 %v1099, 0.0
    %v1152 = vmax.f32 %v1002, 0.0
    %v1153 = vmax.f32 %v1004, 0.0
    %v1154 = vmax.f32 %v1102, 0.0
    %v1155 = vmax.f32 %v1008, 0.0
    %v1156 = vmax.f32 %v1010, 0.0
    %v1157 = vmax.f32 %v1107, 0.0
    %v1158 = vmax.f32 %v1012, 0.0
    %v1159 = vmax.f32 %v1014, 0.0
    %v1160 = vmax.f32 %v1110, 0.0
    %v1161 = vpack.c.bf16 %v1116, %v1113
    %v1162 = vpack.c.bf16 %v1117, %v1114
    %v1163 = vpack.c.bf16 %v1118, %v1115
    %v1164 = vpack.c.bf16 %v1122, %v1119
    %v1165 = vpack.c.bf16 %v1123, %v1120
    %v1166 = vpack.c.bf16 %v1124, %v1121
    %v1167 = vpack.c.bf16 %v1128, %v1125
    %v1168 = vpack.c.bf16 %v1129, %v1126
    %v1169 = vpack.c.bf16 %v1130, %v1127
    %v1170 = vpack.c.bf16 %v1134, %v1131
    %v1171 = vpack.c.bf16 %v1135, %v1132
    %v1172 = vpack.c.bf16 %v1136, %v1133
    %v1173 = vpack.c.bf16 %v1140, %v1137
    %v1174 = vpack.c.bf16 %v1141, %v1138
    %v1175 = vpack.c.bf16 %v1142, %v1139
    %v1176 = vpack.c.bf16 %v1146, %v1143
    %v1177 = vpack.c.bf16 %v1147, %v1144
    %v1178 = vpack.c.bf16 %v1148, %v1145
    %v1179 = vpack.c.bf16 %v1152, %v1149
    %v1180 = vpack.c.bf16 %v1153, %v1150
    %v1181 = vpack.c.bf16 %v1154, %v1151
    %v1182 = vpack.c.bf16 %v1158, %v1155
    %v1183 = vpack.c.bf16 %v1159, %v1156
    %v1184 = vpack.c.bf16 %v1160, %v1157
    %v1281 = vunpack.c.l.b16 %v151
    %v1282 = vunpack.c.h.b16 %v151
    %v1283 = vunpack.c.l.b16 %v152
    %v1284 = vunpack.c.l.b16 %v153
    %v1285 = vunpack.c.h.b16 %v153
    %v1286 = vunpack.c.l.b16 %v154
    %v1287 = vunpack.c.l.b16 %v155
    %v1288 = vunpack.c.h.b16 %v155
    %v1289 = vunpack.c.l.b16 %v156
    %v1290 = vunpack.c.l.b16 %v157
    %v1291 = vunpack.c.h.b16 %v157
    %v1292 = vunpack.c.l.b16 %v158
    %v1293 = vunpack.c.l.b16 %v159
    %v1294 = vunpack.c.h.b16 %v159
    %v1295 = vunpack.c.l.b16 %v160
    %v1296 = vunpack.c.l.b16 %v161
    %v1297 = vunpack.c.h.b16 %v161
    %v1298 = vunpack.c.l.b16 %v162
    %v1299 = vunpack.c.l.b16 %v163
    %v1300 = vunpack.c.h.b16 %v163
    %v1301 = vunpack.c.l.b16 %v164
    %v1302 = vunpack.c.l.b16 %v165
    %v1303 = vunpack.c.h.b16 %v165
    %v1304 = vunpack.c.l.b16 %v166
    %v1305 = vunpack.c.l.b16 %v167
    %v1306 = vunpack.c.h.b16 %v167
    %v1307 = vunpack.c.l.b16 %v168
    %v1308 = vunpack.c.l.b16 %v169
    %v1309 = vunpack.c.h.b16 %v169
    %v1310 = vunpack.c.l.b16 %v170
    %v1311 = vunpack.c.l.b16 %v171
    %v1312 = vunpack.c.h.b16 %v171
    %v1313 = vunpack.c.l.b16 %v172
    %v1314 = vunpack.c.l.b16 %v173
    %v1315 = vunpack.c.h.b16 %v173
    %v1316 = vunpack.c.l.b16 %v174
    %v1317 = vunpack.c.l.b16 %v175
    %v1318 = vunpack.c.h.b16 %v175
    %v1319 = vunpack.c.l.b16 %v176
    %v1320 = vunpack.c.l.b16 %v177
    %v1321 = vunpack.c.h.b16 %v177
    %v1322 = vunpack.c.l.b16 %v178
    %v1323 = vunpack.c.l.b16 %v179
    %v1324 = vunpack.c.h.b16 %v179
    %v1325 = vunpack.c.l.b16 %v180
    %v1326 = vunpack.c.l.b16 %v181
    %v1327 = vunpack.c.h.b16 %v181
    %v1328 = vunpack.c.l.b16 %v182
    %v1329 = vunpack.c.l.b16 %v183
    %v1330 = vunpack.c.h.b16 %v183
    %v1331 = vunpack.c.l.b16 %v184
    %v1332 = vunpack.c.l.b16 %v185
    %v1333 = vunpack.c.h.b16 %v185
    %v1334 = vunpack.c.l.b16 %v186
    %v1335 = vunpack.c.l.b16 %v187
    %v1336 = vunpack.c.h.b16 %v187
    %v1337 = vunpack.c.l.b16 %v188
    %v1338 = vunpack.c.l.b16 %v189
    %v1339 = vunpack.c.h.b16 %v189
    %v1340 = vunpack.c.l.b16 %v190
    %v1341 = vunpack.c.l.b16 %v191
    %v1342 = vunpack.c.h.b16 %v191
    %v1343 = vunpack.c.l.b16 %v192
    %v1344 = vunpack.c.l.b16 %v193
    %v1345 = vunpack.c.h.b16 %v193
    %v1346 = vunpack.c.l.b16 %v194
    %v1347 = vunpack.c.l.b16 %v195
    %v1348 = vunpack.c.h.b16 %v195
    %v1349 = vunpack.c.l.b16 %v196
    %v1350 = vunpack.c.l.b16 %v197
    %v1351 = vunpack.c.h.b16 %v197
    %v1352 = vunpack.c.l.b16 %v198
    %v1353 = vunpack.c.l.b16 %v199
    %v1354 = vunpack.c.h.b16 %v199
    %v1355 = vunpack.c.l.b16 %v200
    %v1356 = vunpack.c.l.b16 %v201
    %v1357 = vunpack.c.h.b16 %v201
    %v1358 = vunpack.c.l.b16 %v202
    %v1359 = vunpack.c.l.b16 %v203
    %v1360 = vunpack.c.h.b16 %v203
    %v1361 = vunpack.c.l.b16 %v204
    %v1362 = vunpack.c.l.b16 %v205
    %v1363 = vunpack.c.h.b16 %v205
    %v1364 = vunpack.c.l.b16 %v206
    %v1365 = vunpack.c.l.b16 %v207
    %v1366 = vunpack.c.h.b16 %v207
    %v1367 = vunpack.c.l.b16 %v208
    %v1368 = vunpack.c.l.b16 %v209
    %v1369 = vunpack.c.h.b16 %v209
    %v1370 = vunpack.c.l.b16 %v210
    %v1371 = vunpack.c.l.b16 %v211
    %v1372 = vunpack.c.h.b16 %v211
    %v1373 = vunpack.c.l.b16 %v212
    %v1374 = vunpack.c.l.b16 %v213
    %v1375 = vunpack.c.h.b16 %v213
    %v1376 = vunpack.c.l.b16 %v214
    %v1377 = vunpack.c.l.b16 %v215
    %v1378 = vunpack.c.h.b16 %v215
    %v1379 = vunpack.c.l.b16 %v216
    %v1380 = vunpack.c.l.b16 %v217
    %v1381 = vunpack.c.h.b16 %v217
    %v1382 = vunpack.c.l.b16 %v218
    %v1383 = vunpack.c.l.b16 %v219
    %v1384 = vunpack.c.h.b16 %v219
    %v1385 = vunpack.c.l.b16 %v220
    %v1386 = vunpack.c.l.b16 %v221
    %v1387 = vunpack.c.h.b16 %v221
    %v1388 = vunpack.c.l.b16 %v222
    %v1389 = vunpack.c.l.b16 %v223
    %v1390 = vunpack.c.h.b16 %v223
    %v1391 = vunpack.c.l.b16 %v224
    %v1392 = vunpack.c.l.b16 %v225
    %v1393 = vunpack.c.h.b16 %v225
    %v1394 = vunpack.c.l.b16 %v226
    %v1395 = vunpack.c.l.b16 %v227
    %v1396 = vunpack.c.h.b16 %v227
    %v1397 = vunpack.c.l.b16 %v228
    %v1398 = vunpack.c.l.b16 %v229
    %v1399 = vunpack.c.h.b16 %v229
    %v1400 = vunpack.c.l.b16 %v230
    %v1401 = vunpack.c.l.b16 %v231
    %v1402 = vunpack.c.h.b16 %v231
    %v1403 = vunpack.c.l.b16 %v232
    %v1404 = vunpack.c.l.b16 %v233
    %v1405 = vunpack.c.h.b16 %v233
    %v1406 = vunpack.c.l.b16 %v234
    %v1407 = vunpack.c.l.b16 %v235
    %v1408 = vunpack.c.h.b16 %v235
    %v1409 = vunpack.c.l.b16 %v236
    %v1410 = vunpack.c.l.b16 %v237
    %v1411 = vunpack.c.h.b16 %v237
    %v1412 = vunpack.c.l.b16 %v238
    %v1413 = vunpack.c.l.b16 %v239
    %v1414 = vunpack.c.h.b16 %v239
    %v1415 = vunpack.c.l.b16 %v240
    %v1416 = vunpack.c.l.b16 %v241
    %v1417 = vunpack.c.h.b16 %v241
    %v1418 = vunpack.c.l.b16 %v242
    %v1419 = vunpack.c.l.b16 %v243
    %v1420 = vunpack.c.h.b16 %v243
    %v1421 = vunpack.c.l.b16 %v244
    %v1422 = vunpack.c.l.b16 %v245
    %v1423 = vunpack.c.h.b16 %v245
    %v1424 = vunpack.c.l.b16 %v246
    %v1425 = vpack.c.b16 %v1284, %v1281
    %v1426 = vpack.c.b16 %v1285, %v1282
    %v1427 = vpack.c.b16 %v1286, %v1283
    %v1428 = vpack.c.b16 %v1290, %v1287
    %v1429 = vpack.c.b16 %v1291, %v1288
    %v1430 = vpack.c.b16 %v1292, %v1289
    %v1431 = vpack.c.b16 %v1296, %v1293
    %v1432 = vpack.c.b16 %v1297, %v1294
    %v1433 = vpack.c.b16 %v1298, %v1295
    %v1434 = vpack.c.b16 %v1302, %v1299
    %v1435 = vpack.c.b16 %v1303, %v1300
    %v1436 = vpack.c.b16 %v1304, %v1301
    %v1437 = vpack.c.b16 %v1308, %v1305
    %v1438 = vpack.c.b16 %v1309, %v1306
    %v1439 = vpack.c.b16 %v1310, %v1307
    %v1440 = vpack.c.b16 %v1314, %v1311
    %v1441 = vpack.c.b16 %v1315, %v1312
    %v1442 = vpack.c.b16 %v1316, %v1313
    %v1443 = vpack.c.b16 %v1320, %v1317
    %v1444 = vpack.c.b16 %v1321, %v1318
    %v1445 = vpack.c.b16 %v1322, %v1319
    %v1446 = vpack.c.b16 %v1326, %v1323
    %v1447 = vpack.c.b16 %v1327, %v1324
    %v1448 = vpack.c.b16 %v1328, %v1325
    %v1449 = vpack.c.b16 %v1332, %v1329
    %v1450 = vpack.c.b16 %v1333, %v1330
    %v1451 = vpack.c.b16 %v1334, %v1331
    %v1452 = vpack.c.b16 %v1338, %v1335
    %v1453 = vpack.c.b16 %v1339, %v1336
    %v1454 = vpack.c.b16 %v1340, %v1337
    %v1455 = vpack.c.b16 %v1344, %v1341
    %v1456 = vpack.c.b16 %v1345, %v1342
    %v1457 = vpack.c.b16 %v1346, %v1343
    %v1458 = vpack.c.b16 %v1350, %v1347
    %v1459 = vpack.c.b16 %v1351, %v1348
    %v1460 = vpack.c.b16 %v1352, %v1349
    %v1461 = vpack.c.b16 %v1356, %v1353
    %v1462 = vpack.c.b16 %v1357, %v1354
    %v1463 = vpack.c.b16 %v1358, %v1355
    %v1464 = vpack.c.b16 %v1362, %v1359
    %v1465 = vpack.c.b16 %v1363, %v1360
    %v1466 = vpack.c.b16 %v1364, %v1361
    %v1467 = vpack.c.b16 %v1368, %v1365
    %v1468 = vpack.c.b16 %v1369, %v1366
    %v1469 = vpack.c.b16 %v1370, %v1367
    %v1470 = vpack.c.b16 %v1374, %v1371
    %v1471 = vpack.c.b16 %v1375, %v1372
    %v1472 = vpack.c.b16 %v1376, %v1373
    %v1473 = vpack.c.b16 %v1380, %v1377
    %v1474 = vpack.c.b16 %v1381, %v1378
    %v1475 = vpack.c.b16 %v1382, %v1379
    %v1476 = vpack.c.b16 %v1386, %v1383
    %v1477 = vpack.c.b16 %v1387, %v1384
    %v1478 = vpack.c.b16 %v1388, %v1385
    %v1479 = vpack.c.b16 %v1392, %v1389
    %v1480 = vpack.c.b16 %v1393, %v1390
    %v1481 = vpack.c.b16 %v1394, %v1391
    %v1482 = vpack.c.b16 %v1398, %v1395
    %v1483 = vpack.c.b16 %v1399, %v1396
    %v1484 = vpack.c.b16 %v1400, %v1397
    %v1485 = vpack.c.b16 %v1404, %v1401
    %v1486 = vpack.c.b16 %v1405, %v1402
    %v1487 = vpack.c.b16 %v1406, %v1403
    %v1488 = vpack.c.b16 %v1410, %v1407
    %v1489 = vpack.c.b16 %v1411, %v1408
    %v1490 = vpack.c.b16 %v1412, %v1409
    %v1491 = vpack.c.b16 %v1416, %v1413
    %v1492 = vpack.c.b16 %v1417, %v1414
    %v1493 = vpack.c.b16 %v1418, %v1415
    %v1494 = vpack.c.b16 %v1422, %v1419
    %v1495 = vpack.c.b16 %v1423, %v1420
    %v1496 = vpack.c.b16 %v1424, %v1421
    %1569 = vmatprep.subr.bf16.mxu0 %v1426
    %1570 = vmatpush1.bf16.msra.mxu0 %v1425
    %1571 = vmatprep.subr.bf16.mxu0 %v1429
    %1572 = vmatpush1.bf16.msra.mxu0 %v1428
    %1573 = vmatprep.subr.bf16.mxu0 %v1432
    %1574 = vmatpush1.bf16.msra.mxu0 %v1431
    %1575 = vmatprep.subr.bf16.mxu0 %v1435
    %1576 = vmatpush1.bf16.msra.mxu0 %v1434
    %1577 = vmatprep.subr.bf16.mxu0 %v1438
    %1578 = vmatpush1.bf16.msra.mxu0 %v1437
    %1579 = vmatprep.subr.bf16.mxu0 %v1441
    %1580 = vmatpush1.bf16.msra.mxu0 %v1440
    %1581 = vmatprep.subr.bf16.mxu0 %v1444
    %1582 = vmatpush1.bf16.msra.mxu0 %v1443
    %1583 = vmatprep.subr.bf16.mxu0 %v1447
    %1584 = vmatpush1.bf16.msra.mxu0 %v1446
    %1585 = vmatprep.subr.bf16.mxu0 %v1450
    %1586 = vmatpush1.bf16.msra.mxu0 %v1449
    %1587 = vmatprep.subr.bf16.mxu0 %v1453
    %1588 = vmatpush1.bf16.msra.mxu0 %v1452
    %1589 = vmatprep.subr.bf16.mxu0 %v1456
    %1590 = vmatpush1.bf16.msra.mxu0 %v1455
    %1591 = vmatprep.subr.bf16.mxu0 %v1459
    %1592 = vmatpush1.bf16.msra.mxu0 %v1458
    %1593 = vmatprep.subr.bf16.mxu0 %v1462
    %1594 = vmatpush1.bf16.msra.mxu0 %v1461
    %1595 = vmatprep.subr.bf16.mxu0 %v1465
    %1596 = vmatpush1.bf16.msra.mxu0 %v1464
    %1597 = vmatprep.subr.bf16.mxu0 %v1468
    %1598 = vmatpush1.bf16.msra.mxu0 %v1467
    %1599 = vmatprep.subr.bf16.mxu0 %v1471
    %1600 = vmatpush1.bf16.msra.mxu0 %v1470
    %1601 = vmatprep.mubr.bf16.mxu0 %v1162
    %1602 = vmatmul.mubr.bf16.gmra.mrb[0].mxu0 %v1161
    %v1603 = vpop.f32.mrb[0].mxu0
    %v1604 = vadd.f32 0.0, %v1603
    %v1605 = vpop.f32.mrb[0].mxu0
    %v1606 = vadd.f32 0.0, %v1605
    %v1607 = vpop.f32.mrb[0].mxu0
    %v1608 = vadd.f32 0.0, %v1607
    %v1609 = vpop.f32.mrb[0].mxu0
    %v1610 = vadd.f32 0.0, %v1609
    %1611 = vmatprep.mubr.bf16.mxu0 %v1165
    %1612 = vmatmul.mubr.bf16.gmra.mrb[0].mxu0 %v1164
    %v1613 = vpop.f32.mrb[0].mxu0
    %v1614 = vadd.f32 0.0, %v1613
    %v1615 = vpop.f32.mrb[0].mxu0
    %v1616 = vadd.f32 0.0, %v1615
    %v1617 = vpop.f32.mrb[0].mxu0
    %v1618 = vadd.f32 0.0, %v1617
    %v1619 = vpop.f32.mrb[0].mxu0
    %v1620 = vadd.f32 0.0, %v1619
    %1621 = vmatprep.mubr.bf16.mxu0 %v1168
    %1622 = vmatmul.mubr.bf16.gmra.mrb[0].mxu0 %v1167
    %v1623 = vpop.f32.mrb[0].mxu0
    %v1624 = vadd.f32 0.0, %v1623
    %v1625 = vpop.f32.mrb[0].mxu0
    %v1626 = vadd.f32 0.0, %v1625
    %v1627 = vpop.f32.mrb[0].mxu0
    %v1628 = vadd.f32 0.0, %v1627
    %v1629 = vpop.f32.mrb[0].mxu0
    %v1630 = vadd.f32 0.0, %v1629
    %1631 = vmatprep.mubr.bf16.mxu0 %v1171
    %1632 = vmatmul.mubr.bf16.gmra.mrb[0].mxu0 %v1170
    %v1633 = vpop.f32.mrb[0].mxu0
    %v1634 = vadd.f32 0.0, %v1633
    %v1635 = vpop.f32.mrb[0].mxu0
    %v1636 = vadd.f32 0.0, %v1635
    %v1637 = vpop.f32.mrb[0].mxu0
    %v1638 = vadd.f32 0.0, %v1637
    %v1639 = vpop.f32.mrb[0].mxu0
    %v1640 = vadd.f32 0.0, %v1639
    %1641 = vmatprep.mubr.bf16.mxu0 %v1174
    %1642 = vmatmul.mubr.bf16.gmra.mrb[0].mxu0 %v1173
    %v1643 = vpop.f32.mrb[0].mxu0
    %v1644 = vadd.f32 0.0, %v1643
    %v1645 = vpop.f32.mrb[0].mxu0
    %v1646 = vadd.f32 0.0, %v1645
    %v1647 = vpop.f32.mrb[0].mxu0
    %v1648 = vadd.f32 0.0, %v1647
    %v1649 = vpop.f32.mrb[0].mxu0
    %v1650 = vadd.f32 0.0, %v1649
    %1651 = vmatprep.mubr.bf16.mxu0 %v1177
    %1652 = vmatmul.mubr.bf16.gmra.mrb[0].mxu0 %v1176
    %v1653 = vpop.f32.mrb[0].mxu0
    %v1654 = vadd.f32 0.0, %v1653
    %v1655 = vpop.f32.mrb[0].mxu0
    %v1656 = vadd.f32 0.0, %v1655
    %v1657 = vpop.f32.mrb[0].mxu0
    %v1658 = vadd.f32 0.0, %v1657
    %v1659 = vpop.f32.mrb[0].mxu0
    %v1660 = vadd.f32 0.0, %v1659
    %1661 = vmatprep.mubr.bf16.mxu0 %v1180
    %1662 = vmatmul.mubr.bf16.gmra.mrb[0].mxu0 %v1179
    %v1663 = vpop.f32.mrb[0].mxu0
    %v1664 = vadd.f32 0.0, %v1663
    %v1665 = vpop.f32.mrb[0].mxu0
    %v1666 = vadd.f32 0.0, %v1665
    %v1667 = vpop.f32.mrb[0].mxu0
    %v1668 = vadd.f32 0.0, %v1667
    %v1669 = vpop.f32.mrb[0].mxu0
    %v1670 = vadd.f32 0.0, %v1669
    %1671 = vmatprep.mubr.bf16.mxu0 %v1183
    %1672 = vmatmul.mubr.bf16.gmra.mrb[0].mxu0 %v1182
    %v1673 = vpop.f32.mrb[0].mxu0
    %v1674 = vadd.f32 0.0, %v1673
    %v1675 = vpop.f32.mrb[0].mxu0
    %v1676 = vadd.f32 0.0, %v1675
    %v1677 = vpop.f32.mrb[0].mxu0
    %v1678 = vadd.f32 0.0, %v1677
    %v1679 = vpop.f32.mrb[0].mxu0
    %v1680 = vadd.f32 0.0, %v1679
    %1681 = vdwg.mxu0
    %1682 = vmatprep.subr.bf16.mxu0 %v1474
    %1683 = vmatpush1.bf16.msra.mxu0 %v1473
    %1684 = vmatprep.subr.bf16.mxu0 %v1477
    %1685 = vmatpush1.bf16.msra.mxu0 %v1476
    %1686 = vmatprep.subr.bf16.mxu0 %v1480
    %1687 = vmatpush1.bf16.msra.mxu0 %v1479
    %1688 = vmatprep.subr.bf16.mxu0 %v1483
    %1689 = vmatpush1.bf16.msra.mxu0 %v1482
    %1690 = vmatprep.subr.bf16.mxu0 %v1486
    %1691 = vmatpush1.bf16.msra.mxu0 %v1485
    %1692 = vmatprep.subr.bf16.mxu0 %v1489
    %1693 = vmatpush1.bf16.msra.mxu0 %v1488
    %1694 = vmatprep.subr.bf16.mxu0 %v1492
    %1695 = vmatpush1.bf16.msra.mxu0 %v1491
    %1696 = vmatprep.subr.bf16.mxu0 %v1495
    %1697 = vmatpush1.bf16.msra.mxu0 %v1494
    %1698 = vmatprep.subr.bf16.mxu0 0
    %1699 = vmatpush1.bf16.msra.mxu0 0
    %1700 = vmatprep.subr.bf16.mxu0 0
    %1701 = vmatpush1.bf16.msra.mxu0 0
    %1702 = vmatprep.subr.bf16.mxu0 0
    %1703 = vmatpush1.bf16.msra.mxu0 0
    %1704 = vmatprep.subr.bf16.mxu0 0
    %1705 = vmatpush1.bf16.msra.mxu0 0
    %1706 = vmatprep.subr.bf16.mxu0 0
    %1707 = vmatpush1.bf16.msra.mxu0 0
    %1708 = vmatprep.subr.bf16.mxu0 0
    %1709 = vmatpush1.bf16.msra.mxu0 0
    %1710 = vmatprep.subr.bf16.mxu0 0
    %1711 = vmatpush1.bf16.msra.mxu0 0
    %1712 = vmatprep.subr.bf16.mxu0 0
    %1713 = vmatpush1.bf16.msra.mxu0 0
    %1714 = vmatprep.mubr.bf16.mxu0 0
    %1715 = vmatmul.mubr.bf16.gmra.mrb[0].mxu0 %v1163
    %v1716 = vpop.f32.mrb[0].mxu0
    %v1717 = vadd.f32 %v1604, %v1716
    %v1718 = vpop.f32.mrb[0].mxu0
    %v1719 = vadd.f32 %v1606, %v1718
    %v1720 = vpop.f32.mrb[0].mxu0
    %v1721 = vadd.f32 %v1608, %v1720
    %v1722 = vpop.f32.mrb[0].mxu0
    %v1723 = vadd.f32 %v1610, %v1722
    %1724 = vmatprep.mubr.bf16.mxu0 0
    %1725 = vmatmul.mubr.bf16.gmra.mrb[0].mxu0 %v1166
    %v1726 = vpop.f32.mrb[0].mxu0
    %v1727 = vadd.f32 %v1614, %v1726
    %v1728 = vpop.f32.mrb[0].mxu0
    %v1729 = vadd.f32 %v1616, %v1728
    %v1730 = vpop.f32.mrb[0].mxu0
    %v1731 = vadd.f32 %v1618, %v1730
    %v1732 = vpop.f32.mrb[0].mxu0
    %v1733 = vadd.f32 %v1620, %v1732
    %1734 = vmatprep.mubr.bf16.mxu0 0
    %1735 = vmatmul.mubr.bf16.gmra.mrb[0].mxu0 %v1169
    %v1736 = vpop.f32.mrb[0].mxu0
    %v1737 = vadd.f32 %v1624, %v1736
    %v1738 = vpop.f32.mrb[0].mxu0
    %v1739 = vadd.f32 %v1626, %v1738
    %v1740 = vpop.f32.mrb[0].mxu0
    %v1741 = vadd.f32 %v1628, %v1740
    %v1742 = vpop.f32.mrb[0].mxu0
    %v1743 = vadd.f32 %v1630, %v1742
    %1744 = vmatprep.mubr.bf16.mxu0 0
    %1745 = vmatmul.mubr.bf16.gmra.mrb[0].mxu0 %v1172
    %v1746 = vpop.f32.mrb[0].mxu0
    %v1747 = vadd.f32 %v1634, %v1746
    %v1748 = vpop.f32.mrb[0].mxu0
    %v1749 = vadd.f32 %v1636, %v1748
    %v1750 = vpop.f32.mrb[0].mxu0
    %v1751 = vadd.f32 %v1638, %v1750
    %v1752 = vpop.f32.mrb[0].mxu0
    %v1753 = vadd.f32 %v1640, %v1752
    %1754 = vmatprep.mubr.bf16.mxu0 0
    %1755 = vmatmul.mubr.bf16.gmra.mrb[0].mxu0 %v1175
    %v1756 = vpop.f32.mrb[0].mxu0
    %v1757 = vadd.f32 %v1644, %v1756
    %v1758 = vpop.f32.mrb[0].mxu0
    %v1759 = vadd.f32 %v1646, %v1758
    %v1760 = vpop.f32.mrb[0].mxu0
    %v1761 = vadd.f32 %v1648, %v1760
    %v1762 = vpop.f32.mrb[0].mxu0
    %v1763 = vadd.f32 %v1650, %v1762
    %1764 = vmatprep.mubr.bf16.mxu0 0
    %1765 = vmatmul.mubr.bf16.gmra.mrb[0].mxu0 %v1178
    %v1766 = vpop.f32.mrb[0].mxu0
    %v1767 = vadd.f32 %v1654, %v1766
    %v1768 = vpop.f32.mrb[0].mxu0
    %v1769 = vadd.f32 %v1656, %v1768
    %v1770 = vpop.f32.mrb[0].mxu0
    %v1771 = vadd.f32 %v1658, %v1770
    %v1772 = vpop.f32.mrb[0].mxu0
    %v1773 = vadd.f32 %v1660, %v1772
    %1774 = vmatprep.mubr.bf16.mxu0 0
    %1775 = vmatmul.mubr.bf16.gmra.mrb[0].mxu0 %v1181
    %v1776 = vpop.f32.mrb[0].mxu0
    %v1777 = vadd.f32 %v1664, %v1776
    %v1778 = vpop.f32.mrb[0].mxu0
    %v1779 = vadd.f32 %v1666, %v1778
    %v1780 = vpop.f32.mrb[0].mxu0
    %v1781 = vadd.f32 %v1668, %v1780
    %v1782 = vpop.f32.mrb[0].mxu0
    %v1783 = vadd.f32 %v1670, %v1782
    %1784 = vmatprep.mubr.bf16.mxu0 0
    %1785 = vmatmul.mubr.bf16.gmra.mrb[0].mxu0 %v1184
    %v1786 = vpop.f32.mrb[0].mxu0
    %v1787 = vadd.f32 %v1674, %v1786
    %v1788 = vpop.f32.mrb[0].mxu0
    %v1789 = vadd.f32 %v1676, %v1788
    %v1790 = vpop.f32.mrb[0].mxu0
    %v1791 = vadd.f32 %v1678, %v1790
    %v1792 = vpop.f32.mrb[0].mxu0
    %v1793 = vadd.f32 %v1680, %v1792
    %1794 = vdwg.mxu0
    %1795 = vmatprep.subr.bf16.mxu0 0
    %1796 = vmatpush1.bf16.msra.mxu0 %v1427
    %1797 = vmatprep.subr.bf16.mxu0 0
    %1798 = vmatpush1.bf16.msra.mxu0 %v1430
    %1799 = vmatprep.subr.bf16.mxu0 0
    %1800 = vmatpush1.bf16.msra.mxu0 %v1433
    %1801 = vmatprep.subr.bf16.mxu0 0
    %1802 = vmatpush1.bf16.msra.mxu0 %v1436
    %1803 = vmatprep.subr.bf16.mxu0 0
    %1804 = vmatpush1.bf16.msra.mxu0 %v1439
    %1805 = vmatprep.subr.bf16.mxu0 0
    %1806 = vmatpush1.bf16.msra.mxu0 %v1442
    %1807 = vmatprep.subr.bf16.mxu0 0
    %1808 = vmatpush1.bf16.msra.mxu0 %v1445
    %1809 = vmatprep.subr.bf16.mxu0 0
    %1810 = vmatpush1.bf16.msra.mxu0 %v1448
    %1811 = vmatprep.subr.bf16.mxu0 0
    %1812 = vmatpush1.bf16.msra.mxu0 %v1451
    %1813 = vmatprep.subr.bf16.mxu0 0
    %1814 = vmatpush1.bf16.msra.mxu0 %v1454
    %1815 = vmatprep.subr.bf16.mxu0 0
    %1816 = vmatpush1.bf16.msra.mxu0 %v1457
    %1817 = vmatprep.subr.bf16.mxu0 0
    %1818 = vmatpush1.bf16.msra.mxu0 %v1460
    %1819 = vmatprep.subr.bf16.mxu0 0
    %1820 = vmatpush1.bf16.msra.mxu0 %v1463
    %1821 = vmatprep.subr.bf16.mxu0 0
    %1822 = vmatpush1.bf16.msra.mxu0 %v1466
    %1823 = vmatprep.subr.bf16.mxu0 0
    %1824 = vmatpush1.bf16.msra.mxu0 %v1469
    %1825 = vmatprep.subr.bf16.mxu0 0
    %1826 = vmatpush1.bf16.msra.mxu0 %v1472
    %1827 = vmatprep.mubr.bf16.mxu0 %v1162
    %1828 = vmatmul.mubr.bf16.gmra.mrb[0].mxu0 %v1161
    %v1829 = vpop.f32.mrb[0].mxu0
    %v1830 = vadd.f32 0.0, %v1829
    %v1831 = vpop.f32.mrb[0].mxu0
    %v1832 = vpop.f32.mrb[0].mxu0
    %v1833 = vadd.f32 0.0, %v1832
    %v1834 = vpop.f32.mrb[0].mxu0
    %1835 = vmatprep.mubr.bf16.mxu0 %v1165
    %1836 = vmatmul.mubr.bf16.gmra.mrb[0].mxu0 %v1164
    %v1837 = vpop.f32.mrb[0].mxu0
    %v1838 = vadd.f32 0.0, %v1837
    %v1839 = vpop.f32.mrb[0].mxu0
    %v1840 = vpop.f32.mrb[0].mxu0
    %v1841 = vadd.f32 0.0, %v1840
    %v1842 = vpop.f32.mrb[0].mxu0
    %1843 = vmatprep.mubr.bf16.mxu0 %v1168
    %1844 = vmatmul.mubr.bf16.gmra.mrb[0].mxu0 %v1167
    %v1845 = vpop.f32.mrb[0].mxu0
    %v1846 = vadd.f32 0.0, %v1845
    %v1847 = vpop.f32.mrb[0].mxu0
    %v1848 = vpop.f32.mrb[0].mxu0
    %v1849 = vadd.f32 0.0, %v1848
    %v1850 = vpop.f32.mrb[0].mxu0
    %1851 = vmatprep.mubr.bf16.mxu0 %v1171
    %1852 = vmatmul.mubr.bf16.gmra.mrb[0].mxu0 %v1170
    %v1853 = vpop.f32.mrb[0].mxu0
    %v1854 = vadd.f32 0.0, %v1853
    %v1855 = vpop.f32.mrb[0].mxu0
    %v1856 = vpop.f32.mrb[0].mxu0
    %v1857 = vadd.f32 0.0, %v1856
    %v1858 = vpop.f32.mrb[0].mxu0
    %1859 = vmatprep.mubr.bf16.mxu0 %v1174
    %1860 = vmatmul.mubr.bf16.gmra.mrb[0].mxu0 %v1173
    %v1861 = vpop.f32.mrb[0].mxu0
    %v1862 = vadd.f32 0.0, %v1861
    %v1863 = vpop.f32.mrb[0].mxu0
    %v1864 = vpop.f32.mrb[0].mxu0
    %v1865 = vadd.f32 0.0, %v1864
    %v1866 = vpop.f32.mrb[0].mxu0
    %1867 = vmatprep.mubr.bf16.mxu0 %v1177
    %1868 = vmatmul.mubr.bf16.gmra.mrb[0].mxu0 %v1176
    %v1869 = vpop.f32.mrb[0].mxu0
    %v1870 = vadd.f32 0.0, %v1869
    %v1871 = vpop.f32.mrb[0].mxu0
    %v1872 = vpop.f32.mrb[0].mxu0
    %v1873 = vadd.f32 0.0, %v1872
    %v1874 = vpop.f32.mrb[0].mxu0
    %1875 = vmatprep.mubr.bf16.mxu0 %v1180
    %1876 = vmatmul.mubr.bf16.gmra.mrb[0].mxu0 %v1179
    %v1877 = vpop.f32.mrb[0].mxu0
    %v1878 = vadd.f32 0.0, %v1877
    %v1879 = vpop.f32.mrb[0].mxu0
    %v1880 = vpop.f32.mrb[0].mxu0
    %v1881 = vadd.f32 0.0, %v1880
    %v1882 = vpop.f32.mrb[0].mxu0
    %1883 = vmatprep.mubr.bf16.mxu0 %v1183
    %1884 = vmatmul.mubr.bf16.gmra.mrb[0].mxu0 %v1182
    %v1885 = vpop.f32.mrb[0].mxu0
    %v1886 = vadd.f32 0.0, %v1885
    %v1887 = vpop.f32.mrb[0].mxu0
    %v1888 = vpop.f32.mrb[0].mxu0
    %v1889 = vadd.f32 0.0, %v1888
    %v1890 = vpop.f32.mrb[0].mxu0
    %1891 = vdwg.mxu0
    %1892 = vmatprep.subr.bf16.mxu0 0
    %1893 = vmatpush1.bf16.msra.mxu0 %v1475
    %1894 = vmatprep.subr.bf16.mxu0 0
    %1895 = vmatpush1.bf16.msra.mxu0 %v1478
    %1896 = vmatprep.subr.bf16.mxu0 0
    %1897 = vmatpush1.bf16.msra.mxu0 %v1481
    %1898 = vmatprep.subr.bf16.mxu0 0
    %1899 = vmatpush1.bf16.msra.mxu0 %v1484
    %1900 = vmatprep.subr.bf16.mxu0 0
    %1901 = vmatpush1.bf16.msra.mxu0 %v1487
    %1902 = vmatprep.subr.bf16.mxu0 0
    %1903 = vmatpush1.bf16.msra.mxu0 %v1490
    %1904 = vmatprep.subr.bf16.mxu0 0
    %1905 = vmatpush1.bf16.msra.mxu0 %v1493
    %1906 = vmatprep.subr.bf16.mxu0 0
    %1907 = vmatpush1.bf16.msra.mxu0 %v1496
    %1908 = vmatprep.subr.bf16.mxu0 0
    %1909 = vmatpush1.bf16.msra.mxu0 0
    %1910 = vmatprep.subr.bf16.mxu0 0
    %1911 = vmatpush1.bf16.msra.mxu0 0
    %1912 = vmatprep.subr.bf16.mxu0 0
    %1913 = vmatpush1.bf16.msra.mxu0 0
    %1914 = vmatprep.subr.bf16.mxu0 0
    %1915 = vmatpush1.bf16.msra.mxu0 0
    %1916 = vmatprep.subr.bf16.mxu0 0
    %1917 = vmatpush1.bf16.msra.mxu0 0
    %1918 = vmatprep.subr.bf16.mxu0 0
    %1919 = vmatpush1.bf16.msra.mxu0 0
    %1920 = vmatprep.subr.bf16.mxu0 0
    %1921 = vmatpush1.bf16.msra.mxu0 0
    %1922 = vmatprep.subr.bf16.mxu0 0
    %1923 = vmatpush1.bf16.msra.mxu0 0
    %1924 = vmatprep.mubr.bf16.mxu0 0
    %1925 = vmatmul.mubr.bf16.gmra.mrb[0].mxu0 %v1163
    %v1926 = vpop.f32.mrb[0].mxu0
    %v1927 = vadd.f32 %v1830, %v1926
    %v1928 = vpop.f32.mrb[0].mxu0
    %v1929 = vpop.f32.mrb[0].mxu0
    %v1930 = vadd.f32 %v1833, %v1929
    %v1931 = vpop.f32.mrb[0].mxu0
    %1932 = vmatprep.mubr.bf16.mxu0 0
    %1933 = vmatmul.mubr.bf16.gmra.mrb[0].mxu0 %v1166
    %v1934 = vpop.f32.mrb[0].mxu0
    %v1935 = vadd.f32 %v1838, %v1934
    %v1936 = vpop.f32.mrb[0].mxu0
    %v1937 = vpop.f32.mrb[0].mxu0
    %v1938 = vadd.f32 %v1841, %v1937
    %v1939 = vpop.f32.mrb[0].mxu0
    %1940 = vmatprep.mubr.bf16.mxu0 0
    %1941 = vmatmul.mubr.bf16.gmra.mrb[0].mxu0 %v1169
    %v1942 = vpop.f32.mrb[0].mxu0
    %v1943 = vadd.f32 %v1846, %v1942
    %v1944 = vpop.f32.mrb[0].mxu0
    %v1945 = vpop.f32.mrb[0].mxu0
    %v1946 = vadd.f32 %v1849, %v1945
    %v1947 = vpop.f32.mrb[0].mxu0
    %1948 = vmatprep.mubr.bf16.mxu0 0
    %1949 = vmatmul.mubr.bf16.gmra.mrb[0].mxu0 %v1172
    %v1950 = vpop.f32.mrb[0].mxu0
    %v1951 = vadd.f32 %v1854, %v1950
    %v1952 = vpop.f32.mrb[0].mxu0
    %v1953 = vpop.f32.mrb[0].mxu0
    %v1954 = vadd.f32 %v1857, %v1953
    %v1955 = vpop.f32.mrb[0].mxu0
    %1956 = vmatprep.mubr.bf16.mxu0 0
    %1957 = vmatmul.mubr.bf16.gmra.mrb[0].mxu0 %v1175
    %v1958 = vpop.f32.mrb[0].mxu0
    %v1959 = vadd.f32 %v1862, %v1958
    %v1960 = vpop.f32.mrb[0].mxu0
    %v1961 = vpop.f32.mrb[0].mxu0
    %v1962 = vadd.f32 %v1865, %v1961
    %v1963 = vpop.f32.mrb[0].mxu0
    %1964 = vmatprep.mubr.bf16.mxu0 0
    %1965 = vmatmul.mubr.bf16.gmra.mrb[0].mxu0 %v1178
    %v1966 = vpop.f32.mrb[0].mxu0
    %v1967 = vadd.f32 %v1870, %v1966
    %v1968 = vpop.f32.mrb[0].mxu0
    %v1969 = vpop.f32.mrb[0].mxu0
    %v1970 = vadd.f32 %v1873, %v1969
    %v1971 = vpop.f32.mrb[0].mxu0
    %1972 = vmatprep.mubr.bf16.mxu0 0
    %1973 = vmatmul.mubr.bf16.gmra.mrb[0].mxu0 %v1181
    %v1974 = vpop.f32.mrb[0].mxu0
    %v1975 = vadd.f32 %v1878, %v1974
    %v1976 = vpop.f32.mrb[0].mxu0
    %v1977 = vpop.f32.mrb[0].mxu0
    %v1978 = vadd.f32 %v1881, %v1977
    %v1979 = vpop.f32.mrb[0].mxu0
    %1980 = vmatprep.mubr.bf16.mxu0 0
    %1981 = vmatmul.mubr.bf16.gmra.mrb[0].mxu0 %v1184
    %v1982 = vpop.f32.mrb[0].mxu0
    %v1983 = vadd.f32 %v1886, %v1982
    %v1984 = vpop.f32.mrb[0].mxu0
    %v1985 = vpop.f32.mrb[0].mxu0
    %v1986 = vadd.f32 %v1889, %v1985
    %v1987 = vpop.f32.mrb[0].mxu0
    %1988 = vdwg.mxu0
    %v1989 = vpack.c.bf16 %v1721, %v1717
    %v1990 = vpack.c.bf16 %v1723, %v1719
    %v1991 = vpack.c.bf16 %v1930, %v1927
    %v1992 = vpack.c.bf16 %v1731, %v1727
    %v1993 = vpack.c.bf16 %v1733, %v1729
    %v1994 = vpack.c.bf16 %v1938, %v1935
    %v1995 = vpack.c.bf16 %v1741, %v1737
    %v1996 = vpack.c.bf16 %v1743, %v1739
    %v1997 = vpack.c.bf16 %v1946, %v1943
    %v1998 = vpack.c.bf16 %v1751, %v1747
    %v1999 = vpack.c.bf16 %v1753, %v1749
    %v2000 = vpack.c.bf16 %v1954, %v1951
    %v2001 = vpack.c.bf16 %v1761, %v1757
    %v2002 = vpack.c.bf16 %v1763, %v1759
    %v2003 = vpack.c.bf16 %v1962, %v1959
    %v2004 = vpack.c.bf16 %v1771, %v1767
    %v2005 = vpack.c.bf16 %v1773, %v1769
    %v2006 = vpack.c.bf16 %v1970, %v1967
    %v2007 = vpack.c.bf16 %v1781, %v1777
    %v2008 = vpack.c.bf16 %v1783, %v1779
    %v2009 = vpack.c.bf16 %v1978, %v1975
    %v2010 = vpack.c.bf16 %v1791, %v1787
    %v2011 = vpack.c.bf16 %v1793, %v1789
    %v2012 = vpack.c.bf16 %v1986, %v1983
    %2013 = vmatprep.subr.bf16.mxu0 %v1990
    %2014 = vmatpush1.bf16.msra.mxu0 %v1989
    %2015 = vmatprep.subr.bf16.mxu0 %v1993
    %2016 = vmatpush1.bf16.msra.mxu0 %v1992
    %2017 = vmatprep.subr.bf16.mxu0 %v1996
    %2018 = vmatpush1.bf16.msra.mxu0 %v1995
    %2019 = vmatprep.subr.bf16.mxu0 %v1999
    %2020 = vmatpush1.bf16.msra.mxu0 %v1998
    %2021 = vmatprep.subr.bf16.mxu0 %v2002
    %2022 = vmatpush1.bf16.msra.mxu0 %v2001
    %2023 = vmatprep.subr.bf16.mxu0 %v2005
    %2024 = vmatpush1.bf16.msra.mxu0 %v2004
    %2025 = vmatprep.subr.bf16.mxu0 %v2008
    %2026 = vmatpush1.bf16.msra.mxu0 %v2007
    %2027 = vmatprep.subr.bf16.mxu0 %v2011
    %2028 = vmatpush1.bf16.msra.mxu0 %v2010
    %2029 = vmatprep.subr.bf16.mxu0 0
    %2030 = vmatpush1.bf16.msra.mxu0 0
    %2031 = vmatprep.subr.bf16.mxu0 0
    %2032 = vmatpush1.bf16.msra.mxu0 0
    %2033 = vmatprep.subr.bf16.mxu0 0
    %2034 = vmatpush1.bf16.msra.mxu0 0
    %2035 = vmatprep.subr.bf16.mxu0 0
    %2036 = vmatpush1.bf16.msra.mxu0 0
    %2037 = vmatprep.subr.bf16.mxu0 0
    %2038 = vmatpush1.bf16.msra.mxu0 0
    %2039 = vmatprep.subr.bf16.mxu0 0
    %2040 = vmatpush1.bf16.msra.mxu0 0
    %2041 = vmatprep.subr.bf16.mxu0 0
    %2042 = vmatpush1.bf16.msra.mxu0 0
    %2043 = vmatprep.subr.bf16.mxu0 0
    %2044 = vmatpush1.bf16.msra.mxu0 0
    %2045 = vmatprep.mubr.bf16.mxu0 0
    %2046 = vmatmul.mubr.bf16.gmra.mrb[0].mxu0 %v287
    %v2047 = vpop.f32.mrb[0].mxu0
    %v2048 = vadd.f32 %v600, %v2047
    %v2049 = vpop.f32.mrb[0].mxu0
    %v2050 = vadd.f32 %v602, %v2049
    %v2051 = vpop.f32.mrb[0].mxu0
    %v2052 = vadd.f32 %v604, %v2051
    %v2053 = vpop.f32.mrb[0].mxu0
    %v2054 = vadd.f32 %v606, %v2053
    %2055 = vmatprep.mubr.bf16.mxu0 0
    %2056 = vmatmul.mubr.bf16.gmra.mrb[0].mxu0 %v288
    %v2057 = vpop.f32.mrb[0].mxu0
    %v2058 = vadd.f32 %v610, %v2057
    %v2059 = vpop.f32.mrb[0].mxu0
    %v2060 = vadd.f32 %v612, %v2059
    %v2061 = vpop.f32.mrb[0].mxu0
    %v2062 = vadd.f32 %v614, %v2061
    %v2063 = vpop.f32.mrb[0].mxu0
    %v2064 = vadd.f32 %v616, %v2063
    %2065 = vmatprep.mubr.bf16.mxu0 0
    %2066 = vmatmul.mubr.bf16.gmra.mrb[0].mxu0 %v289
    %v2067 = vpop.f32.mrb[0].mxu0
    %v2068 = vadd.f32 %v620, %v2067
    %v2069 = vpop.f32.mrb[0].mxu0
    %v2070 = vadd.f32 %v622, %v2069
    %v2071 = vpop.f32.mrb[0].mxu0
    %v2072 = vadd.f32 %v624, %v2071
    %v2073 = vpop.f32.mrb[0].mxu0
    %v2074 = vadd.f32 %v626, %v2073
    %2075 = vmatprep.mubr.bf16.mxu0 0
    %2076 = vmatmul.mubr.bf16.gmra.mrb[0].mxu0 %v290
    %v2077 = vpop.f32.mrb[0].mxu0
    %v2078 = vadd.f32 %v630, %v2077
    %v2079 = vpop.f32.mrb[0].mxu0
    %v2080 = vadd.f32 %v632, %v2079
    %v2081 = vpop.f32.mrb[0].mxu0
    %v2082 = vadd.f32 %v634, %v2081
    %v2083 = vpop.f32.mrb[0].mxu0
    %v2084 = vadd.f32 %v636, %v2083
    %2085 = vmatprep.mubr.bf16.mxu0 0
    %2086 = vmatmul.mubr.bf16.gmra.mrb[0].mxu0 %v291
    %v2087 = vpop.f32.mrb[0].mxu0
    %v2088 = vadd.f32 %v640, %v2087
    %v2089 = vpop.f32.mrb[0].mxu0
    %v2090 = vadd.f32 %v642, %v2089
    %v2091 = vpop.f32.mrb[0].mxu0
    %v2092 = vadd.f32 %v644, %v2091
    %v2093 = vpop.f32.mrb[0].mxu0
    %v2094 = vadd.f32 %v646, %v2093
    %2095 = vmatprep.mubr.bf16.mxu0 0
    %2096 = vmatmul.mubr.bf16.gmra.mrb[0].mxu0 %v292
    %v2097 = vpop.f32.mrb[0].mxu0
    %v2098 = vadd.f32 %v650, %v2097
    %v2099 = vpop.f32.mrb[0].mxu0
    %v2100 = vadd.f32 %v652, %v2099
    %v2101 = vpop.f32.mrb[0].mxu0
    %v2102 = vadd.f32 %v654, %v2101
    %v2103 = vpop.f32.mrb[0].mxu0
    %v2104 = vadd.f32 %v656, %v2103
    %2105 = vmatprep.mubr.bf16.mxu0 0
    %2106 = vmatmul.mubr.bf16.gmra.mrb[0].mxu0 %v293
    %v2107 = vpop.f32.mrb[0].mxu0
    %v2108 = vadd.f32 %v660, %v2107
    %v2109 = vpop.f32.mrb[0].mxu0
    %v2110 = vadd.f32 %v662, %v2109
    %v2111 = vpop.f32.mrb[0].mxu0
    %v2112 = vadd.f32 %v664, %v2111
    %v2113 = vpop.f32.mrb[0].mxu0
    %v2114 = vadd.f32 %v666, %v2113
    %2115 = vmatprep.mubr.bf16.mxu0 0
    %2116 = vmatmul.mubr.bf16.gmra.mrb[0].mxu0 %v294
    %v2117 = vpop.f32.mrb[0].mxu0
    %v2118 = vadd.f32 %v670, %v2117
    %v2119 = vpop.f32.mrb[0].mxu0
    %v2120 = vadd.f32 %v672, %v2119
    %v2121 = vpop.f32.mrb[0].mxu0
    %v2122 = vadd.f32 %v674, %v2121
    %v2123 = vpop.f32.mrb[0].mxu0
    %v2124 = vadd.f32 %v676, %v2123
    %2125 = vdwg.mxu0
    %2126 = vmatprep.subr.bf16.mxu0 0
    %2127 = vmatpush1.bf16.msra.mxu0 %v1991
    %2128 = vmatprep.subr.bf16.mxu0 0
    %2129 = vmatpush1.bf16.msra.mxu0 %v1994
    %2130 = vmatprep.subr.bf16.mxu0 0
    %2131 = vmatpush1.bf16.msra.mxu0 %v1997
    %2132 = vmatprep.subr.bf16.mxu0 0
    %2133 = vmatpush1.bf16.msra.mxu0 %v2000
    %2134 = vmatprep.subr.bf16.mxu0 0
    %2135 = vmatpush1.bf16.msra.mxu0 %v2003
    %2136 = vmatprep.subr.bf16.mxu0 0
    %2137 = vmatpush1.bf16.msra.mxu0 %v2006
    %2138 = vmatprep.subr.bf16.mxu0 0
    %2139 = vmatpush1.bf16.msra.mxu0 %v2009
    %2140 = vmatprep.subr.bf16.mxu0 0
    %2141 = vmatpush1.bf16.msra.mxu0 %v2012
    %2142 = vmatprep.subr.bf16.mxu0 0
    %2143 = vmatpush1.bf16.msra.mxu0 0
    %2144 = vmatprep.subr.bf16.mxu0 0
    %2145 = vmatpush1.bf16.msra.mxu0 0
    %2146 = vmatprep.subr.bf16.mxu0 0
    %2147 = vmatpush1.bf16.msra.mxu0 0
    %2148 = vmatprep.subr.bf16.mxu0 0
    %2149 = vmatpush1.bf16.msra.mxu0 0
    %2150 = vmatprep.subr.bf16.mxu0 0
    %2151 = vmatpush1.bf16.msra.mxu0 0
    %2152 = vmatprep.subr.bf16.mxu0 0
    %2153 = vmatpush1.bf16.msra.mxu0 0
    %2154 = vmatprep.subr.bf16.mxu0 0
    %2155 = vmatpush1.bf16.msra.mxu0 0
    %2156 = vmatprep.subr.bf16.mxu0 0
    %2157 = vmatpush1.bf16.msra.mxu0 0
    %2158 = vmatprep.mubr.bf16.mxu0 0
    %2159 = vmatmul.mubr.bf16.gmra.mrb[0].mxu0 %v287
    %v2160 = vpop.f32.mrb[0].mxu0
    %v2161 = vadd.f32 %v713, %v2160
    %v2162 = vpop.f32.mrb[0].mxu0
    %v2163 = vpop.f32.mrb[0].mxu0
    %v2164 = vadd.f32 %v716, %v2163
    %v2165 = vpop.f32.mrb[0].mxu0
    %2166 = vmatprep.mubr.bf16.mxu0 0
    %2167 = vmatmul.mubr.bf16.gmra.mrb[0].mxu0 %v288
    %v2168 = vpop.f32.mrb[0].mxu0
    %v2169 = vadd.f32 %v721, %v2168
    %v2170 = vpop.f32.mrb[0].mxu0
    %v2171 = vpop.f32.mrb[0].mxu0
    %v2172 = vadd.f32 %v724, %v2171
    %v2173 = vpop.f32.mrb[0].mxu0
    %2174 = vmatprep.mubr.bf16.mxu0 0
    %2175 = vmatmul.mubr.bf16.gmra.mrb[0].mxu0 %v289
    %v2176 = vpop.f32.mrb[0].mxu0
    %v2177 = vadd.f32 %v729, %v2176
    %v2178 = vpop.f32.mrb[0].mxu0
    %v2179 = vpop.f32.mrb[0].mxu0
    %v2180 = vadd.f32 %v732, %v2179
    %v2181 = vpop.f32.mrb[0].mxu0
    %2182 = vmatprep.mubr.bf16.mxu0 0
    %2183 = vmatmul.mubr.bf16.gmra.mrb[0].mxu0 %v290
    %v2184 = vpop.f32.mrb[0].mxu0
    %v2185 = vadd.f32 %v737, %v2184
    %v2186 = vpop.f32.mrb[0].mxu0
    %v2187 = vpop.f32.mrb[0].mxu0
    %v2188 = vadd.f32 %v740, %v2187
    %v2189 = vpop.f32.mrb[0].mxu0
    %2190 = vmatprep.mubr.bf16.mxu0 0
    %2191 = vmatmul.mubr.bf16.gmra.mrb[0].mxu0 %v291
    %v2192 = vpop.f32.mrb[0].mxu0
    %v2193 = vadd.f32 %v745, %v2192
    %v2194 = vpop.f32.mrb[0].mxu0
    %v2195 = vpop.f32.mrb[0].mxu0
    %v2196 = vadd.f32 %v748, %v2195
    %v2197 = vpop.f32.mrb[0].mxu0
    %2198 = vmatprep.mubr.bf16.mxu0 0
    %2199 = vmatmul.mubr.bf16.gmra.mrb[0].mxu0 %v292
    %v2200 = vpop.f32.mrb[0].mxu0
    %v2201 = vadd.f32 %v753, %v2200
    %v2202 = vpop.f32.mrb[0].mxu0
    %v2203 = vpop.f32.mrb[0].mxu0
    %v2204 = vadd.f32 %v756, %v2203
    %v2205 = vpop.f32.mrb[0].mxu0
    %2206 = vmatprep.mubr.bf16.mxu0 0
    %2207 = vmatmul.mubr.bf16.gmra.mrb[0].mxu0 %v293
    %v2208 = vpop.f32.mrb[0].mxu0
    %v2209 = vadd.f32 %v761, %v2208
    %v2210 = vpop.f32.mrb[0].mxu0
    %v2211 = vpop.f32.mrb[0].mxu0
    %v2212 = vadd.f32 %v764, %v2211
    %v2213 = vpop.f32.mrb[0].mxu0
    %2214 = vmatprep.mubr.bf16.mxu0 0
    %2215 = vmatmul.mubr.bf16.gmra.mrb[0].mxu0 %v294
    %v2216 = vpop.f32.mrb[0].mxu0
    %v2217 = vadd.f32 %v769, %v2216
    %v2218 = vpop.f32.mrb[0].mxu0
    %v2219 = vpop.f32.mrb[0].mxu0
    %v2220 = vadd.f32 %v772, %v2219
    %v2221 = vpop.f32.mrb[0].mxu0
    %2222 = vdwg.mxu0
    %v2223 = vmax.f32 %v2048, 0.0
    %v2224 = vmax.f32 %v2050, 0.0
    %v2225 = vmax.f32 %v2161, 0.0
    %v2226 = vmax.f32 %v2052, 0.0
    %v2227 = vmax.f32 %v2054, 0.0
    %v2228 = vmax.f32 %v2164, 0.0
    %v2229 = vmax.f32 %v2058, 0.0
    %v2230 = vmax.f32 %v2060, 0.0
    %v2231 = vmax.f32 %v2169, 0.0
    %v2232 = vmax.f32 %v2062, 0.0
    %v2233 = vmax.f32 %v2064, 0.0
    %v2234 = vmax.f32 %v2172, 0.0
    %v2235 = vmax.f32 %v2068, 0.0
    %v2236 = vmax.f32 %v2070, 0.0
    %v2237 = vmax.f32 %v2177, 0.0
    %v2238 = vmax.f32 %v2072, 0.0
    %v2239 = vmax.f32 %v2074, 0.0
    %v2240 = vmax.f32 %v2180, 0.0
    %v2241 = vmax.f32 %v2078, 0.0
    %v2242 = vmax.f32 %v2080, 0.0
    %v2243 = vmax.f32 %v2185, 0.0
    %v2244 = vmax.f32 %v2082, 0.0
    %v2245 = vmax.f32 %v2084, 0.0
    %v2246 = vmax.f32 %v2188, 0.0
    %v2247 = vmax.f32 %v2088, 0.0
    %v2248 = vmax.f32 %v2090, 0.0
    %v2249 = vmax.f32 %v2193, 0.0
    %v2250 = vmax.f32 %v2092, 0.0
    %v2251 = vmax.f32 %v2094, 0.0
    %v2252 = vmax.f32 %v2196, 0.0
    %v2253 = vmax.f32 %v2098, 0.0
    %v2254 = vmax.f32 %v2100, 0.0
    %v2255 = vmax.f32 %v2201, 0.0
    %v2256 = vmax.f32 %v2102, 0.0
    %v2257 = vmax.f32 %v2104, 0.0
    %v2258 = vmax.f32 %v2204, 0.0
    %v2259 = vmax.f32 %v2108, 0.0
    %v2260 = vmax.f32 %v2110, 0.0
    %v2261 = vmax.f32 %v2209, 0.0
    %v2262 = vmax.f32 %v2112, 0.0
    %v2263 = vmax.f32 %v2114, 0.0
    %v2264 = vmax.f32 %v2212, 0.0
    %v2265 = vmax.f32 %v2118, 0.0
    %v2266 = vmax.f32 %v2120, 0.0
    %v2267 = vmax.f32 %v2217, 0.0
    %v2268 = vmax.f32 %v2122, 0.0
    %v2269 = vmax.f32 %v2124, 0.0
    %v2270 = vmax.f32 %v2220, 0.0
    %v2271 = vadd.f32 %v2223, %v2224
    %v2272 = vadd.f32 %v2226, %v2227
    %v2273 = vadd.f32 %v2229, %v2230
    %v2274 = vadd.f32 %v2232, %v2233
    %v2275 = vadd.f32 %v2235, %v2236
    %v2276 = vadd.f32 %v2238, %v2239
    %v2277 = vadd.f32 %v2241, %v2242
    %v2278 = vadd.f32 %v2244, %v2245
    %v2279 = vadd.f32 %v2247, %v2248
    %v2280 = vadd.f32 %v2250, %v2251
    %v2281 = vadd.f32 %v2253, %v2254
    %v2282 = vadd.f32 %v2256, %v2257
    %v2283 = vadd.f32 %v2259, %v2260
    %v2284 = vadd.f32 %v2262, %v2263
    %v2285 = vadd.f32 %v2265, %v2266
    %v2286 = vadd.f32 %v2268, %v2269
    %v2287 = vadd.f32 %v2271, %v2225
    %v2288 = vadd.f32 %v2272, %v2228
    %v2289 = vadd.f32 %v2273, %v2231
    %v2290 = vadd.f32 %v2274, %v2234
    %v2291 = vadd.f32 %v2275, %v2237
    %v2292 = vadd.f32 %v2276, %v2240
    %v2293 = vadd.f32 %v2277, %v2243
    %v2294 = vadd.f32 %v2278, %v2246
    %v2295 = vadd.f32 %v2279, %v2249
    %v2296 = vadd.f32 %v2280, %v2252
    %v2297 = vadd.f32 %v2281, %v2255
    %v2298 = vadd.f32 %v2282, %v2258
    %v2299 = vadd.f32 %v2283, %v2261
    %v2300 = vadd.f32 %v2284, %v2264
    %v2301 = vadd.f32 %v2285, %v2267
    %v2302 = vadd.f32 %v2286, %v2270
    %v2303 = vmul.f32 %v2287, 0.33333334
    %v2304 = vmul.f32 %v2288, 0.33333334
    %v2305 = vmul.f32 %v2289, 0.33333334
    %v2306 = vmul.f32 %v2290, 0.33333334
    %v2307 = vmul.f32 %v2291, 0.33333334
    %v2308 = vmul.f32 %v2292, 0.33333334
    %v2309 = vmul.f32 %v2293, 0.33333334
    %v2310 = vmul.f32 %v2294, 0.33333334
    %v2311 = vmul.f32 %v2295, 0.33333334
    %v2312 = vmul.f32 %v2296, 0.33333334
    %v2313 = vmul.f32 %v2297, 0.33333334
    %v2314 = vmul.f32 %v2298, 0.33333334
    %v2315 = vmul.f32 %v2299, 0.33333334
    %v2316 = vmul.f32 %v2300, 0.33333334
    %v2317 = vmul.f32 %v2301, 0.33333334
    %v2318 = vmul.f32 %v2302, 0.33333334
    %v2319 = vmax.f32 %v2303, 0.0
    %v2320 = vmax.f32 %v2304, 0.0
    %v2321 = vmax.f32 %v2305, 0.0
    %v2322 = vmax.f32 %v2306, 0.0
    %v2323 = vmax.f32 %v2307, 0.0
    %v2324 = vmax.f32 %v2308, 0.0
    %v2325 = vmax.f32 %v2309, 0.0
    %v2326 = vmax.f32 %v2310, 0.0
    %v2327 = vmax.f32 %v2311, 0.0
    %v2328 = vmax.f32 %v2312, 0.0
    %v2329 = vmax.f32 %v2313, 0.0
    %v2330 = vmax.f32 %v2314, 0.0
    %v2331 = vmax.f32 %v2315, 0.0
    %v2332 = vmax.f32 %v2316, 0.0
    %v2333 = vmax.f32 %v2317, 0.0
    %v2334 = vmax.f32 %v2318, 0.0
    %v2335 = vld [vmem:[%s3] sm:$0xf]
    %v2336 = vld [vmem:[%s3 + $0x4] sm:$0xf]
    %v2337 = vld [vmem:[%s3 + $0x8] sm:$0xf]
    %v2338 = vld [vmem:[%s3 + $0xc] sm:$0xf]
    %v2339 = vld [vmem:[%s3 + $0x10] sm:$0xf]
    %v2340 = vld [vmem:[%s3 + $0x14] sm:$0xf]
    %v2341 = vld [vmem:[%s3 + $0x18] sm:$0xf]
    %v2342 = vld [vmem:[%s3 + $0x1c] sm:$0xf]
    %v2343 = vld [vmem:[%s3 + $0x20] sm:$0xf]
    %v2344 = vld [vmem:[%s3 + $0x24] sm:$0xf]
    %v2345 = vld [vmem:[%s3 + $0x28] sm:$0xf]
    %v2346 = vld [vmem:[%s3 + $0x2c] sm:$0xf]
    %v2347 = vld [vmem:[%s3 + $0x30] sm:$0xf]
    %v2348 = vld [vmem:[%s3 + $0x34] sm:$0xf]
    %v2349 = vld [vmem:[%s3 + $0x38] sm:$0xf]
    %v2350 = vld [vmem:[%s3 + $0x3c] sm:$0xf]
    %v2351 = vld [vmem:[%s3 + $0x40] sm:$0xf]
    %v2352 = vld [vmem:[%s3 + $0x44] sm:$0xf]
    %v2353 = vld [vmem:[%s3 + $0x48] sm:$0xf]
    %v2354 = vld [vmem:[%s3 + $0x4c] sm:$0xf]
    %v2355 = vld [vmem:[%s3 + $0x50] sm:$0xf]
    %v2356 = vld [vmem:[%s3 + $0x54] sm:$0xf]
    %v2357 = vld [vmem:[%s3 + $0x58] sm:$0xf]
    %v2358 = vld [vmem:[%s3 + $0x5c] sm:$0xf]
    %v2359 = vld [vmem:[%s3 + $0x60] sm:$0xf]
    %v2360 = vld [vmem:[%s3 + $0x64] sm:$0xf]
    %v2361 = vld [vmem:[%s3 + $0x68] sm:$0xf]
    %v2362 = vld [vmem:[%s3 + $0x6c] sm:$0xf]
    %v2363 = vld [vmem:[%s3 + $0x70] sm:$0xf]
    %v2364 = vld [vmem:[%s3 + $0x74] sm:$0xf]
    %v2365 = vld [vmem:[%s3 + $0x78] sm:$0xf]
    %v2366 = vld [vmem:[%s3 + $0x7c] sm:$0xf]
    %v2367 = vld [vmem:[%s3 + $0x80] sm:$0xf]
    %v2368 = vld [vmem:[%s3 + $0x84] sm:$0xf]
    %v2369 = vld [vmem:[%s3 + $0x88] sm:$0xf]
    %v2370 = vld [vmem:[%s3 + $0x8c] sm:$0xf]
    %v2371 = vld [vmem:[%s3 + $0x90] sm:$0xf]
    %v2372 = vld [vmem:[%s3 + $0x94] sm:$0xf]
    %v2373 = vld [vmem:[%s3 + $0x98] sm:$0xf]
    %v2374 = vld [vmem:[%s3 + $0x9c] sm:$0xf]
    %v2375 = vld [vmem:[%s3 + $0xa0] sm:$0xf]
    %v2376 = vld [vmem:[%s3 + $0xa4] sm:$0xf]
    %v2377 = vld [vmem:[%s3 + $0xa8] sm:$0xf]
    %v2378 = vld [vmem:[%s3 + $0xac] sm:$0xf]
    %v2379 = vld [vmem:[%s3 + $0xb0] sm:$0xf]
    %v2380 = vld [vmem:[%s3 + $0xb4] sm:$0xf]
    %v2381 = vld [vmem:[%s3 + $0xb8] sm:$0xf]
    %v2382 = vld [vmem:[%s3 + $0xbc] sm:$0xf]
    %v2383 = vpack.c.bf16 %v2320, %v2319
    %v2384 = vpack.c.bf16 %v2322, %v2321
    %v2385 = vpack.c.bf16 %v2324, %v2323
    %v2386 = vpack.c.bf16 %v2326, %v2325
    %v2387 = vpack.c.bf16 %v2328, %v2327
    %v2388 = vpack.c.bf16 %v2330, %v2329
    %v2389 = vpack.c.bf16 %v2332, %v2331
    %v2390 = vpack.c.bf16 %v2334, %v2333
    %2391 = vmatprep.subr.bf16.mxu0 0
    %2392 = vmatpush1.bf16.msra.mxu0 %v2383
    %2393 = vmatprep.subr.bf16.mxu0 0
    %2394 = vmatpush1.bf16.msra.mxu0 %v2384
    %2395 = vmatprep.subr.bf16.mxu0 0
    %2396 = vmatpush1.bf16.msra.mxu0 %v2385
    %2397 = vmatprep.subr.bf16.mxu0 0
    %2398 = vmatpush1.bf16.msra.mxu0 %v2386
    %2399 = vmatprep.subr.bf16.mxu0 0
    %2400 = vmatpush1.bf16.msra.mxu0 %v2387
    %2401 = vmatprep.subr.bf16.mxu0 0
    %2402 = vmatpush1.bf16.msra.mxu0 %v2388
    %2403 = vmatprep.subr.bf16.mxu0 0
    %2404 = vmatpush1.bf16.msra.mxu0 %v2389
    %2405 = vmatprep.subr.bf16.mxu0 0
    %2406 = vmatpush1.bf16.msra.mxu0 %v2390
    %2407 = vmatprep.subr.bf16.mxu0 0
    %2408 = vmatpush1.bf16.msra.mxu0 0
    %2409 = vmatprep.subr.bf16.mxu0 0
    %2410 = vmatpush1.bf16.msra.mxu0 0
    %2411 = vmatprep.subr.bf16.mxu0 0
    %2412 = vmatpush1.bf16.msra.mxu0 0
    %2413 = vmatprep.subr.bf16.mxu0 0
    %2414 = vmatpush1.bf16.msra.mxu0 0
    %2415 = vmatprep.subr.bf16.mxu0 0
    %2416 = vmatpush1.bf16.msra.mxu0 0
    %2417 = vmatprep.subr.bf16.mxu0 0
    %2418 = vmatpush1.bf16.msra.mxu0 0
    %2419 = vmatprep.subr.bf16.mxu0 0
    %2420 = vmatpush1.bf16.msra.mxu0 0
    %2421 = vmatprep.subr.bf16.mxu0 0
    %2422 = vmatpush1.bf16.msra.mxu0 0
    %2423 = vmatprep.mubr.bf16.mxu0 0
    %2424 = vmatmul.mubr.bf16.gmra.mrb[0].mxu0 %v287
    %v2425 = vpop.f32.mrb[0].mxu0
    %v2426 = vadd.f32 0.0, %v2425
    %v2427 = vpop.f32.mrb[0].mxu0
    %v2428 = vpop.f32.mrb[0].mxu0
    %v2429 = vadd.f32 0.0, %v2428
    %v2430 = vpop.f32.mrb[0].mxu0
    %2431 = vmatprep.mubr.bf16.mxu0 0
    %2432 = vmatmul.mubr.bf16.gmra.mrb[0].mxu0 %v288
    %v2433 = vpop.f32.mrb[0].mxu0
    %v2434 = vadd.f32 0.0, %v2433
    %v2435 = vpop.f32.mrb[0].mxu0
    %v2436 = vpop.f32.mrb[0].mxu0
    %v2437 = vadd.f32 0.0, %v2436
    %v2438 = vpop.f32.mrb[0].mxu0
    %2439 = vmatprep.mubr.bf16.mxu0 0
    %2440 = vmatmul.mubr.bf16.gmra.mrb[0].mxu0 %v289
    %v2441 = vpop.f32.mrb[0].mxu0
    %v2442 = vadd.f32 0.0, %v2441
    %v2443 = vpop.f32.mrb[0].mxu0
    %v2444 = vpop.f32.mrb[0].mxu0
    %v2445 = vadd.f32 0.0, %v2444
    %v2446 = vpop.f32.mrb[0].mxu0
    %2447 = vmatprep.mubr.bf16.mxu0 0
    %2448 = vmatmul.mubr.bf16.gmra.mrb[0].mxu0 %v290
    %v2449 = vpop.f32.mrb[0].mxu0
    %v2450 = vadd.f32 0.0, %v2449
    %v2451 = vpop.f32.mrb[0].mxu0
    %v2452 = vpop.f32.mrb[0].mxu0
    %v2453 = vadd.f32 0.0, %v2452
    %v2454 = vpop.f32.mrb[0].mxu0
    %2455 = vmatprep.mubr.bf16.mxu0 0
    %2456 = vmatmul.mubr.bf16.gmra.mrb[0].mxu0 %v291
    %v2457 = vpop.f32.mrb[0].mxu0
    %v2458 = vadd.f32 0.0, %v2457
    %v2459 = vpop.f32.mrb[0].mxu0
    %v2460 = vpop.f32.mrb[0].mxu0
    %v2461 = vadd.f32 0.0, %v2460
    %v2462 = vpop.f32.mrb[0].mxu0
    %2463 = vmatprep.mubr.bf16.mxu0 0
    %2464 = vmatmul.mubr.bf16.gmra.mrb[0].mxu0 %v292
    %v2465 = vpop.f32.mrb[0].mxu0
    %v2466 = vadd.f32 0.0, %v2465
    %v2467 = vpop.f32.mrb[0].mxu0
    %v2468 = vpop.f32.mrb[0].mxu0
    %v2469 = vadd.f32 0.0, %v2468
    %v2470 = vpop.f32.mrb[0].mxu0
    %2471 = vmatprep.mubr.bf16.mxu0 0
    %2472 = vmatmul.mubr.bf16.gmra.mrb[0].mxu0 %v293
    %v2473 = vpop.f32.mrb[0].mxu0
    %v2474 = vadd.f32 0.0, %v2473
    %v2475 = vpop.f32.mrb[0].mxu0
    %v2476 = vpop.f32.mrb[0].mxu0
    %v2477 = vadd.f32 0.0, %v2476
    %v2478 = vpop.f32.mrb[0].mxu0
    %2479 = vmatprep.mubr.bf16.mxu0 0
    %2480 = vmatmul.mubr.bf16.gmra.mrb[0].mxu0 %v294
    %v2481 = vpop.f32.mrb[0].mxu0
    %v2482 = vadd.f32 0.0, %v2481
    %v2483 = vpop.f32.mrb[0].mxu0
    %v2484 = vpop.f32.mrb[0].mxu0
    %v2485 = vadd.f32 0.0, %v2484
    %v2486 = vpop.f32.mrb[0].mxu0
    %2487 = vdwg.mxu0
    %v2488 = vpack.c.bf16 %v2429, %v2426
    %v2489 = vpack.c.bf16 %v2437, %v2434
    %v2490 = vpack.c.bf16 %v2445, %v2442
    %v2491 = vpack.c.bf16 %v2453, %v2450
    %v2492 = vpack.c.bf16 %v2461, %v2458
    %v2493 = vpack.c.bf16 %v2469, %v2466
    %v2494 = vpack.c.bf16 %v2477, %v2474
    %v2495 = vpack.c.bf16 %v2485, %v2482
    %v2496 = vlaneseq
    %v2497 = vshrl.u32 %v2496, 7
    %v2498 = vsub.s32 1, %v2497
    %v2499 = vrot.slane %v85, %v2498
    %v2516 = vunpack.c.l.b16 %v2351
    %v2517 = vunpack.c.l.b16 %v2352
    %v2518 = vunpack.c.l.b16 %v2353
    %v2519 = vunpack.c.l.b16 %v2354
    %v2520 = vunpack.c.l.b16 %v2355
    %v2521 = vunpack.c.l.b16 %v2356
    %v2522 = vunpack.c.l.b16 %v2357
    %v2523 = vunpack.c.l.b16 %v2358
    %v2524 = vunpack.c.l.b16 %v2359
    %v2525 = vunpack.c.l.b16 %v2360
    %v2526 = vunpack.c.l.b16 %v2361
    %v2527 = vunpack.c.l.b16 %v2362
    %v2528 = vunpack.c.l.b16 %v2363
    %v2529 = vunpack.c.l.b16 %v2364
    %v2530 = vunpack.c.l.b16 %v2365
    %v2531 = vunpack.c.l.b16 %v2366
    %v2532 = vpack.c.b16 %v2517, %v2516
    %v2533 = vpack.c.b16 %v2519, %v2518
    %v2534 = vpack.c.b16 %v2521, %v2520
    %v2535 = vpack.c.b16 %v2523, %v2522
    %v2536 = vpack.c.b16 %v2525, %v2524
    %v2537 = vpack.c.b16 %v2527, %v2526
    %v2538 = vpack.c.b16 %v2529, %v2528
    %v2539 = vpack.c.b16 %v2531, %v2530
    %2548 = vmatprep.subr.bf16.mxu0 0
    %2549 = vmatpush1.bf16.msra.mxu0 %v2532
    %2550 = vmatprep.subr.bf16.mxu0 0
    %2551 = vmatpush1.bf16.msra.mxu0 %v2533
    %2552 = vmatprep.subr.bf16.mxu0 0
    %2553 = vmatpush1.bf16.msra.mxu0 %v2534
    %2554 = vmatprep.subr.bf16.mxu0 0
    %2555 = vmatpush1.bf16.msra.mxu0 %v2535
    %2556 = vmatprep.subr.bf16.mxu0 0
    %2557 = vmatpush1.bf16.msra.mxu0 %v2536
    %2558 = vmatprep.subr.bf16.mxu0 0
    %2559 = vmatpush1.bf16.msra.mxu0 %v2537
    %2560 = vmatprep.subr.bf16.mxu0 0
    %2561 = vmatpush1.bf16.msra.mxu0 %v2538
    %2562 = vmatprep.subr.bf16.mxu0 0
    %2563 = vmatpush1.bf16.msra.mxu0 %v2539
    %2564 = vmatprep.subr.bf16.mxu0 0
    %2565 = vmatpush1.bf16.msra.mxu0 0
    %2566 = vmatprep.subr.bf16.mxu0 0
    %2567 = vmatpush1.bf16.msra.mxu0 0
    %2568 = vmatprep.subr.bf16.mxu0 0
    %2569 = vmatpush1.bf16.msra.mxu0 0
    %2570 = vmatprep.subr.bf16.mxu0 0
    %2571 = vmatpush1.bf16.msra.mxu0 0
    %2572 = vmatprep.subr.bf16.mxu0 0
    %2573 = vmatpush1.bf16.msra.mxu0 0
    %2574 = vmatprep.subr.bf16.mxu0 0
    %2575 = vmatpush1.bf16.msra.mxu0 0
    %2576 = vmatprep.subr.bf16.mxu0 0
    %2577 = vmatpush1.bf16.msra.mxu0 0
    %2578 = vmatprep.subr.bf16.mxu0 0
    %2579 = vmatpush1.bf16.msra.mxu0 0
    %2580 = vmatprep.mubr.bf16.mxu0 0
    %2581 = vmatmul.mubr.bf16.gmra.mrb[0].mxu0 %v2383
    %v2582 = vpop.f32.mrb[0].mxu0
    %v2583 = vadd.f32 %v2499, %v2582
    %v2584 = vpop.f32.mrb[0].mxu0
    %v2585 = vpop.f32.mrb[0].mxu0
    %v2586 = vadd.f32 %v2499, %v2585
    %v2587 = vpop.f32.mrb[0].mxu0
    %2588 = vmatprep.mubr.bf16.mxu0 0
    %2589 = vmatmul.mubr.bf16.gmra.mrb[0].mxu0 %v2384
    %v2590 = vpop.f32.mrb[0].mxu0
    %v2591 = vadd.f32 %v2499, %v2590
    %v2592 = vpop.f32.mrb[0].mxu0
    %v2593 = vpop.f32.mrb[0].mxu0
    %v2594 = vadd.f32 %v2499, %v2593
    %v2595 = vpop.f32.mrb[0].mxu0
    %2596 = vmatprep.mubr.bf16.mxu0 0
    %2597 = vmatmul.mubr.bf16.gmra.mrb[0].mxu0 %v2385
    %v2598 = vpop.f32.mrb[0].mxu0
    %v2599 = vadd.f32 %v2499, %v2598
    %v2600 = vpop.f32.mrb[0].mxu0
    %v2601 = vpop.f32.mrb[0].mxu0
    %v2602 = vadd.f32 %v2499, %v2601
    %v2603 = vpop.f32.mrb[0].mxu0
    %2604 = vmatprep.mubr.bf16.mxu0 0
    %2605 = vmatmul.mubr.bf16.gmra.mrb[0].mxu0 %v2386
    %v2606 = vpop.f32.mrb[0].mxu0
    %v2607 = vadd.f32 %v2499, %v2606
    %v2608 = vpop.f32.mrb[0].mxu0
    %v2609 = vpop.f32.mrb[0].mxu0
    %v2610 = vadd.f32 %v2499, %v2609
    %v2611 = vpop.f32.mrb[0].mxu0
    %2612 = vmatprep.mubr.bf16.mxu0 0
    %2613 = vmatmul.mubr.bf16.gmra.mrb[0].mxu0 %v2387
    %v2614 = vpop.f32.mrb[0].mxu0
    %v2615 = vadd.f32 %v2499, %v2614
    %v2616 = vpop.f32.mrb[0].mxu0
    %v2617 = vpop.f32.mrb[0].mxu0
    %v2618 = vadd.f32 %v2499, %v2617
    %v2619 = vpop.f32.mrb[0].mxu0
    %2620 = vmatprep.mubr.bf16.mxu0 0
    %2621 = vmatmul.mubr.bf16.gmra.mrb[0].mxu0 %v2388
    %v2622 = vpop.f32.mrb[0].mxu0
    %v2623 = vadd.f32 %v2499, %v2622
    %v2624 = vpop.f32.mrb[0].mxu0
    %v2625 = vpop.f32.mrb[0].mxu0
    %v2626 = vadd.f32 %v2499, %v2625
    %v2627 = vpop.f32.mrb[0].mxu0
    %2628 = vmatprep.mubr.bf16.mxu0 0
    %2629 = vmatmul.mubr.bf16.gmra.mrb[0].mxu0 %v2389
    %v2630 = vpop.f32.mrb[0].mxu0
    %v2631 = vadd.f32 %v2499, %v2630
    %v2632 = vpop.f32.mrb[0].mxu0
    %v2633 = vpop.f32.mrb[0].mxu0
    %v2634 = vadd.f32 %v2499, %v2633
    %v2635 = vpop.f32.mrb[0].mxu0
    %2636 = vmatprep.mubr.bf16.mxu0 0
    %2637 = vmatmul.mubr.bf16.gmra.mrb[0].mxu0 %v2390
    %v2638 = vpop.f32.mrb[0].mxu0
    %v2639 = vadd.f32 %v2499, %v2638
    %v2640 = vpop.f32.mrb[0].mxu0
    %v2641 = vpop.f32.mrb[0].mxu0
    %v2642 = vadd.f32 %v2499, %v2641
    %v2643 = vpop.f32.mrb[0].mxu0
    %2644 = vdwg.mxu0
    %v2661 = vunpack.c.l.b16 %v2335
    %v2662 = vunpack.c.l.b16 %v2336
    %v2663 = vunpack.c.l.b16 %v2337
    %v2664 = vunpack.c.l.b16 %v2338
    %v2665 = vunpack.c.l.b16 %v2339
    %v2666 = vunpack.c.l.b16 %v2340
    %v2667 = vunpack.c.l.b16 %v2341
    %v2668 = vunpack.c.l.b16 %v2342
    %v2669 = vunpack.c.l.b16 %v2343
    %v2670 = vunpack.c.l.b16 %v2344
    %v2671 = vunpack.c.l.b16 %v2345
    %v2672 = vunpack.c.l.b16 %v2346
    %v2673 = vunpack.c.l.b16 %v2347
    %v2674 = vunpack.c.l.b16 %v2348
    %v2675 = vunpack.c.l.b16 %v2349
    %v2676 = vunpack.c.l.b16 %v2350
    %v2677 = vpack.c.b16 %v2662, %v2661
    %v2678 = vpack.c.b16 %v2664, %v2663
    %v2679 = vpack.c.b16 %v2666, %v2665
    %v2680 = vpack.c.b16 %v2668, %v2667
    %v2681 = vpack.c.b16 %v2670, %v2669
    %v2682 = vpack.c.b16 %v2672, %v2671
    %v2683 = vpack.c.b16 %v2674, %v2673
    %v2684 = vpack.c.b16 %v2676, %v2675
    %2693 = vmatprep.subr.bf16.mxu0 0
    %2694 = vmatpush1.bf16.msra.mxu0 %v2677
    %2695 = vmatprep.subr.bf16.mxu0 0
    %2696 = vmatpush1.bf16.msra.mxu0 %v2678
    %2697 = vmatprep.subr.bf16.mxu0 0
    %2698 = vmatpush1.bf16.msra.mxu0 %v2679
    %2699 = vmatprep.subr.bf16.mxu0 0
    %2700 = vmatpush1.bf16.msra.mxu0 %v2680
    %2701 = vmatprep.subr.bf16.mxu0 0
    %2702 = vmatpush1.bf16.msra.mxu0 %v2681
    %2703 = vmatprep.subr.bf16.mxu0 0
    %2704 = vmatpush1.bf16.msra.mxu0 %v2682
    %2705 = vmatprep.subr.bf16.mxu0 0
    %2706 = vmatpush1.bf16.msra.mxu0 %v2683
    %2707 = vmatprep.subr.bf16.mxu0 0
    %2708 = vmatpush1.bf16.msra.mxu0 %v2684
    %2709 = vmatprep.subr.bf16.mxu0 0
    %2710 = vmatpush1.bf16.msra.mxu0 0
    %2711 = vmatprep.subr.bf16.mxu0 0
    %2712 = vmatpush1.bf16.msra.mxu0 0
    %2713 = vmatprep.subr.bf16.mxu0 0
    %2714 = vmatpush1.bf16.msra.mxu0 0
    %2715 = vmatprep.subr.bf16.mxu0 0
    %2716 = vmatpush1.bf16.msra.mxu0 0
    %2717 = vmatprep.subr.bf16.mxu0 0
    %2718 = vmatpush1.bf16.msra.mxu0 0
    %2719 = vmatprep.subr.bf16.mxu0 0
    %2720 = vmatpush1.bf16.msra.mxu0 0
    %2721 = vmatprep.subr.bf16.mxu0 0
    %2722 = vmatpush1.bf16.msra.mxu0 0
    %2723 = vmatprep.subr.bf16.mxu0 0
    %2724 = vmatpush1.bf16.msra.mxu0 0
    %2725 = vmatprep.mubr.bf16.mxu0 0
    %2726 = vmatmul.mubr.bf16.gmra.mrb[0].mxu0 %v2488
    %v2727 = vpop.f32.mrb[0].mxu0
    %v2728 = vadd.f32 %v2583, %v2727
    %v2729 = vpop.f32.mrb[0].mxu0
    %v2730 = vpop.f32.mrb[0].mxu0
    %v2731 = vadd.f32 %v2586, %v2730
    %v2732 = vpop.f32.mrb[0].mxu0
    %2733 = vmatprep.mubr.bf16.mxu0 0
    %2734 = vmatmul.mubr.bf16.gmra.mrb[0].mxu0 %v2489
    %v2735 = vpop.f32.mrb[0].mxu0
    %v2736 = vadd.f32 %v2591, %v2735
    %v2737 = vpop.f32.mrb[0].mxu0
    %v2738 = vpop.f32.mrb[0].mxu0
    %v2739 = vadd.f32 %v2594, %v2738
    %v2740 = vpop.f32.mrb[0].mxu0
    %2741 = vmatprep.mubr.bf16.mxu0 0
    %2742 = vmatmul.mubr.bf16.gmra.mrb[0].mxu0 %v2490
    %v2743 = vpop.f32.mrb[0].mxu0
    %v2744 = vadd.f32 %v2599, %v2743
    %v2745 = vpop.f32.mrb[0].mxu0
    %v2746 = vpop.f32.mrb[0].mxu0
    %v2747 = vadd.f32 %v2602, %v2746
    %v2748 = vpop.f32.mrb[0].mxu0
    %2749 = vmatprep.mubr.bf16.mxu0 0
    %2750 = vmatmul.mubr.bf16.gmra.mrb[0].mxu0 %v2491
    %v2751 = vpop.f32.mrb[0].mxu0
    %v2752 = vadd.f32 %v2607, %v2751
    %v2753 = vpop.f32.mrb[0].mxu0
    %v2754 = vpop.f32.mrb[0].mxu0
    %v2755 = vadd.f32 %v2610, %v2754
    %v2756 = vpop.f32.mrb[0].mxu0
    %2757 = vmatprep.mubr.bf16.mxu0 0
    %2758 = vmatmul.mubr.bf16.gmra.mrb[0].mxu0 %v2492
    %v2759 = vpop.f32.mrb[0].mxu0
    %v2760 = vadd.f32 %v2615, %v2759
    %v2761 = vpop.f32.mrb[0].mxu0
    %v2762 = vpop.f32.mrb[0].mxu0
    %v2763 = vadd.f32 %v2618, %v2762
    %v2764 = vpop.f32.mrb[0].mxu0
    %2765 = vmatprep.mubr.bf16.mxu0 0
    %2766 = vmatmul.mubr.bf16.gmra.mrb[0].mxu0 %v2493
    %v2767 = vpop.f32.mrb[0].mxu0
    %v2768 = vadd.f32 %v2623, %v2767
    %v2769 = vpop.f32.mrb[0].mxu0
    %v2770 = vpop.f32.mrb[0].mxu0
    %v2771 = vadd.f32 %v2626, %v2770
    %v2772 = vpop.f32.mrb[0].mxu0
    %2773 = vmatprep.mubr.bf16.mxu0 0
    %2774 = vmatmul.mubr.bf16.gmra.mrb[0].mxu0 %v2494
    %v2775 = vpop.f32.mrb[0].mxu0
    %v2776 = vadd.f32 %v2631, %v2775
    %v2777 = vpop.f32.mrb[0].mxu0
    %v2778 = vpop.f32.mrb[0].mxu0
    %v2779 = vadd.f32 %v2634, %v2778
    %v2780 = vpop.f32.mrb[0].mxu0
    %2781 = vmatprep.mubr.bf16.mxu0 0
    %2782 = vmatmul.mubr.bf16.gmra.mrb[0].mxu0 %v2495
    %v2783 = vpop.f32.mrb[0].mxu0
    %v2784 = vadd.f32 %v2639, %v2783
    %v2785 = vpop.f32.mrb[0].mxu0
    %v2786 = vpop.f32.mrb[0].mxu0
    %v2787 = vadd.f32 %v2642, %v2786
    %v2788 = vpop.f32.mrb[0].mxu0
    %2789 = vdwg.mxu0
    %v2790 = vmax.f32 %v2728, 0.0
    %v2791 = vmax.f32 %v2731, 0.0
    %v2792 = vmax.f32 %v2736, 0.0
    %v2793 = vmax.f32 %v2739, 0.0
    %v2794 = vmax.f32 %v2744, 0.0
    %v2795 = vmax.f32 %v2747, 0.0
    %v2796 = vmax.f32 %v2752, 0.0
    %v2797 = vmax.f32 %v2755, 0.0
    %v2798 = vmax.f32 %v2760, 0.0
    %v2799 = vmax.f32 %v2763, 0.0
    %v2800 = vmax.f32 %v2768, 0.0
    %v2801 = vmax.f32 %v2771, 0.0
    %v2802 = vmax.f32 %v2776, 0.0
    %v2803 = vmax.f32 %v2779, 0.0
    %v2804 = vmax.f32 %v2784, 0.0
    %v2805 = vmax.f32 %v2787, 0.0
    %v2806 = vpack.c.bf16 %v2791, %v2790
    %v2807 = vpack.c.bf16 %v2793, %v2792
    %v2808 = vpack.c.bf16 %v2795, %v2794
    %v2809 = vpack.c.bf16 %v2797, %v2796
    %v2810 = vpack.c.bf16 %v2799, %v2798
    %v2811 = vpack.c.bf16 %v2801, %v2800
    %v2812 = vpack.c.bf16 %v2803, %v2802
    %v2813 = vpack.c.bf16 %v2805, %v2804
    %v2830 = vunpack.c.l.b16 %v2367
    %v2831 = vunpack.c.l.b16 %v2368
    %v2832 = vunpack.c.l.b16 %v2369
    %v2833 = vunpack.c.l.b16 %v2370
    %v2834 = vunpack.c.l.b16 %v2371
    %v2835 = vunpack.c.l.b16 %v2372
    %v2836 = vunpack.c.l.b16 %v2373
    %v2837 = vunpack.c.l.b16 %v2374
    %v2838 = vunpack.c.l.b16 %v2375
    %v2839 = vunpack.c.l.b16 %v2376
    %v2840 = vunpack.c.l.b16 %v2377
    %v2841 = vunpack.c.l.b16 %v2378
    %v2842 = vunpack.c.l.b16 %v2379
    %v2843 = vunpack.c.l.b16 %v2380
    %v2844 = vunpack.c.l.b16 %v2381
    %v2845 = vunpack.c.l.b16 %v2382
    %v2846 = vpack.c.b16 %v2831, %v2830
    %v2847 = vpack.c.b16 %v2833, %v2832
    %v2848 = vpack.c.b16 %v2835, %v2834
    %v2849 = vpack.c.b16 %v2837, %v2836
    %v2850 = vpack.c.b16 %v2839, %v2838
    %v2851 = vpack.c.b16 %v2841, %v2840
    %v2852 = vpack.c.b16 %v2843, %v2842
    %v2853 = vpack.c.b16 %v2845, %v2844
    %2862 = vmatprep.subr.bf16.mxu0 0
    %2863 = vmatpush1.bf16.msra.mxu0 %v2846
    %2864 = vmatprep.subr.bf16.mxu0 0
    %2865 = vmatpush1.bf16.msra.mxu0 %v2847
    %2866 = vmatprep.subr.bf16.mxu0 0
    %2867 = vmatpush1.bf16.msra.mxu0 %v2848
    %2868 = vmatprep.subr.bf16.mxu0 0
    %2869 = vmatpush1.bf16.msra.mxu0 %v2849
    %2870 = vmatprep.subr.bf16.mxu0 0
    %2871 = vmatpush1.bf16.msra.mxu0 %v2850
    %2872 = vmatprep.subr.bf16.mxu0 0
    %2873 = vmatpush1.bf16.msra.mxu0 %v2851
    %2874 = vmatprep.subr.bf16.mxu0 0
    %2875 = vmatpush1.bf16.msra.mxu0 %v2852
    %2876 = vmatprep.subr.bf16.mxu0 0
    %2877 = vmatpush1.bf16.msra.mxu0 %v2853
    %2878 = vmatprep.subr.bf16.mxu0 0
    %2879 = vmatpush1.bf16.msra.mxu0 0
    %2880 = vmatprep.subr.bf16.mxu0 0
    %2881 = vmatpush1.bf16.msra.mxu0 0
    %2882 = vmatprep.subr.bf16.mxu0 0
    %2883 = vmatpush1.bf16.msra.mxu0 0
    %2884 = vmatprep.subr.bf16.mxu0 0
    %2885 = vmatpush1.bf16.msra.mxu0 0
    %2886 = vmatprep.subr.bf16.mxu0 0
    %2887 = vmatpush1.bf16.msra.mxu0 0
    %2888 = vmatprep.subr.bf16.mxu0 0
    %2889 = vmatpush1.bf16.msra.mxu0 0
    %2890 = vmatprep.subr.bf16.mxu0 0
    %2891 = vmatpush1.bf16.msra.mxu0 0
    %2892 = vmatprep.subr.bf16.mxu0 0
    %2893 = vmatpush1.bf16.msra.mxu0 0
    %2894 = vmatprep.mubr.bf16.mxu0 0
    %2895 = vmatmul.mubr.bf16.gmra.mrb[0].mxu0 %v2806
    %v2896 = vpop.f32.mrb[0].mxu0
    %v2897 = vadd.f32 0.0, %v2896
    %v2898 = vpop.f32.mrb[0].mxu0
    %v2899 = vpop.f32.mrb[0].mxu0
    %v2900 = vadd.f32 0.0, %v2899
    %v2901 = vpop.f32.mrb[0].mxu0
    %2902 = vmatprep.mubr.bf16.mxu0 0
    %2903 = vmatmul.mubr.bf16.gmra.mrb[0].mxu0 %v2807
    %v2904 = vpop.f32.mrb[0].mxu0
    %v2905 = vadd.f32 0.0, %v2904
    %v2906 = vpop.f32.mrb[0].mxu0
    %v2907 = vpop.f32.mrb[0].mxu0
    %v2908 = vadd.f32 0.0, %v2907
    %v2909 = vpop.f32.mrb[0].mxu0
    %2910 = vmatprep.mubr.bf16.mxu0 0
    %2911 = vmatmul.mubr.bf16.gmra.mrb[0].mxu0 %v2808
    %v2912 = vpop.f32.mrb[0].mxu0
    %v2913 = vadd.f32 0.0, %v2912
    %v2914 = vpop.f32.mrb[0].mxu0
    %v2915 = vpop.f32.mrb[0].mxu0
    %v2916 = vadd.f32 0.0, %v2915
    %v2917 = vpop.f32.mrb[0].mxu0
    %2918 = vmatprep.mubr.bf16.mxu0 0
    %2919 = vmatmul.mubr.bf16.gmra.mrb[0].mxu0 %v2809
    %v2920 = vpop.f32.mrb[0].mxu0
    %v2921 = vadd.f32 0.0, %v2920
    %v2922 = vpop.f32.mrb[0].mxu0
    %v2923 = vpop.f32.mrb[0].mxu0
    %v2924 = vadd.f32 0.0, %v2923
    %v2925 = vpop.f32.mrb[0].mxu0
    %2926 = vmatprep.mubr.bf16.mxu0 0
    %2927 = vmatmul.mubr.bf16.gmra.mrb[0].mxu0 %v2810
    %v2928 = vpop.f32.mrb[0].mxu0
    %v2929 = vadd.f32 0.0, %v2928
    %v2930 = vpop.f32.mrb[0].mxu0
    %v2931 = vpop.f32.mrb[0].mxu0
    %v2932 = vadd.f32 0.0, %v2931
    %v2933 = vpop.f32.mrb[0].mxu0
    %2934 = vmatprep.mubr.bf16.mxu0 0
    %2935 = vmatmul.mubr.bf16.gmra.mrb[0].mxu0 %v2811
    %v2936 = vpop.f32.mrb[0].mxu0
    %v2937 = vadd.f32 0.0, %v2936
    %v2938 = vpop.f32.mrb[0].mxu0
    %v2939 = vpop.f32.mrb[0].mxu0
    %v2940 = vadd.f32 0.0, %v2939
    %v2941 = vpop.f32.mrb[0].mxu0
    %2942 = vmatprep.mubr.bf16.mxu0 0
    %2943 = vmatmul.mubr.bf16.gmra.mrb[0].mxu0 %v2812
    %v2944 = vpop.f32.mrb[0].mxu0
    %v2945 = vadd.f32 0.0, %v2944
    %v2946 = vpop.f32.mrb[0].mxu0
    %v2947 = vpop.f32.mrb[0].mxu0
    %v2948 = vadd.f32 0.0, %v2947
    %v2949 = vpop.f32.mrb[0].mxu0
    %2950 = vmatprep.mubr.bf16.mxu0 0
    %2951 = vmatmul.mubr.bf16.gmra.mrb[0].mxu0 %v2813
    %v2952 = vpop.f32.mrb[0].mxu0
    %v2953 = vadd.f32 0.0, %v2952
    %v2954 = vpop.f32.mrb[0].mxu0
    %v2955 = vpop.f32.mrb[0].mxu0
    %v2956 = vadd.f32 0.0, %v2955
    %v2957 = vpop.f32.mrb[0].mxu0
    %2958 = vdwg.mxu0
    %v2959 = vpack.c.bf16 %v2900, %v2897
    %v2960 = vpack.c.bf16 %v2908, %v2905
    %v2961 = vpack.c.bf16 %v2916, %v2913
    %v2962 = vpack.c.bf16 %v2924, %v2921
    %v2963 = vpack.c.bf16 %v2932, %v2929
    %v2964 = vpack.c.bf16 %v2940, %v2937
    %v2965 = vpack.c.bf16 %v2948, %v2945
    %v2966 = vpack.c.bf16 %v2956, %v2953
    %2967 = vmatprep.subr.bf16.mxu0 0
    %2968 = vmatpush1.bf16.msra.mxu0 %v2959
    %2969 = vmatprep.subr.bf16.mxu0 0
    %2970 = vmatpush1.bf16.msra.mxu0 %v2960
    %2971 = vmatprep.subr.bf16.mxu0 0
    %2972 = vmatpush1.bf16.msra.mxu0 %v2961
    %2973 = vmatprep.subr.bf16.mxu0 0
    %2974 = vmatpush1.bf16.msra.mxu0 %v2962
    %2975 = vmatprep.subr.bf16.mxu0 0
    %2976 = vmatpush1.bf16.msra.mxu0 %v2963
    %2977 = vmatprep.subr.bf16.mxu0 0
    %2978 = vmatpush1.bf16.msra.mxu0 %v2964
    %2979 = vmatprep.subr.bf16.mxu0 0
    %2980 = vmatpush1.bf16.msra.mxu0 %v2965
    %2981 = vmatprep.subr.bf16.mxu0 0
    %2982 = vmatpush1.bf16.msra.mxu0 %v2966
    %2983 = vmatprep.subr.bf16.mxu0 0
    %2984 = vmatpush1.bf16.msra.mxu0 0
    %2985 = vmatprep.subr.bf16.mxu0 0
    %2986 = vmatpush1.bf16.msra.mxu0 0
    %2987 = vmatprep.subr.bf16.mxu0 0
    %2988 = vmatpush1.bf16.msra.mxu0 0
    %2989 = vmatprep.subr.bf16.mxu0 0
    %2990 = vmatpush1.bf16.msra.mxu0 0
    %2991 = vmatprep.subr.bf16.mxu0 0
    %2992 = vmatpush1.bf16.msra.mxu0 0
    %2993 = vmatprep.subr.bf16.mxu0 0
    %2994 = vmatpush1.bf16.msra.mxu0 0
    %2995 = vmatprep.subr.bf16.mxu0 0
    %2996 = vmatpush1.bf16.msra.mxu0 0
    %2997 = vmatprep.subr.bf16.mxu0 0
    %2998 = vmatpush1.bf16.msra.mxu0 0
    %2999 = vmatprep.mubr.bf16.mxu0 0
    %3000 = vmatmul.mubr.bf16.gmra.mrb[0].mxu0 %v287
    %v3001 = vpop.f32.mrb[0].mxu0
    %v3002 = vadd.f32 %v2583, %v3001
    %v3003 = vpop.f32.mrb[0].mxu0
    %v3004 = vpop.f32.mrb[0].mxu0
    %v3005 = vadd.f32 %v2586, %v3004
    %v3006 = vpop.f32.mrb[0].mxu0
    %3007 = vmatprep.mubr.bf16.mxu0 0
    %3008 = vmatmul.mubr.bf16.gmra.mrb[0].mxu0 %v288
    %v3009 = vpop.f32.mrb[0].mxu0
    %v3010 = vadd.f32 %v2591, %v3009
    %v3011 = vpop.f32.mrb[0].mxu0
    %v3012 = vpop.f32.mrb[0].mxu0
    %v3013 = vadd.f32 %v2594, %v3012
    %v3014 = vpop.f32.mrb[0].mxu0
    %3015 = vmatprep.mubr.bf16.mxu0 0
    %3016 = vmatmul.mubr.bf16.gmra.mrb[0].mxu0 %v289
    %v3017 = vpop.f32.mrb[0].mxu0
    %v3018 = vadd.f32 %v2599, %v3017
    %v3019 = vpop.f32.mrb[0].mxu0
    %v3020 = vpop.f32.mrb[0].mxu0
    %v3021 = vadd.f32 %v2602, %v3020
    %v3022 = vpop.f32.mrb[0].mxu0
    %3023 = vmatprep.mubr.bf16.mxu0 0
    %3024 = vmatmul.mubr.bf16.gmra.mrb[0].mxu0 %v290
    %v3025 = vpop.f32.mrb[0].mxu0
    %v3026 = vadd.f32 %v2607, %v3025
    %v3027 = vpop.f32.mrb[0].mxu0
    %v3028 = vpop.f32.mrb[0].mxu0
    %v3029 = vadd.f32 %v2610, %v3028
    %v3030 = vpop.f32.mrb[0].mxu0
    %3031 = vmatprep.mubr.bf16.mxu0 0
    %3032 = vmatmul.mubr.bf16.gmra.mrb[0].mxu0 %v291
    %v3033 = vpop.f32.mrb[0].mxu0
    %v3034 = vadd.f32 %v2615, %v3033
    %v3035 = vpop.f32.mrb[0].mxu0
    %v3036 = vpop.f32.mrb[0].mxu0
    %v3037 = vadd.f32 %v2618, %v3036
    %v3038 = vpop.f32.mrb[0].mxu0
    %3039 = vmatprep.mubr.bf16.mxu0 0
    %3040 = vmatmul.mubr.bf16.gmra.mrb[0].mxu0 %v292
    %v3041 = vpop.f32.mrb[0].mxu0
    %v3042 = vadd.f32 %v2623, %v3041
    %v3043 = vpop.f32.mrb[0].mxu0
    %v3044 = vpop.f32.mrb[0].mxu0
    %v3045 = vadd.f32 %v2626, %v3044
    %v3046 = vpop.f32.mrb[0].mxu0
    %3047 = vmatprep.mubr.bf16.mxu0 0
    %3048 = vmatmul.mubr.bf16.gmra.mrb[0].mxu0 %v293
    %v3049 = vpop.f32.mrb[0].mxu0
    %v3050 = vadd.f32 %v2631, %v3049
    %v3051 = vpop.f32.mrb[0].mxu0
    %v3052 = vpop.f32.mrb[0].mxu0
    %v3053 = vadd.f32 %v2634, %v3052
    %v3054 = vpop.f32.mrb[0].mxu0
    %3055 = vmatprep.mubr.bf16.mxu0 0
    %3056 = vmatmul.mubr.bf16.gmra.mrb[0].mxu0 %v294
    %v3057 = vpop.f32.mrb[0].mxu0
    %v3058 = vadd.f32 %v2639, %v3057
    %v3059 = vpop.f32.mrb[0].mxu0
    %v3060 = vpop.f32.mrb[0].mxu0
    %v3061 = vadd.f32 %v2642, %v3060
    %v3062 = vpop.f32.mrb[0].mxu0
    %3063 = vdwg.mxu0
    %v3064 = vmax.f32 %v3002, 0.0
    %v3065 = vmax.f32 %v3005, 0.0
    %v3066 = vmax.f32 %v3010, 0.0
    %v3067 = vmax.f32 %v3013, 0.0
    %v3068 = vmax.f32 %v3018, 0.0
    %v3069 = vmax.f32 %v3021, 0.0
    %v3070 = vmax.f32 %v3026, 0.0
    %v3071 = vmax.f32 %v3029, 0.0
    %v3072 = vmax.f32 %v3034, 0.0
    %v3073 = vmax.f32 %v3037, 0.0
    %v3074 = vmax.f32 %v3042, 0.0
    %v3075 = vmax.f32 %v3045, 0.0
    %v3076 = vmax.f32 %v3050, 0.0
    %v3077 = vmax.f32 %v3053, 0.0
    %v3078 = vmax.f32 %v3058, 0.0
    %v3079 = vmax.f32 %v3061, 0.0
    %v3080 = vmax.f32 %v3064, 0.0
    %v3081 = vmax.f32 %v3065, 0.0
    %v3082 = vmax.f32 %v3066, 0.0
    %v3083 = vmax.f32 %v3067, 0.0
    %v3084 = vmax.f32 %v3068, 0.0
    %v3085 = vmax.f32 %v3069, 0.0
    %v3086 = vmax.f32 %v3070, 0.0
    %v3087 = vmax.f32 %v3071, 0.0
    %v3088 = vmax.f32 %v3072, 0.0
    %v3089 = vmax.f32 %v3073, 0.0
    %v3090 = vmax.f32 %v3074, 0.0
    %v3091 = vmax.f32 %v3075, 0.0
    %v3092 = vmax.f32 %v3076, 0.0
    %v3093 = vmax.f32 %v3077, 0.0
    %v3094 = vmax.f32 %v3078, 0.0
    %v3095 = vmax.f32 %v3079, 0.0
    %v3096 = vld [vmem:[#allocation5] sm:$0xff]
    %v3097 = vld [vmem:[#allocation5 + $0x8] sm:$0xf]
    %v3098 = vld [vmem:[#allocation5 + $0xc] sm:$0xff]
    %v3099 = vld [vmem:[#allocation5 + $0x14] sm:$0xf]
    %v3100 = vld [vmem:[#allocation5 + $0x18] sm:$0xff]
    %v3101 = vld [vmem:[#allocation5 + $0x20] sm:$0xf]
    %v3102 = vld [vmem:[#allocation5 + $0x24] sm:$0xff]
    %v3103 = vld [vmem:[#allocation5 + $0x2c] sm:$0xf]
    %v3104 = vld [vmem:[#allocation5 + $0x30] sm:$0xff]
    %v3105 = vld [vmem:[#allocation5 + $0x38] sm:$0xf]
    %v3106 = vld [vmem:[#allocation5 + $0x3c] sm:$0xff]
    %v3107 = vld [vmem:[#allocation5 + $0x44] sm:$0xf]
    %v3108 = vld [vmem:[#allocation5 + $0x48] sm:$0xff]
    %v3109 = vld [vmem:[#allocation5 + $0x50] sm:$0xf]
    %v3110 = vld [vmem:[#allocation5 + $0x54] sm:$0xff]
    %v3111 = vld [vmem:[#allocation5 + $0x5c] sm:$0xf]
    %v3112 = vld [vmem:[#allocation5 + $0x60] sm:$0xff]
    %v3113 = vld [vmem:[#allocation5 + $0x68] sm:$0xf]
    %v3114 = vld [vmem:[#allocation5 + $0x6c] sm:$0xff]
    %v3115 = vld [vmem:[#allocation5 + $0x74] sm:$0xf]
    %v3116 = vld [vmem:[#allocation5 + $0x78] sm:$0xff]
    %v3117 = vld [vmem:[#allocation5 + $0x80] sm:$0xf]
    %v3118 = vld [vmem:[#allocation5 + $0x84] sm:$0xff]
    %v3119 = vld [vmem:[#allocation5 + $0x8c] sm:$0xf]
    %v3120 = vld [vmem:[#allocation5 + $0x90] sm:$0xff]
    %v3121 = vld [vmem:[#allocation5 + $0x98] sm:$0xf]
    %v3122 = vld [vmem:[#allocation5 + $0x9c] sm:$0xff]
    %v3123 = vld [vmem:[#allocation5 + $0xa4] sm:$0xf]
    %v3124 = vld [vmem:[#allocation5 + $0xa8] sm:$0xff]
    %v3125 = vld [vmem:[#allocation5 + $0xb0] sm:$0xf]
    %v3126 = vld [vmem:[#allocation5 + $0xb4] sm:$0xff]
    %v3127 = vld [vmem:[#allocation5 + $0xbc] sm:$0xf]
    %v3128 = vld [vmem:[#allocation5 + $0xc0] sm:$0xff]
    %v3129 = vld [vmem:[#allocation5 + $0xc8] sm:$0xf]
    %v3130 = vld [vmem:[#allocation5 + $0xcc] sm:$0xff]
    %v3131 = vld [vmem:[#allocation5 + $0xd4] sm:$0xf]
    %v3132 = vld [vmem:[#allocation5 + $0xd8] sm:$0xff]
    %v3133 = vld [vmem:[#allocation5 + $0xe0] sm:$0xf]
    %v3134 = vld [vmem:[#allocation5 + $0xe4] sm:$0xff]
    %v3135 = vld [vmem:[#allocation5 + $0xec] sm:$0xf]
    %v3136 = vld [vmem:[#allocation5 + $0xf0] sm:$0xff]
    %v3137 = vld [vmem:[#allocation5 + $0xf8] sm:$0xf]
    %v3138 = vld [vmem:[#allocation5 + $0xfc] sm:$0xff]
    %v3139 = vld [vmem:[#allocation5 + $0x104] sm:$0xf]
    %v3140 = vld [vmem:[#allocation5 + $0x108] sm:$0xff]
    %v3141 = vld [vmem:[#allocation5 + $0x110] sm:$0xf]
    %v3142 = vld [vmem:[#allocation5 + $0x114] sm:$0xff]
    %v3143 = vld [vmem:[#allocation5 + $0x11c] sm:$0xf]
    %v3144 = vld [vmem:[#allocation5 + $0x120] sm:$0xff]
    %v3145 = vld [vmem:[#allocation5 + $0x128] sm:$0xf]
    %v3146 = vld [vmem:[#allocation5 + $0x12c] sm:$0xff]
    %v3147 = vld [vmem:[#allocation5 + $0x134] sm:$0xf]
    %v3148 = vld [vmem:[#allocation5 + $0x138] sm:$0xff]
    %v3149 = vld [vmem:[#allocation5 + $0x140] sm:$0xf]
    %v3150 = vld [vmem:[#allocation5 + $0x144] sm:$0xff]
    %v3151 = vld [vmem:[#allocation5 + $0x14c] sm:$0xf]
    %v3152 = vld [vmem:[#allocation5 + $0x150] sm:$0xff]
    %v3153 = vld [vmem:[#allocation5 + $0x158] sm:$0xf]
    %v3154 = vld [vmem:[#allocation5 + $0x15c] sm:$0xff]
    %v3155 = vld [vmem:[#allocation5 + $0x164] sm:$0xf]
    %v3156 = vld [vmem:[#allocation5 + $0x168] sm:$0xff]
    %v3157 = vld [vmem:[#allocation5 + $0x170] sm:$0xf]
    %v3158 = vld [vmem:[#allocation5 + $0x174] sm:$0xff]
    %v3159 = vld [vmem:[#allocation5 + $0x17c] sm:$0xf]
    %v3160 = vld [vmem:[#allocation5 + $0x180] sm:$0xff]
    %v3161 = vld [vmem:[#allocation5 + $0x188] sm:$0xf]
    %v3162 = vld [vmem:[#allocation5 + $0x18c] sm:$0xff]
    %v3163 = vld [vmem:[#allocation5 + $0x194] sm:$0xf]
    %v3164 = vld [vmem:[#allocation5 + $0x198] sm:$0xff]
    %v3165 = vld [vmem:[#allocation5 + $0x1a0] sm:$0xf]
    %v3166 = vld [vmem:[#allocation5 + $0x1a4] sm:$0xff]
    %v3167 = vld [vmem:[#allocation5 + $0x1ac] sm:$0xf]
    %v3168 = vld [vmem:[#allocation5 + $0x1b0] sm:$0xff]
    %v3169 = vld [vmem:[#allocation5 + $0x1b8] sm:$0xf]
    %v3170 = vld [vmem:[#allocation5 + $0x1bc] sm:$0xff]
    %v3171 = vld [vmem:[#allocation5 + $0x1c4] sm:$0xf]
    %v3172 = vld [vmem:[#allocation5 + $0x1c8] sm:$0xff]
    %v3173 = vld [vmem:[#allocation5 + $0x1d0] sm:$0xf]
    %v3174 = vld [vmem:[#allocation5 + $0x1d4] sm:$0xff]
    %v3175 = vld [vmem:[#allocation5 + $0x1dc] sm:$0xf]
    %v3176 = vld [vmem:[#allocation5 + $0x1e0] sm:$0xff]
    %v3177 = vld [vmem:[#allocation5 + $0x1e8] sm:$0xf]
    %v3178 = vld [vmem:[#allocation5 + $0x1ec] sm:$0xff]
    %v3179 = vld [vmem:[#allocation5 + $0x1f4] sm:$0xf]
    %v3180 = vld [vmem:[#allocation5 + $0x1f8] sm:$0xff]
    %v3181 = vld [vmem:[#allocation5 + $0x200] sm:$0xf]
    %v3182 = vld [vmem:[#allocation5 + $0x204] sm:$0xff]
    %v3183 = vld [vmem:[#allocation5 + $0x20c] sm:$0xf]
    %v3184 = vld [vmem:[#allocation5 + $0x210] sm:$0xff]
    %v3185 = vld [vmem:[#allocation5 + $0x218] sm:$0xf]
    %v3186 = vld [vmem:[#allocation5 + $0x21c] sm:$0xff]
    %v3187 = vld [vmem:[#allocation5 + $0x224] sm:$0xf]
    %v3188 = vld [vmem:[#allocation5 + $0x228] sm:$0xff]
    %v3189 = vld [vmem:[#allocation5 + $0x230] sm:$0xf]
    %v3190 = vld [vmem:[#allocation5 + $0x234] sm:$0xff]
    %v3191 = vld [vmem:[#allocation5 + $0x23c] sm:$0xf]
    %v3192 = vld [vmem:[#allocation5 + $0x240] sm:$0xff]
    %v3193 = vld [vmem:[#allocation5 + $0x248] sm:$0xf]
    %v3194 = vld [vmem:[#allocation5 + $0x24c] sm:$0xff]
    %v3195 = vld [vmem:[#allocation5 + $0x254] sm:$0xf]
    %v3196 = vld [vmem:[#allocation5 + $0x258] sm:$0xff]
    %v3197 = vld [vmem:[#allocation5 + $0x260] sm:$0xf]
    %v3198 = vld [vmem:[#allocation5 + $0x264] sm:$0xff]
    %v3199 = vld [vmem:[#allocation5 + $0x26c] sm:$0xf]
    %v3200 = vld [vmem:[#allocation5 + $0x270] sm:$0xff]
    %v3201 = vld [vmem:[#allocation5 + $0x278] sm:$0xf]
    %v3202 = vld [vmem:[#allocation5 + $0x27c] sm:$0xff]
    %v3203 = vld [vmem:[#allocation5 + $0x284] sm:$0xf]
    %v3204 = vld [vmem:[#allocation5 + $0x288] sm:$0xff]
    %v3205 = vld [vmem:[#allocation5 + $0x290] sm:$0xf]
    %v3206 = vld [vmem:[#allocation5 + $0x294] sm:$0xff]
    %v3207 = vld [vmem:[#allocation5 + $0x29c] sm:$0xf]
    %v3208 = vld [vmem:[#allocation5 + $0x2a0] sm:$0xff]
    %v3209 = vld [vmem:[#allocation5 + $0x2a8] sm:$0xf]
    %v3210 = vld [vmem:[#allocation5 + $0x2ac] sm:$0xff]
    %v3211 = vld [vmem:[#allocation5 + $0x2b4] sm:$0xf]
    %v3212 = vld [vmem:[#allocation5 + $0x2b8] sm:$0xff]
    %v3213 = vld [vmem:[#allocation5 + $0x2c0] sm:$0xf]
    %v3214 = vld [vmem:[#allocation5 + $0x2c4] sm:$0xff]
    %v3215 = vld [vmem:[#allocation5 + $0x2cc] sm:$0xf]
    %v3216 = vld [vmem:[#allocation5 + $0x2d0] sm:$0xff]
    %v3217 = vld [vmem:[#allocation5 + $0x2d8] sm:$0xf]
    %v3218 = vld [vmem:[#allocation5 + $0x2dc] sm:$0xff]
    %v3219 = vld [vmem:[#allocation5 + $0x2e4] sm:$0xf]
    %v3220 = vld [vmem:[#allocation5 + $0x2e8] sm:$0xff]
    %v3221 = vld [vmem:[#allocation5 + $0x2f0] sm:$0xf]
    %v3222 = vld [vmem:[#allocation5 + $0x2f4] sm:$0xff]
    %v3223 = vld [vmem:[#allocation5 + $0x2fc] sm:$0xf]
    %v3224 = vld [vmem:[#allocation5 + $0x300] sm:$0xff]
    %v3225 = vld [vmem:[#allocation5 + $0x308] sm:$0xf]
    %v3226 = vld [vmem:[#allocation5 + $0x30c] sm:$0xff]
    %v3227 = vld [vmem:[#allocation5 + $0x314] sm:$0xf]
    %v3228 = vld [vmem:[#allocation5 + $0x318] sm:$0xff]
    %v3229 = vld [vmem:[#allocation5 + $0x320] sm:$0xf]
    %v3230 = vld [vmem:[#allocation5 + $0x324] sm:$0xff]
    %v3231 = vld [vmem:[#allocation5 + $0x32c] sm:$0xf]
    %v3232 = vld [vmem:[#allocation5 + $0x330] sm:$0xff]
    %v3233 = vld [vmem:[#allocation5 + $0x338] sm:$0xf]
    %v3234 = vld [vmem:[#allocation5 + $0x33c] sm:$0xff]
    %v3235 = vld [vmem:[#allocation5 + $0x344] sm:$0xf]
    %v3236 = vld [vmem:[#allocation5 + $0x348] sm:$0xff]
    %v3237 = vld [vmem:[#allocation5 + $0x350] sm:$0xf]
    %v3238 = vld [vmem:[#allocation5 + $0x354] sm:$0xff]
    %v3239 = vld [vmem:[#allocation5 + $0x35c] sm:$0xf]
    %v3240 = vld [vmem:[#allocation5 + $0x360] sm:$0xff]
    %v3241 = vld [vmem:[#allocation5 + $0x368] sm:$0xf]
    %v3242 = vld [vmem:[#allocation5 + $0x36c] sm:$0xff]
    %v3243 = vld [vmem:[#allocation5 + $0x374] sm:$0xf]
    %v3244 = vld [vmem:[#allocation5 + $0x378] sm:$0xff]
    %v3245 = vld [vmem:[#allocation5 + $0x380] sm:$0xf]
    %v3246 = vld [vmem:[#allocation5 + $0x384] sm:$0xff]
    %v3247 = vld [vmem:[#allocation5 + $0x38c] sm:$0xf]
    %v3248 = vld [vmem:[#allocation5 + $0x390] sm:$0xff]
    %v3249 = vld [vmem:[#allocation5 + $0x398] sm:$0xf]
    %v3250 = vld [vmem:[#allocation5 + $0x39c] sm:$0xff]
    %v3251 = vld [vmem:[#allocation5 + $0x3a4] sm:$0xf]
    %v3252 = vld [vmem:[#allocation5 + $0x3a8] sm:$0xff]
    %v3253 = vld [vmem:[#allocation5 + $0x3b0] sm:$0xf]
    %v3254 = vld [vmem:[#allocation5 + $0x3b4] sm:$0xff]
    %v3255 = vld [vmem:[#allocation5 + $0x3bc] sm:$0xf]
    %v3256 = vpack.c.bf16 %v3081, %v3080
    %v3257 = vpack.c.bf16 %v3083, %v3082
    %v3258 = vpack.c.bf16 %v3085, %v3084
    %v3259 = vpack.c.bf16 %v3087, %v3086
    %v3260 = vpack.c.bf16 %v3089, %v3088
    %v3261 = vpack.c.bf16 %v3091, %v3090
    %v3262 = vpack.c.bf16 %v3093, %v3092
    %v3263 = vpack.c.bf16 %v3095, %v3094
    %3264 = vmatprep.subr.bf16.mxu0 0
    %3265 = vmatpush1.bf16.msra.mxu0 %v3256
    %3266 = vmatprep.subr.bf16.mxu0 0
    %3267 = vmatpush1.bf16.msra.mxu0 %v3257
    %3268 = vmatprep.subr.bf16.mxu0 0
    %3269 = vmatpush1.bf16.msra.mxu0 %v3258
    %3270 = vmatprep.subr.bf16.mxu0 0
    %3271 = vmatpush1.bf16.msra.mxu0 %v3259
    %3272 = vmatprep.subr.bf16.mxu0 0
    %3273 = vmatpush1.bf16.msra.mxu0 %v3260
    %3274 = vmatprep.subr.bf16.mxu0 0
    %3275 = vmatpush1.bf16.msra.mxu0 %v3261
    %3276 = vmatprep.subr.bf16.mxu0 0
    %3277 = vmatpush1.bf16.msra.mxu0 %v3262
    %3278 = vmatprep.subr.bf16.mxu0 0
    %3279 = vmatpush1.bf16.msra.mxu0 %v3263
    %3280 = vmatprep.subr.bf16.mxu0 0
    %3281 = vmatpush1.bf16.msra.mxu0 0
    %3282 = vmatprep.subr.bf16.mxu0 0
    %3283 = vmatpush1.bf16.msra.mxu0 0
    %3284 = vmatprep.subr.bf16.mxu0 0
    %3285 = vmatpush1.bf16.msra.mxu0 0
    %3286 = vmatprep.subr.bf16.mxu0 0
    %3287 = vmatpush1.bf16.msra.mxu0 0
    %3288 = vmatprep.subr.bf16.mxu0 0
    %3289 = vmatpush1.bf16.msra.mxu0 0
    %3290 = vmatprep.subr.bf16.mxu0 0
    %3291 = vmatpush1.bf16.msra.mxu0 0
    %3292 = vmatprep.subr.bf16.mxu0 0
    %3293 = vmatpush1.bf16.msra.mxu0 0
    %3294 = vmatprep.subr.bf16.mxu0 0
    %3295 = vmatpush1.bf16.msra.mxu0 0
    %3296 = vmatprep.mubr.bf16.mxu0 0
    %3297 = vmatmul.mubr.bf16.gmra.mrb[0].mxu0 %v287
    %v3298 = vpop.f32.mrb[0].mxu0
    %v3299 = vadd.f32 0.0, %v3298
    %v3300 = vpop.f32.mrb[0].mxu0
    %v3301 = vpop.f32.mrb[0].mxu0
    %v3302 = vadd.f32 0.0, %v3301
    %v3303 = vpop.f32.mrb[0].mxu0
    %3304 = vmatprep.mubr.bf16.mxu0 0
    %3305 = vmatmul.mubr.bf16.gmra.mrb[0].mxu0 %v288
    %v3306 = vpop.f32.mrb[0].mxu0
    %v3307 = vadd.f32 0.0, %v3306
    %v3308 = vpop.f32.mrb[0].mxu0
    %v3309 = vpop.f32.mrb[0].mxu0
    %v3310 = vadd.f32 0.0, %v3309
    %v3311 = vpop.f32.mrb[0].mxu0
    %3312 = vmatprep.mubr.bf16.mxu0 0
    %3313 = vmatmul.mubr.bf16.gmra.mrb[0].mxu0 %v289
    %v3314 = vpop.f32.mrb[0].mxu0
    %v3315 = vadd.f32 0.0, %v3314
    %v3316 = vpop.f32.mrb[0].mxu0
    %v3317 = vpop.f32.mrb[0].mxu0
    %v3318 = vadd.f32 0.0, %v3317
    %v3319 = vpop.f32.mrb[0].mxu0
    %3320 = vmatprep.mubr.bf16.mxu0 0
    %3321 = vmatmul.mubr.bf16.gmra.mrb[0].mxu0 %v290
    %v3322 = vpop.f32.mrb[0].mxu0
    %v3323 = vadd.f32 0.0, %v3322
    %v3324 = vpop.f32.mrb[0].mxu0
    %v3325 = vpop.f32.mrb[0].mxu0
    %v3326 = vadd.f32 0.0, %v3325
    %v3327 = vpop.f32.mrb[0].mxu0
    %3328 = vmatprep.mubr.bf16.mxu0 0
    %3329 = vmatmul.mubr.bf16.gmra.mrb[0].mxu0 %v291
    %v3330 = vpop.f32.mrb[0].mxu0
    %v3331 = vadd.f32 0.0, %v3330
    %v3332 = vpop.f32.mrb[0].mxu0
    %v3333 = vpop.f32.mrb[0].mxu0
    %v3334 = vadd.f32 0.0, %v3333
    %v3335 = vpop.f32.mrb[0].mxu0
    %3336 = vmatprep.mubr.bf16.mxu0 0
    %3337 = vmatmul.mubr.bf16.gmra.mrb[0].mxu0 %v292
    %v3338 = vpop.f32.mrb[0].mxu0
    %v3339 = vadd.f32 0.0, %v3338
    %v3340 = vpop.f32.mrb[0].mxu0
    %v3341 = vpop.f32.mrb[0].mxu0
    %v3342 = vadd.f32 0.0, %v3341
    %v3343 = vpop.f32.mrb[0].mxu0
    %3344 = vmatprep.mubr.bf16.mxu0 0
    %3345 = vmatmul.mubr.bf16.gmra.mrb[0].mxu0 %v293
    %v3346 = vpop.f32.mrb[0].mxu0
    %v3347 = vadd.f32 0.0, %v3346
    %v3348 = vpop.f32.mrb[0].mxu0
    %v3349 = vpop.f32.mrb[0].mxu0
    %v3350 = vadd.f32 0.0, %v3349
    %v3351 = vpop.f32.mrb[0].mxu0
    %3352 = vmatprep.mubr.bf16.mxu0 0
    %3353 = vmatmul.mubr.bf16.gmra.mrb[0].mxu0 %v294
    %v3354 = vpop.f32.mrb[0].mxu0
    %v3355 = vadd.f32 0.0, %v3354
    %v3356 = vpop.f32.mrb[0].mxu0
    %v3357 = vpop.f32.mrb[0].mxu0
    %v3358 = vadd.f32 0.0, %v3357
    %v3359 = vpop.f32.mrb[0].mxu0
    %3360 = vdwg.mxu0
    %v3361 = vpack.c.bf16 %v3302, %v3299
    %v3362 = vpack.c.bf16 %v3310, %v3307
    %v3363 = vpack.c.bf16 %v3318, %v3315
    %v3364 = vpack.c.bf16 %v3326, %v3323
    %v3365 = vpack.c.bf16 %v3334, %v3331
    %v3366 = vpack.c.bf16 %v3342, %v3339
    %v3367 = vpack.c.bf16 %v3350, %v3347
    %v3368 = vpack.c.bf16 %v3358, %v3355
    %v3369 = vlaneseq
    %v3370 = vshrl.u32 %v3369, 7
    %v3371 = vsub.s32 2, %v3370
    %v3372 = vrot.slane %v85, %v3371
    %v3373 = vlaneseq
    %v3374 = vshrl.u32 %v3373, 7
    %v3375 = vsub.s32 6, %v3374
    %v3376 = vrot.slane %v85, %v3375
    %v3377 = vlaneseq
    %v3378 = vshrl.u32 %v3377, 7
    %v3379 = vsub.s32 2, %v3378
    %v3380 = vrot.slane %v86, %v3379
    %v3384 = vlaneseq
    %v3385 = vshrl.u32 %v3384, 7
    %v3386 = vsub.s32 2, %v3385
    %v3387 = vrot.slane %v3372, %v3386
    %v3388 = vlaneseq
    %v3389 = vshrl.u32 %v3388, 7
    %v3390 = vsub.s32 2, %v3389
    %v3391 = vrot.slane %v3376, %v3390
    %v3392 = vlaneseq
    %v3393 = vshrl.u32 %v3392, 7
    %v3394 = vsub.s32 2, %v3393
    %v3395 = vrot.slane %v3380, %v3394
    %v3428 = vunpack.c.l.b16 %v3128
    %v3429 = vunpack.c.h.b16 %v3128
    %v3430 = vunpack.c.l.b16 %v3129
    %v3431 = vunpack.c.l.b16 %v3130
    %v3432 = vunpack.c.h.b16 %v3130
    %v3433 = vunpack.c.l.b16 %v3131
    %v3434 = vunpack.c.l.b16 %v3132
    %v3435 = vunpack.c.h.b16 %v3132
    %v3436 = vunpack.c.l.b16 %v3133
    %v3437 = vunpack.c.l.b16 %v3134
    %v3438 = vunpack.c.h.b16 %v3134
    %v3439 = vunpack.c.l.b16 %v3135
    %v3440 = vunpack.c.l.b16 %v3136
    %v3441 = vunpack.c.h.b16 %v3136
    %v3442 = vunpack.c.l.b16 %v3137
    %v3443 = vunpack.c.l.b16 %v3138
    %v3444 = vunpack.c.h.b16 %v3138
    %v3445 = vunpack.c.l.b16 %v3139
    %v3446 = vunpack.c.l.b16 %v3140
    %v3447 = vunpack.c.h.b16 %v3140
    %v3448 = vunpack.c.l.b16 %v3141
    %v3449 = vunpack.c.l.b16 %v3142
    %v3450 = vunpack.c.h.b16 %v3142
    %v3451 = vunpack.c.l.b16 %v3143
    %v3452 = vunpack.c.l.b16 %v3144
    %v3453 = vunpack.c.h.b16 %v3144
    %v3454 = vunpack.c.l.b16 %v3145
    %v3455 = vunpack.c.l.b16 %v3146
    %v3456 = vunpack.c.h.b16 %v3146
    %v3457 = vunpack.c.l.b16 %v3147
    %v3458 = vunpack.c.l.b16 %v3148
    %v3459 = vunpack.c.h.b16 %v3148
    %v3460 = vunpack.c.l.b16 %v3149
    %v3461 = vunpack.c.l.b16 %v3150
    %v3462 = vunpack.c.h.b16 %v3150
    %v3463 = vunpack.c.l.b16 %v3151
    %v3464 = vunpack.c.l.b16 %v3152
    %v3465 = vunpack.c.h.b16 %v3152
    %v3466 = vunpack.c.l.b16 %v3153
    %v3467 = vunpack.c.l.b16 %v3154
    %v3468 = vunpack.c.h.b16 %v3154
    %v3469 = vunpack.c.l.b16 %v3155
    %v3470 = vunpack.c.l.b16 %v3156
    %v3471 = vunpack.c.h.b16 %v3156
    %v3472 = vunpack.c.l.b16 %v3157
    %v3473 = vunpack.c.l.b16 %v3158
    %v3474 = vunpack.c.h.b16 %v3158
    %v3475 = vunpack.c.l.b16 %v3159
    %v3476 = vpack.c.b16 %v3431, %v3428
    %v3477 = vpack.c.b16 %v3432, %v3429
    %v3478 = vpack.c.b16 %v3433, %v3430
    %v3479 = vpack.c.b16 %v3437, %v3434
    %v3480 = vpack.c.b16 %v3438, %v3435
    %v3481 = vpack.c.b16 %v3439, %v3436
    %v3482 = vpack.c.b16 %v3443, %v3440
    %v3483 = vpack.c.b16 %v3444, %v3441
    %v3484 = vpack.c.b16 %v3445, %v3442
    %v3485 = vpack.c.b16 %v3449, %v3446
    %v3486 = vpack.c.b16 %v3450, %v3447
    %v3487 = vpack.c.b16 %v3451, %v3448
    %v3488 = vpack.c.b16 %v3455, %v3452
    %v3489 = vpack.c.b16 %v3456, %v3453
    %v3490 = vpack.c.b16 %v3457, %v3454
    %v3491 = vpack.c.b16 %v3461, %v3458
    %v3492 = vpack.c.b16 %v3462, %v3459
    %v3493 = vpack.c.b16 %v3463, %v3460
    %v3494 = vpack.c.b16 %v3467, %v3464
    %v3495 = vpack.c.b16 %v3468, %v3465
    %v3496 = vpack.c.b16 %v3469, %v3466
    %v3497 = vpack.c.b16 %v3473, %v3470
    %v3498 = vpack.c.b16 %v3474, %v3471
    %v3499 = vpack.c.b16 %v3475, %v3472
    %3524 = vmatprep.subr.bf16.mxu0 %v3477
    %3525 = vmatpush1.bf16.msra.mxu0 %v3476
    %3526 = vmatprep.subr.bf16.mxu0 %v3480
    %3527 = vmatpush1.bf16.msra.mxu0 %v3479
    %3528 = vmatprep.subr.bf16.mxu0 %v3483
    %3529 = vmatpush1.bf16.msra.mxu0 %v3482
    %3530 = vmatprep.subr.bf16.mxu0 %v3486
    %3531 = vmatpush1.bf16.msra.mxu0 %v3485
    %3532 = vmatprep.subr.bf16.mxu0 %v3489
    %3533 = vmatpush1.bf16.msra.mxu0 %v3488
    %3534 = vmatprep.subr.bf16.mxu0 %v3492
    %3535 = vmatpush1.bf16.msra.mxu0 %v3491
    %3536 = vmatprep.subr.bf16.mxu0 %v3495
    %3537 = vmatpush1.bf16.msra.mxu0 %v3494
    %3538 = vmatprep.subr.bf16.mxu0 %v3498
    %3539 = vmatpush1.bf16.msra.mxu0 %v3497
    %3540 = vmatprep.subr.bf16.mxu0 0
    %3541 = vmatpush1.bf16.msra.mxu0 0
    %3542 = vmatprep.subr.bf16.mxu0 0
    %3543 = vmatpush1.bf16.msra.mxu0 0
    %3544 = vmatprep.subr.bf16.mxu0 0
    %3545 = vmatpush1.bf16.msra.mxu0 0
    %3546 = vmatprep.subr.bf16.mxu0 0
    %3547 = vmatpush1.bf16.msra.mxu0 0
    %3548 = vmatprep.subr.bf16.mxu0 0
    %3549 = vmatpush1.bf16.msra.mxu0 0
    %3550 = vmatprep.subr.bf16.mxu0 0
    %3551 = vmatpush1.bf16.msra.mxu0 0
    %3552 = vmatprep.subr.bf16.mxu0 0
    %3553 = vmatpush1.bf16.msra.mxu0 0
    %3554 = vmatprep.subr.bf16.mxu0 0
    %3555 = vmatpush1.bf16.msra.mxu0 0
    %3556 = vmatprep.mubr.bf16.mxu0 0
    %3557 = vmatmul.mubr.bf16.gmra.mrb[0].mxu0 %v3256
    %v3558 = vpop.f32.mrb[0].mxu0
    %v3559 = vadd.f32 %v3387, %v3558
    %v3560 = vpop.f32.mrb[0].mxu0
    %v3561 = vadd.f32 %v3391, %v3560
    %v3562 = vpop.f32.mrb[0].mxu0
    %v3563 = vadd.f32 %v3387, %v3562
    %v3564 = vpop.f32.mrb[0].mxu0
    %v3565 = vadd.f32 %v3391, %v3564
    %3566 = vmatprep.mubr.bf16.mxu0 0
    %3567 = vmatmul.mubr.bf16.gmra.mrb[0].mxu0 %v3257
    %v3568 = vpop.f32.mrb[0].mxu0
    %v3569 = vadd.f32 %v3387, %v3568
    %v3570 = vpop.f32.mrb[0].mxu0
    %v3571 = vadd.f32 %v3391, %v3570
    %v3572 = vpop.f32.mrb[0].mxu0
    %v3573 = vadd.f32 %v3387, %v3572
    %v3574 = vpop.f32.mrb[0].mxu0
    %v3575 = vadd.f32 %v3391, %v3574
    %3576 = vmatprep.mubr.bf16.mxu0 0
    %3577 = vmatmul.mubr.bf16.gmra.mrb[0].mxu0 %v3258
    %v3578 = vpop.f32.mrb[0].mxu0
    %v3579 = vadd.f32 %v3387, %v3578
    %v3580 = vpop.f32.mrb[0].mxu0
    %v3581 = vadd.f32 %v3391, %v3580
    %v3582 = vpop.f32.mrb[0].mxu0
    %v3583 = vadd.f32 %v3387, %v3582
    %v3584 = vpop.f32.mrb[0].mxu0
    %v3585 = vadd.f32 %v3391, %v3584
    %3586 = vmatprep.mubr.bf16.mxu0 0
    %3587 = vmatmul.mubr.bf16.gmra.mrb[0].mxu0 %v3259
    %v3588 = vpop.f32.mrb[0].mxu0
    %v3589 = vadd.f32 %v3387, %v3588
    %v3590 = vpop.f32.mrb[0].mxu0
    %v3591 = vadd.f32 %v3391, %v3590
    %v3592 = vpop.f32.mrb[0].mxu0
    %v3593 = vadd.f32 %v3387, %v3592
    %v3594 = vpop.f32.mrb[0].mxu0
    %v3595 = vadd.f32 %v3391, %v3594
    %3596 = vmatprep.mubr.bf16.mxu0 0
    %3597 = vmatmul.mubr.bf16.gmra.mrb[0].mxu0 %v3260
    %v3598 = vpop.f32.mrb[0].mxu0
    %v3599 = vadd.f32 %v3387, %v3598
    %v3600 = vpop.f32.mrb[0].mxu0
    %v3601 = vadd.f32 %v3391, %v3600
    %v3602 = vpop.f32.mrb[0].mxu0
    %v3603 = vadd.f32 %v3387, %v3602
    %v3604 = vpop.f32.mrb[0].mxu0
    %v3605 = vadd.f32 %v3391, %v3604
    %3606 = vmatprep.mubr.bf16.mxu0 0
    %3607 = vmatmul.mubr.bf16.gmra.mrb[0].mxu0 %v3261
    %v3608 = vpop.f32.mrb[0].mxu0
    %v3609 = vadd.f32 %v3387, %v3608
    %v3610 = vpop.f32.mrb[0].mxu0
    %v3611 = vadd.f32 %v3391, %v3610
    %v3612 = vpop.f32.mrb[0].mxu0
    %v3613 = vadd.f32 %v3387, %v3612
    %v3614 = vpop.f32.mrb[0].mxu0
    %v3615 = vadd.f32 %v3391, %v3614
    %3616 = vmatprep.mubr.bf16.mxu0 0
    %3617 = vmatmul.mubr.bf16.gmra.mrb[0].mxu0 %v3262
    %v3618 = vpop.f32.mrb[0].mxu0
    %v3619 = vadd.f32 %v3387, %v3618
    %v3620 = vpop.f32.mrb[0].mxu0
    %v3621 = vadd.f32 %v3391, %v3620
    %v3622 = vpop.f32.mrb[0].mxu0
    %v3623 = vadd.f32 %v3387, %v3622
    %v3624 = vpop.f32.mrb[0].mxu0
    %v3625 = vadd.f32 %v3391, %v3624
    %3626 = vmatprep.mubr.bf16.mxu0 0
    %3627 = vmatmul.mubr.bf16.gmra.mrb[0].mxu0 %v3263
    %v3628 = vpop.f32.mrb[0].mxu0
    %v3629 = vadd.f32 %v3387, %v3628
    %v3630 = vpop.f32.mrb[0].mxu0
    %v3631 = vadd.f32 %v3391, %v3630
    %v3632 = vpop.f32.mrb[0].mxu0
    %v3633 = vadd.f32 %v3387, %v3632
    %v3634 = vpop.f32.mrb[0].mxu0
    %v3635 = vadd.f32 %v3391, %v3634
    %3636 = vdwg.mxu0
    %3637 = vmatprep.subr.bf16.mxu0 0
    %3638 = vmatpush1.bf16.msra.mxu0 %v3478
    %3639 = vmatprep.subr.bf16.mxu0 0
    %3640 = vmatpush1.bf16.msra.mxu0 %v3481
    %3641 = vmatprep.subr.bf16.mxu0 0
    %3642 = vmatpush1.bf16.msra.mxu0 %v3484
    %3643 = vmatprep.subr.bf16.mxu0 0
    %3644 = vmatpush1.bf16.msra.mxu0 %v3487
    %3645 = vmatprep.subr.bf16.mxu0 0
    %3646 = vmatpush1.bf16.msra.mxu0 %v3490
    %3647 = vmatprep.subr.bf16.mxu0 0
    %3648 = vmatpush1.bf16.msra.mxu0 %v3493
    %3649 = vmatprep.subr.bf16.mxu0 0
    %3650 = vmatpush1.bf16.msra.mxu0 %v3496
    %3651 = vmatprep.subr.bf16.mxu0 0
    %3652 = vmatpush1.bf16.msra.mxu0 %v3499
    %3653 = vmatprep.subr.bf16.mxu0 0
    %3654 = vmatpush1.bf16.msra.mxu0 0
    %3655 = vmatprep.subr.bf16.mxu0 0
    %3656 = vmatpush1.bf16.msra.mxu0 0
    %3657 = vmatprep.subr.bf16.mxu0 0
    %3658 = vmatpush1.bf16.msra.mxu0 0
    %3659 = vmatprep.subr.bf16.mxu0 0
    %3660 = vmatpush1.bf16.msra.mxu0 0
    %3661 = vmatprep.subr.bf16.mxu0 0
    %3662 = vmatpush1.bf16.msra.mxu0 0
    %3663 = vmatprep.subr.bf16.mxu0 0
    %3664 = vmatpush1.bf16.msra.mxu0 0
    %3665 = vmatprep.subr.bf16.mxu0 0
    %3666 = vmatpush1.bf16.msra.mxu0 0
    %3667 = vmatprep.subr.bf16.mxu0 0
    %3668 = vmatpush1.bf16.msra.mxu0 0
    %3669 = vmatprep.mubr.bf16.mxu0 0
    %3670 = vmatmul.mubr.bf16.gmra.mrb[0].mxu0 %v3256
    %v3671 = vpop.f32.mrb[0].mxu0
    %v3672 = vadd.f32 %v3395, %v3671
    %v3673 = vpop.f32.mrb[0].mxu0
    %v3674 = vpop.f32.mrb[0].mxu0
    %v3675 = vadd.f32 %v3395, %v3674
    %v3676 = vpop.f32.mrb[0].mxu0
    %3677 = vmatprep.mubr.bf16.mxu0 0
    %3678 = vmatmul.mubr.bf16.gmra.mrb[0].mxu0 %v3257
    %v3679 = vpop.f32.mrb[0].mxu0
    %v3680 = vadd.f32 %v3395, %v3679
    %v3681 = vpop.f32.mrb[0].mxu0
    %v3682 = vpop.f32.mrb[0].mxu0
    %v3683 = vadd.f32 %v3395, %v3682
    %v3684 = vpop.f32.mrb[0].mxu0
    %3685 = vmatprep.mubr.bf16.mxu0 0
    %3686 = vmatmul.mubr.bf16.gmra.mrb[0].mxu0 %v3258
    %v3687 = vpop.f32.mrb[0].mxu0
    %v3688 = vadd.f32 %v3395, %v3687
    %v3689 = vpop.f32.mrb[0].mxu0
    %v3690 = vpop.f32.mrb[0].mxu0
    %v3691 = vadd.f32 %v3395, %v3690
    %v3692 = vpop.f32.mrb[0].mxu0
    %3693 = vmatprep.mubr.bf16.mxu0 0
    %3694 = vmatmul.mubr.bf16.gmra.mrb[0].mxu0 %v3259
    %v3695 = vpop.f32.mrb[0].mxu0
    %v3696 = vadd.f32 %v3395, %v3695
    %v3697 = vpop.f32.mrb[0].mxu0
    %v3698 = vpop.f32.mrb[0].mxu0
    %v3699 = vadd.f32 %v3395, %v3698
    %v3700 = vpop.f32.mrb[0].mxu0
    %3701 = vmatprep.mubr.bf16.mxu0 0
    %3702 = vmatmul.mubr.bf16.gmra.mrb[0].mxu0 %v3260
    %v3703 = vpop.f32.mrb[0].mxu0
    %v3704 = vadd.f32 %v3395, %v3703
    %v3705 = vpop.f32.mrb[0].mxu0
    %v3706 = vpop.f32.mrb[0].mxu0
    %v3707 = vadd.f32 %v3395, %v3706
    %v3708 = vpop.f32.mrb[0].mxu0
    %3709 = vmatprep.mubr.bf16.mxu0 0
    %3710 = vmatmul.mubr.bf16.gmra.mrb[0].mxu0 %v3261
    %v3711 = vpop.f32.mrb[0].mxu0
    %v3712 = vadd.f32 %v3395, %v3711
    %v3713 = vpop.f32.mrb[0].mxu0
    %v3714 = vpop.f32.mrb[0].mxu0
    %v3715 = vadd.f32 %v3395, %v3714
    %v3716 = vpop.f32.mrb[0].mxu0
    %3717 = vmatprep.mubr.bf16.mxu0 0
    %3718 = vmatmul.mubr.bf16.gmra.mrb[0].mxu0 %v3262
    %v3719 = vpop.f32.mrb[0].mxu0
    %v3720 = vadd.f32 %v3395, %v3719
    %v3721 = vpop.f32.mrb[0].mxu0
    %v3722 = vpop.f32.mrb[0].mxu0
    %v3723 = vadd.f32 %v3395, %v3722
    %v3724 = vpop.f32.mrb[0].mxu0
    %3725 = vmatprep.mubr.bf16.mxu0 0
    %3726 = vmatmul.mubr.bf16.gmra.mrb[0].mxu0 %v3263
    %v3727 = vpop.f32.mrb[0].mxu0
    %v3728 = vadd.f32 %v3395, %v3727
    %v3729 = vpop.f32.mrb[0].mxu0
    %v3730 = vpop.f32.mrb[0].mxu0
    %v3731 = vadd.f32 %v3395, %v3730
    %v3732 = vpop.f32.mrb[0].mxu0
    %3733 = vdwg.mxu0
    %v3766 = vunpack.c.l.b16 %v3096
    %v3767 = vunpack.c.h.b16 %v3096
    %v3768 = vunpack.c.l.b16 %v3097
    %v3769 = vunpack.c.l.b16 %v3098
    %v3770 = vunpack.c.h.b16 %v3098
    %v3771 = vunpack.c.l.b16 %v3099
    %v3772 = vunpack.c.l.b16 %v3100
    %v3773 = vunpack.c.h.b16 %v3100
    %v3774 = vunpack.c.l.b16 %v3101
    %v3775 = vunpack.c.l.b16 %v3102
    %v3776 = vunpack.c.h.b16 %v3102
    %v3777 = vunpack.c.l.b16 %v3103
    %v3778 = vunpack.c.l.b16 %v3104
    %v3779 = vunpack.c.h.b16 %v3104
    %v3780 = vunpack.c.l.b16 %v3105
    %v3781 = vunpack.c.l.b16 %v3106
    %v3782 = vunpack.c.h.b16 %v3106
    %v3783 = vunpack.c.l.b16 %v3107
    %v3784 = vunpack.c.l.b16 %v3108
    %v3785 = vunpack.c.h.b16 %v3108
    %v3786 = vunpack.c.l.b16 %v3109
    %v3787 = vunpack.c.l.b16 %v3110
    %v3788 = vunpack.c.h.b16 %v3110
    %v3789 = vunpack.c.l.b16 %v3111
    %v3790 = vunpack.c.l.b16 %v3112
    %v3791 = vunpack.c.h.b16 %v3112
    %v3792 = vunpack.c.l.b16 %v3113
    %v3793 = vunpack.c.l.b16 %v3114
    %v3794 = vunpack.c.h.b16 %v3114
    %v3795 = vunpack.c.l.b16 %v3115
    %v3796 = vunpack.c.l.b16 %v3116
    %v3797 = vunpack.c.h.b16 %v3116
    %v3798 = vunpack.c.l.b16 %v3117
    %v3799 = vunpack.c.l.b16 %v3118
    %v3800 = vunpack.c.h.b16 %v3118
    %v3801 = vunpack.c.l.b16 %v3119
    %v3802 = vunpack.c.l.b16 %v3120
    %v3803 = vunpack.c.h.b16 %v3120
    %v3804 = vunpack.c.l.b16 %v3121
    %v3805 = vunpack.c.l.b16 %v3122
    %v3806 = vunpack.c.h.b16 %v3122
    %v3807 = vunpack.c.l.b16 %v3123
    %v3808 = vunpack.c.l.b16 %v3124
    %v3809 = vunpack.c.h.b16 %v3124
    %v3810 = vunpack.c.l.b16 %v3125
    %v3811 = vunpack.c.l.b16 %v3126
    %v3812 = vunpack.c.h.b16 %v3126
    %v3813 = vunpack.c.l.b16 %v3127
    %v3814 = vpack.c.b16 %v3769, %v3766
    %v3815 = vpack.c.b16 %v3770, %v3767
    %v3816 = vpack.c.b16 %v3771, %v3768
    %v3817 = vpack.c.b16 %v3775, %v3772
    %v3818 = vpack.c.b16 %v3776, %v3773
    %v3819 = vpack.c.b16 %v3777, %v3774
    %v3820 = vpack.c.b16 %v3781, %v3778
    %v3821 = vpack.c.b16 %v3782, %v3779
    %v3822 = vpack.c.b16 %v3783, %v3780
    %v3823 = vpack.c.b16 %v3787, %v3784
    %v3824 = vpack.c.b16 %v3788, %v3785
    %v3825 = vpack.c.b16 %v3789, %v3786
    %v3826 = vpack.c.b16 %v3793, %v3790
    %v3827 = vpack.c.b16 %v3794, %v3791
    %v3828 = vpack.c.b16 %v3795, %v3792
    %v3829 = vpack.c.b16 %v3799, %v3796
    %v3830 = vpack.c.b16 %v3800, %v3797
    %v3831 = vpack.c.b16 %v3801, %v3798
    %v3832 = vpack.c.b16 %v3805, %v3802
    %v3833 = vpack.c.b16 %v3806, %v3803
    %v3834 = vpack.c.b16 %v3807, %v3804
    %v3835 = vpack.c.b16 %v3811, %v3808
    %v3836 = vpack.c.b16 %v3812, %v3809
    %v3837 = vpack.c.b16 %v3813, %v3810
    %3862 = vmatprep.subr.bf16.mxu0 %v3815
    %3863 = vmatpush1.bf16.msra.mxu0 %v3814
    %3864 = vmatprep.subr.bf16.mxu0 %v3818
    %3865 = vmatpush1.bf16.msra.mxu0 %v3817
    %3866 = vmatprep.subr.bf16.mxu0 %v3821
    %3867 = vmatpush1.bf16.msra.mxu0 %v3820
    %3868 = vmatprep.subr.bf16.mxu0 %v3824
    %3869 = vmatpush1.bf16.msra.mxu0 %v3823
    %3870 = vmatprep.subr.bf16.mxu0 %v3827
    %3871 = vmatpush1.bf16.msra.mxu0 %v3826
    %3872 = vmatprep.subr.bf16.mxu0 %v3830
    %3873 = vmatpush1.bf16.msra.mxu0 %v3829
    %3874 = vmatprep.subr.bf16.mxu0 %v3833
    %3875 = vmatpush1.bf16.msra.mxu0 %v3832
    %3876 = vmatprep.subr.bf16.mxu0 %v3836
    %3877 = vmatpush1.bf16.msra.mxu0 %v3835
    %3878 = vmatprep.subr.bf16.mxu0 0
    %3879 = vmatpush1.bf16.msra.mxu0 0
    %3880 = vmatprep.subr.bf16.mxu0 0
    %3881 = vmatpush1.bf16.msra.mxu0 0
    %3882 = vmatprep.subr.bf16.mxu0 0
    %3883 = vmatpush1.bf16.msra.mxu0 0
    %3884 = vmatprep.subr.bf16.mxu0 0
    %3885 = vmatpush1.bf16.msra.mxu0 0
    %3886 = vmatprep.subr.bf16.mxu0 0
    %3887 = vmatpush1.bf16.msra.mxu0 0
    %3888 = vmatprep.subr.bf16.mxu0 0
    %3889 = vmatpush1.bf16.msra.mxu0 0
    %3890 = vmatprep.subr.bf16.mxu0 0
    %3891 = vmatpush1.bf16.msra.mxu0 0
    %3892 = vmatprep.subr.bf16.mxu0 0
    %3893 = vmatpush1.bf16.msra.mxu0 0
    %3894 = vmatprep.mubr.bf16.mxu0 0
    %3895 = vmatmul.mubr.bf16.gmra.mrb[0].mxu0 %v3361
    %v3896 = vpop.f32.mrb[0].mxu0
    %v3897 = vadd.f32 %v3559, %v3896
    %v3898 = vpop.f32.mrb[0].mxu0
    %v3899 = vadd.f32 %v3561, %v3898
    %v3900 = vpop.f32.mrb[0].mxu0
    %v3901 = vadd.f32 %v3563, %v3900
    %v3902 = vpop.f32.mrb[0].mxu0
    %v3903 = vadd.f32 %v3565, %v3902
    %3904 = vmatprep.mubr.bf16.mxu0 0
    %3905 = vmatmul.mubr.bf16.gmra.mrb[0].mxu0 %v3362
    %v3906 = vpop.f32.mrb[0].mxu0
    %v3907 = vadd.f32 %v3569, %v3906
    %v3908 = vpop.f32.mrb[0].mxu0
    %v3909 = vadd.f32 %v3571, %v3908
    %v3910 = vpop.f32.mrb[0].mxu0
    %v3911 = vadd.f32 %v3573, %v3910
    %v3912 = vpop.f32.mrb[0].mxu0
    %v3913 = vadd.f32 %v3575, %v3912
    %3914 = vmatprep.mubr.bf16.mxu0 0
    %3915 = vmatmul.mubr.bf16.gmra.mrb[0].mxu0 %v3363
    %v3916 = vpop.f32.mrb[0].mxu0
    %v3917 = vadd.f32 %v3579, %v3916
    %v3918 = vpop.f32.mrb[0].mxu0
    %v3919 = vadd.f32 %v3581, %v3918
    %v3920 = vpop.f32.mrb[0].mxu0
    %v3921 = vadd.f32 %v3583, %v3920
    %v3922 = vpop.f32.mrb[0].mxu0
    %v3923 = vadd.f32 %v3585, %v3922
    %3924 = vmatprep.mubr.bf16.mxu0 0
    %3925 = vmatmul.mubr.bf16.gmra.mrb[0].mxu0 %v3364
    %v3926 = vpop.f32.mrb[0].mxu0
    %v3927 = vadd.f32 %v3589, %v3926
    %v3928 = vpop.f32.mrb[0].mxu0
    %v3929 = vadd.f32 %v3591, %v3928
    %v3930 = vpop.f32.mrb[0].mxu0
    %v3931 = vadd.f32 %v3593, %v3930
    %v3932 = vpop.f32.mrb[0].mxu0
    %v3933 = vadd.f32 %v3595, %v3932
    %3934 = vmatprep.mubr.bf16.mxu0 0
    %3935 = vmatmul.mubr.bf16.gmra.mrb[0].mxu0 %v3365
    %v3936 = vpop.f32.mrb[0].mxu0
    %v3937 = vadd.f32 %v3599, %v3936
    %v3938 = vpop.f32.mrb[0].mxu0
    %v3939 = vadd.f32 %v3601, %v3938
    %v3940 = vpop.f32.mrb[0].mxu0
    %v3941 = vadd.f32 %v3603, %v3940
    %v3942 = vpop.f32.mrb[0].mxu0
    %v3943 = vadd.f32 %v3605, %v3942
    %3944 = vmatprep.mubr.bf16.mxu0 0
    %3945 = vmatmul.mubr.bf16.gmra.mrb[0].mxu0 %v3366
    %v3946 = vpop.f32.mrb[0].mxu0
    %v3947 = vadd.f32 %v3609, %v3946
    %v3948 = vpop.f32.mrb[0].mxu0
    %v3949 = vadd.f32 %v3611, %v3948
    %v3950 = vpop.f32.mrb[0].mxu0
    %v3951 = vadd.f32 %v3613, %v3950
    %v3952 = vpop.f32.mrb[0].mxu0
    %v3953 = vadd.f32 %v3615, %v3952
    %3954 = vmatprep.mubr.bf16.mxu0 0
    %3955 = vmatmul.mubr.bf16.gmra.mrb[0].mxu0 %v3367
    %v3956 = vpop.f32.mrb[0].mxu0
    %v3957 = vadd.f32 %v3619, %v3956
    %v3958 = vpop.f32.mrb[0].mxu0
    %v3959 = vadd.f32 %v3621, %v3958
    %v3960 = vpop.f32.mrb[0].mxu0
    %v3961 = vadd.f32 %v3623, %v3960
    %v3962 = vpop.f32.mrb[0].mxu0
    %v3963 = vadd.f32 %v3625, %v3962
    %3964 = vmatprep.mubr.bf16.mxu0 0
    %3965 = vmatmul.mubr.bf16.gmra.mrb[0].mxu0 %v3368
    %v3966 = vpop.f32.mrb[0].mxu0
    %v3967 = vadd.f32 %v3629, %v3966
    %v3968 = vpop.f32.mrb[0].mxu0
    %v3969 = vadd.f32 %v3631, %v3968
    %v3970 = vpop.f32.mrb[0].mxu0
    %v3971 = vadd.f32 %v3633, %v3970
    %v3972 = vpop.f32.mrb[0].mxu0
    %v3973 = vadd.f32 %v3635, %v3972
    %3974 = vdwg.mxu0
    %3975 = vmatprep.subr.bf16.mxu0 0
    %3976 = vmatpush1.bf16.msra.mxu0 %v3816
    %3977 = vmatprep.subr.bf16.mxu0 0
    %3978 = vmatpush1.bf16.msra.mxu0 %v3819
    %3979 = vmatprep.subr.bf16.mxu0 0
    %3980 = vmatpush1.bf16.msra.mxu0 %v3822
    %3981 = vmatprep.subr.bf16.mxu0 0
    %3982 = vmatpush1.bf16.msra.mxu0 %v3825
    %3983 = vmatprep.subr.bf16.mxu0 0
    %3984 = vmatpush1.bf16.msra.mxu0 %v3828
    %3985 = vmatprep.subr.bf16.mxu0 0
    %3986 = vmatpush1.bf16.msra.mxu0 %v3831
    %3987 = vmatprep.subr.bf16.mxu0 0
    %3988 = vmatpush1.bf16.msra.mxu0 %v3834
    %3989 = vmatprep.subr.bf16.mxu0 0
    %3990 = vmatpush1.bf16.msra.mxu0 %v3837
    %3991 = vmatprep.subr.bf16.mxu0 0
    %3992 = vmatpush1.bf16.msra.mxu0 0
    %3993 = vmatprep.subr.bf16.mxu0 0
    %3994 = vmatpush1.bf16.msra.mxu0 0
    %3995 = vmatprep.subr.bf16.mxu0 0
    %3996 = vmatpush1.bf16.msra.mxu0 0
    %3997 = vmatprep.subr.bf16.mxu0 0
    %3998 = vmatpush1.bf16.msra.mxu0 0
    %3999 = vmatprep.subr.bf16.mxu0 0
    %4000 = vmatpush1.bf16.msra.mxu0 0
    %4001 = vmatprep.subr.bf16.mxu0 0
    %4002 = vmatpush1.bf16.msra.mxu0 0
    %4003 = vmatprep.subr.bf16.mxu0 0
    %4004 = vmatpush1.bf16.msra.mxu0 0
    %4005 = vmatprep.subr.bf16.mxu0 0
    %4006 = vmatpush1.bf16.msra.mxu0 0
    %4007 = vmatprep.mubr.bf16.mxu0 0
    %4008 = vmatmul.mubr.bf16.gmra.mrb[0].mxu0 %v3361
    %v4009 = vpop.f32.mrb[0].mxu0
    %v4010 = vadd.f32 %v3672, %v4009
    %v4011 = vpop.f32.mrb[0].mxu0
    %v4012 = vpop.f32.mrb[0].mxu0
    %v4013 = vadd.f32 %v3675, %v4012
    %v4014 = vpop.f32.mrb[0].mxu0
    %4015 = vmatprep.mubr.bf16.mxu0 0
    %4016 = vmatmul.mubr.bf16.gmra.mrb[0].mxu0 %v3362
    %v4017 = vpop.f32.mrb[0].mxu0
    %v4018 = vadd.f32 %v3680, %v4017
    %v4019 = vpop.f32.mrb[0].mxu0
    %v4020 = vpop.f32.mrb[0].mxu0
    %v4021 = vadd.f32 %v3683, %v4020
    %v4022 = vpop.f32.mrb[0].mxu0
    %4023 = vmatprep.mubr.bf16.mxu0 0
    %4024 = vmatmul.mubr.bf16.gmra.mrb[0].mxu0 %v3363
    %v4025 = vpop.f32.mrb[0].mxu0
    %v4026 = vadd.f32 %v3688, %v4025
    %v4027 = vpop.f32.mrb[0].mxu0
    %v4028 = vpop.f32.mrb[0].mxu0
    %v4029 = vadd.f32 %v3691, %v4028
    %v4030 = vpop.f32.mrb[0].mxu0
    %4031 = vmatprep.mubr.bf16.mxu0 0
    %4032 = vmatmul.mubr.bf16.gmra.mrb[0].mxu0 %v3364
    %v4033 = vpop.f32.mrb[0].mxu0
    %v4034 = vadd.f32 %v3696, %v4033
    %v4035 = vpop.f32.mrb[0].mxu0
    %v4036 = vpop.f32.mrb[0].mxu0
    %v4037 = vadd.f32 %v3699, %v4036
    %v4038 = vpop.f32.mrb[0].mxu0
    %4039 = vmatprep.mubr.bf16.mxu0 0
    %4040 = vmatmul.mubr.bf16.gmra.mrb[0].mxu0 %v3365
    %v4041 = vpop.f32.mrb[0].mxu0
    %v4042 = vadd.f32 %v3704, %v4041
    %v4043 = vpop.f32.mrb[0].mxu0
    %v4044 = vpop.f32.mrb[0].mxu0
    %v4045 = vadd.f32 %v3707, %v4044
    %v4046 = vpop.f32.mrb[0].mxu0
    %4047 = vmatprep.mubr.bf16.mxu0 0
    %4048 = vmatmul.mubr.bf16.gmra.mrb[0].mxu0 %v3366
    %v4049 = vpop.f32.mrb[0].mxu0
    %v4050 = vadd.f32 %v3712, %v4049
    %v4051 = vpop.f32.mrb[0].mxu0
    %v4052 = vpop.f32.mrb[0].mxu0
    %v4053 = vadd.f32 %v3715, %v4052
    %v4054 = vpop.f32.mrb[0].mxu0
    %4055 = vmatprep.mubr.bf16.mxu0 0
    %4056 = vmatmul.mubr.bf16.gmra.mrb[0].mxu0 %v3367
    %v4057 = vpop.f32.mrb[0].mxu0
    %v4058 = vadd.f32 %v3720, %v4057
    %v4059 = vpop.f32.mrb[0].mxu0
    %v4060 = vpop.f32.mrb[0].mxu0
    %v4061 = vadd.f32 %v3723, %v4060
    %v4062 = vpop.f32.mrb[0].mxu0
    %4063 = vmatprep.mubr.bf16.mxu0 0
    %4064 = vmatmul.mubr.bf16.gmra.mrb[0].mxu0 %v3368
    %v4065 = vpop.f32.mrb[0].mxu0
    %v4066 = vadd.f32 %v3728, %v4065
    %v4067 = vpop.f32.mrb[0].mxu0
    %v4068 = vpop.f32.mrb[0].mxu0
    %v4069 = vadd.f32 %v3731, %v4068
    %v4070 = vpop.f32.mrb[0].mxu0
    %4071 = vdwg.mxu0
    %v4072 = vpack.c.bf16 %v3901, %v3897
    %v4073 = vpack.c.bf16 %v3903, %v3899
    %v4074 = vpack.c.bf16 %v4013, %v4010
    %v4075 = vpack.c.bf16 %v3911, %v3907
    %v4076 = vpack.c.bf16 %v3913, %v3909
    %v4077 = vpack.c.bf16 %v4021, %v4018
    %v4078 = vpack.c.bf16 %v3921, %v3917
    %v4079 = vpack.c.bf16 %v3923, %v3919
    %v4080 = vpack.c.bf16 %v4029, %v4026
    %v4081 = vpack.c.bf16 %v3931, %v3927
    %v4082 = vpack.c.bf16 %v3933, %v3929
    %v4083 = vpack.c.bf16 %v4037, %v4034
    %v4084 = vpack.c.bf16 %v3941, %v3937
    %v4085 = vpack.c.bf16 %v3943, %v3939
    %v4086 = vpack.c.bf16 %v4045, %v4042
    %v4087 = vpack.c.bf16 %v3951, %v3947
    %v4088 = vpack.c.bf16 %v3953, %v3949
    %v4089 = vpack.c.bf16 %v4053, %v4050
    %v4090 = vpack.c.bf16 %v3961, %v3957
    %v4091 = vpack.c.bf16 %v3963, %v3959
    %v4092 = vpack.c.bf16 %v4061, %v4058
    %v4093 = vpack.c.bf16 %v3971, %v3967
    %v4094 = vpack.c.bf16 %v3973, %v3969
    %v4095 = vpack.c.bf16 %v4069, %v4066
    %v4192 = vunpack.c.l.b16 %v3160
    %v4193 = vunpack.c.h.b16 %v3160
    %v4194 = vunpack.c.l.b16 %v3161
    %v4195 = vunpack.c.l.b16 %v3162
    %v4196 = vunpack.c.h.b16 %v3162
    %v4197 = vunpack.c.l.b16 %v3163
    %v4198 = vunpack.c.l.b16 %v3164
    %v4199 = vunpack.c.h.b16 %v3164
    %v4200 = vunpack.c.l.b16 %v3165
    %v4201 = vunpack.c.l.b16 %v3166
    %v4202 = vunpack.c.h.b16 %v3166
    %v4203 = vunpack.c.l.b16 %v3167
    %v4204 = vunpack.c.l.b16 %v3168
    %v4205 = vunpack.c.h.b16 %v3168
    %v4206 = vunpack.c.l.b16 %v3169
    %v4207 = vunpack.c.l.b16 %v3170
    %v4208 = vunpack.c.h.b16 %v3170
    %v4209 = vunpack.c.l.b16 %v3171
    %v4210 = vunpack.c.l.b16 %v3172
    %v4211 = vunpack.c.h.b16 %v3172
    %v4212 = vunpack.c.l.b16 %v3173
    %v4213 = vunpack.c.l.b16 %v3174
    %v4214 = vunpack.c.h.b16 %v3174
    %v4215 = vunpack.c.l.b16 %v3175
    %v4216 = vunpack.c.l.b16 %v3176
    %v4217 = vunpack.c.h.b16 %v3176
    %v4218 = vunpack.c.l.b16 %v3177
    %v4219 = vunpack.c.l.b16 %v3178
    %v4220 = vunpack.c.h.b16 %v3178
    %v4221 = vunpack.c.l.b16 %v3179
    %v4222 = vunpack.c.l.b16 %v3180
    %v4223 = vunpack.c.h.b16 %v3180
    %v4224 = vunpack.c.l.b16 %v3181
    %v4225 = vunpack.c.l.b16 %v3182
    %v4226 = vunpack.c.h.b16 %v3182
    %v4227 = vunpack.c.l.b16 %v3183
    %v4228 = vunpack.c.l.b16 %v3184
    %v4229 = vunpack.c.h.b16 %v3184
    %v4230 = vunpack.c.l.b16 %v3185
    %v4231 = vunpack.c.l.b16 %v3186
    %v4232 = vunpack.c.h.b16 %v3186
    %v4233 = vunpack.c.l.b16 %v3187
    %v4234 = vunpack.c.l.b16 %v3188
    %v4235 = vunpack.c.h.b16 %v3188
    %v4236 = vunpack.c.l.b16 %v3189
    %v4237 = vunpack.c.l.b16 %v3190
    %v4238 = vunpack.c.h.b16 %v3190
    %v4239 = vunpack.c.l.b16 %v3191
    %v4240 = vunpack.c.l.b16 %v3192
    %v4241 = vunpack.c.h.b16 %v3192
    %v4242 = vunpack.c.l.b16 %v3193
    %v4243 = vunpack.c.l.b16 %v3194
    %v4244 = vunpack.c.h.b16 %v3194
    %v4245 = vunpack.c.l.b16 %v3195
    %v4246 = vunpack.c.l.b16 %v3196
    %v4247 = vunpack.c.h.b16 %v3196
    %v4248 = vunpack.c.l.b16 %v3197
    %v4249 = vunpack.c.l.b16 %v3198
    %v4250 = vunpack.c.h.b16 %v3198
    %v4251 = vunpack.c.l.b16 %v3199
    %v4252 = vunpack.c.l.b16 %v3200
    %v4253 = vunpack.c.h.b16 %v3200
    %v4254 = vunpack.c.l.b16 %v3201
    %v4255 = vunpack.c.l.b16 %v3202
    %v4256 = vunpack.c.h.b16 %v3202
    %v4257 = vunpack.c.l.b16 %v3203
    %v4258 = vunpack.c.l.b16 %v3204
    %v4259 = vunpack.c.h.b16 %v3204
    %v4260 = vunpack.c.l.b16 %v3205
    %v4261 = vunpack.c.l.b16 %v3206
    %v4262 = vunpack.c.h.b16 %v3206
    %v4263 = vunpack.c.l.b16 %v3207
    %v4264 = vunpack.c.l.b16 %v3208
    %v4265 = vunpack.c.h.b16 %v3208
    %v4266 = vunpack.c.l.b16 %v3209
    %v4267 = vunpack.c.l.b16 %v3210
    %v4268 = vunpack.c.h.b16 %v3210
    %v4269 = vunpack.c.l.b16 %v3211
    %v4270 = vunpack.c.l.b16 %v3212
    %v4271 = vunpack.c.h.b16 %v3212
    %v4272 = vunpack.c.l.b16 %v3213
    %v4273 = vunpack.c.l.b16 %v3214
    %v4274 = vunpack.c.h.b16 %v3214
    %v4275 = vunpack.c.l.b16 %v3215
    %v4276 = vunpack.c.l.b16 %v3216
    %v4277 = vunpack.c.h.b16 %v3216
    %v4278 = vunpack.c.l.b16 %v3217
    %v4279 = vunpack.c.l.b16 %v3218
    %v4280 = vunpack.c.h.b16 %v3218
    %v4281 = vunpack.c.l.b16 %v3219
    %v4282 = vunpack.c.l.b16 %v3220
    %v4283 = vunpack.c.h.b16 %v3220
    %v4284 = vunpack.c.l.b16 %v3221
    %v4285 = vunpack.c.l.b16 %v3222
    %v4286 = vunpack.c.h.b16 %v3222
    %v4287 = vunpack.c.l.b16 %v3223
    %v4288 = vunpack.c.l.b16 %v3224
    %v4289 = vunpack.c.h.b16 %v3224
    %v4290 = vunpack.c.l.b16 %v3225
    %v4291 = vunpack.c.l.b16 %v3226
    %v4292 = vunpack.c.h.b16 %v3226
    %v4293 = vunpack.c.l.b16 %v3227
    %v4294 = vunpack.c.l.b16 %v3228
    %v4295 = vunpack.c.h.b16 %v3228
    %v4296 = vunpack.c.l.b16 %v3229
    %v4297 = vunpack.c.l.b16 %v3230
    %v4298 = vunpack.c.h.b16 %v3230
    %v4299 = vunpack.c.l.b16 %v3231
    %v4300 = vunpack.c.l.b16 %v3232
    %v4301 = vunpack.c.h.b16 %v3232
    %v4302 = vunpack.c.l.b16 %v3233
    %v4303 = vunpack.c.l.b16 %v3234
    %v4304 = vunpack.c.h.b16 %v3234
    %v4305 = vunpack.c.l.b16 %v3235
    %v4306 = vunpack.c.l.b16 %v3236
    %v4307 = vunpack.c.h.b16 %v3236
    %v4308 = vunpack.c.l.b16 %v3237
    %v4309 = vunpack.c.l.b16 %v3238
    %v4310 = vunpack.c.h.b16 %v3238
    %v4311 = vunpack.c.l.b16 %v3239
    %v4312 = vunpack.c.l.b16 %v3240
    %v4313 = vunpack.c.h.b16 %v3240
    %v4314 = vunpack.c.l.b16 %v3241
    %v4315 = vunpack.c.l.b16 %v3242
    %v4316 = vunpack.c.h.b16 %v3242
    %v4317 = vunpack.c.l.b16 %v3243
    %v4318 = vunpack.c.l.b16 %v3244
    %v4319 = vunpack.c.h.b16 %v3244
    %v4320 = vunpack.c.l.b16 %v3245
    %v4321 = vunpack.c.l.b16 %v3246
    %v4322 = vunpack.c.h.b16 %v3246
    %v4323 = vunpack.c.l.b16 %v3247
    %v4324 = vunpack.c.l.b16 %v3248
    %v4325 = vunpack.c.h.b16 %v3248
    %v4326 = vunpack.c.l.b16 %v3249
    %v4327 = vunpack.c.l.b16 %v3250
    %v4328 = vunpack.c.h.b16 %v3250
    %v4329 = vunpack.c.l.b16 %v3251
    %v4330 = vunpack.c.l.b16 %v3252
    %v4331 = vunpack.c.h.b16 %v3252
    %v4332 = vunpack.c.l.b16 %v3253
    %v4333 = vunpack.c.l.b16 %v3254
    %v4334 = vunpack.c.h.b16 %v3254
    %v4335 = vunpack.c.l.b16 %v3255
    %v4336 = vpack.c.b16 %v4195, %v4192
    %v4337 = vpack.c.b16 %v4196, %v4193
    %v4338 = vpack.c.b16 %v4197, %v4194
    %v4339 = vpack.c.b16 %v4201, %v4198
    %v4340 = vpack.c.b16 %v4202, %v4199
    %v4341 = vpack.c.b16 %v4203, %v4200
    %v4342 = vpack.c.b16 %v4207, %v4204
    %v4343 = vpack.c.b16 %v4208, %v4205
    %v4344 = vpack.c.b16 %v4209, %v4206
    %v4345 = vpack.c.b16 %v4213, %v4210
    %v4346 = vpack.c.b16 %v4214, %v4211
    %v4347 = vpack.c.b16 %v4215, %v4212
    %v4348 = vpack.c.b16 %v4219, %v4216
    %v4349 = vpack.c.b16 %v4220, %v4217
    %v4350 = vpack.c.b16 %v4221, %v4218
    %v4351 = vpack.c.b16 %v4225, %v4222
    %v4352 = vpack.c.b16 %v4226, %v4223
    %v4353 = vpack.c.b16 %v4227, %v4224
    %v4354 = vpack.c.b16 %v4231, %v4228
    %v4355 = vpack.c.b16 %v4232, %v4229
    %v4356 = vpack.c.b16 %v4233, %v4230
    %v4357 = vpack.c.b16 %v4237, %v4234
    %v4358 = vpack.c.b16 %v4238, %v4235
    %v4359 = vpack.c.b16 %v4239, %v4236
    %v4360 = vpack.c.b16 %v4243, %v4240
    %v4361 = vpack.c.b16 %v4244, %v4241
    %v4362 = vpack.c.b16 %v4245, %v4242
    %v4363 = vpack.c.b16 %v4249, %v4246
    %v4364 = vpack.c.b16 %v4250, %v4247
    %v4365 = vpack.c.b16 %v4251, %v4248
    %v4366 = vpack.c.b16 %v4255, %v4252
    %v4367 = vpack.c.b16 %v4256, %v4253
    %v4368 = vpack.c.b16 %v4257, %v4254
    %v4369 = vpack.c.b16 %v4261, %v4258
    %v4370 = vpack.c.b16 %v4262, %v4259
    %v4371 = vpack.c.b16 %v4263, %v4260
    %v4372 = vpack.c.b16 %v4267, %v4264
    %v4373 = vpack.c.b16 %v4268, %v4265
    %v4374 = vpack.c.b16 %v4269, %v4266
    %v4375 = vpack.c.b16 %v4273, %v4270
    %v4376 = vpack.c.b16 %v4274, %v4271
    %v4377 = vpack.c.b16 %v4275, %v4272
    %v4378 = vpack.c.b16 %v4279, %v4276
    %v4379 = vpack.c.b16 %v4280, %v4277
    %v4380 = vpack.c.b16 %v4281, %v4278
    %v4381 = vpack.c.b16 %v4285, %v4282
    %v4382 = vpack.c.b16 %v4286, %v4283
    %v4383 = vpack.c.b16 %v4287, %v4284
    %v4384 = vpack.c.b16 %v4291, %v4288
    %v4385 = vpack.c.b16 %v4292, %v4289
    %v4386 = vpack.c.b16 %v4293, %v4290
    %v4387 = vpack.c.b16 %v4297, %v4294
    %v4388 = vpack.c.b16 %v4298, %v4295
    %v4389 = vpack.c.b16 %v4299, %v4296
    %v4390 = vpack.c.b16 %v4303, %v4300
    %v4391 = vpack.c.b16 %v4304, %v4301
    %v4392 = vpack.c.b16 %v4305, %v4302
    %v4393 = vpack.c.b16 %v4309, %v4306
    %v4394 = vpack.c.b16 %v4310, %v4307
    %v4395 = vpack.c.b16 %v4311, %v4308
    %v4396 = vpack.c.b16 %v4315, %v4312
    %v4397 = vpack.c.b16 %v4316, %v4313
    %v4398 = vpack.c.b16 %v4317, %v4314
    %v4399 = vpack.c.b16 %v4321, %v4318
    %v4400 = vpack.c.b16 %v4322, %v4319
    %v4401 = vpack.c.b16 %v4323, %v4320
    %v4402 = vpack.c.b16 %v4327, %v4324
    %v4403 = vpack.c.b16 %v4328, %v4325
    %v4404 = vpack.c.b16 %v4329, %v4326
    %v4405 = vpack.c.b16 %v4333, %v4330
    %v4406 = vpack.c.b16 %v4334, %v4331
    %v4407 = vpack.c.b16 %v4335, %v4332
    %4480 = vmatprep.subr.bf16.mxu0 %v4337
    %4481 = vmatpush1.bf16.msra.mxu0 %v4336
    %4482 = vmatprep.subr.bf16.mxu0 %v4340
    %4483 = vmatpush1.bf16.msra.mxu0 %v4339
    %4484 = vmatprep.subr.bf16.mxu0 %v4343
    %4485 = vmatpush1.bf16.msra.mxu0 %v4342
    %4486 = vmatprep.subr.bf16.mxu0 %v4346
    %4487 = vmatpush1.bf16.msra.mxu0 %v4345
    %4488 = vmatprep.subr.bf16.mxu0 %v4349
    %4489 = vmatpush1.bf16.msra.mxu0 %v4348
    %4490 = vmatprep.subr.bf16.mxu0 %v4352
    %4491 = vmatpush1.bf16.msra.mxu0 %v4351
    %4492 = vmatprep.subr.bf16.mxu0 %v4355
    %4493 = vmatpush1.bf16.msra.mxu0 %v4354
    %4494 = vmatprep.subr.bf16.mxu0 %v4358
    %4495 = vmatpush1.bf16.msra.mxu0 %v4357
    %4496 = vmatprep.subr.bf16.mxu0 %v4361
    %4497 = vmatpush1.bf16.msra.mxu0 %v4360
    %4498 = vmatprep.subr.bf16.mxu0 %v4364
    %4499 = vmatpush1.bf16.msra.mxu0 %v4363
    %4500 = vmatprep.subr.bf16.mxu0 %v4367
    %4501 = vmatpush1.bf16.msra.mxu0 %v4366
    %4502 = vmatprep.subr.bf16.mxu0 %v4370
    %4503 = vmatpush1.bf16.msra.mxu0 %v4369
    %4504 = vmatprep.subr.bf16.mxu0 %v4373
    %4505 = vmatpush1.bf16.msra.mxu0 %v4372
    %4506 = vmatprep.subr.bf16.mxu0 %v4376
    %4507 = vmatpush1.bf16.msra.mxu0 %v4375
    %4508 = vmatprep.subr.bf16.mxu0 %v4379
    %4509 = vmatpush1.bf16.msra.mxu0 %v4378
    %4510 = vmatprep.subr.bf16.mxu0 %v4382
    %4511 = vmatpush1.bf16.msra.mxu0 %v4381
    %4512 = vmatprep.mubr.bf16.mxu0 %v4073
    %4513 = vmatmul.mubr.bf16.gmra.mrb[0].mxu0 %v4072
    %v4514 = vpop.f32.mrb[0].mxu0
    %v4515 = vadd.f32 0.0, %v4514
    %v4516 = vpop.f32.mrb[0].mxu0
    %v4517 = vadd.f32 0.0, %v4516
    %v4518 = vpop.f32.mrb[0].mxu0
    %v4519 = vadd.f32 0.0, %v4518
    %v4520 = vpop.f32.mrb[0].mxu0
    %v4521 = vadd.f32 0.0, %v4520
    %4522 = vmatprep.mubr.bf16.mxu0 %v4076
    %4523 = vmatmul.mubr.bf16.gmra.mrb[0].mxu0 %v4075
    %v4524 = vpop.f32.mrb[0].mxu0
    %v4525 = vadd.f32 0.0, %v4524
    %v4526 = vpop.f32.mrb[0].mxu0
    %v4527 = vadd.f32 0.0, %v4526
    %v4528 = vpop.f32.mrb[0].mxu0
    %v4529 = vadd.f32 0.0, %v4528
    %v4530 = vpop.f32.mrb[0].mxu0
    %v4531 = vadd.f32 0.0, %v4530
    %4532 = vmatprep.mubr.bf16.mxu0 %v4079
    %4533 = vmatmul.mubr.bf16.gmra.mrb[0].mxu0 %v4078
    %v4534 = vpop.f32.mrb[0].mxu0
    %v4535 = vadd.f32 0.0, %v4534
    %v4536 = vpop.f32.mrb[0].mxu0
    %v4537 = vadd.f32 0.0, %v4536
    %v4538 = vpop.f32.mrb[0].mxu0
    %v4539 = vadd.f32 0.0, %v4538
    %v4540 = vpop.f32.mrb[0].mxu0
    %v4541 = vadd.f32 0.0, %v4540
    %4542 = vmatprep.mubr.bf16.mxu0 %v4082
    %4543 = vmatmul.mubr.bf16.gmra.mrb[0].mxu0 %v4081
    %v4544 = vpop.f32.mrb[0].mxu0
    %v4545 = vadd.f32 0.0, %v4544
    %v4546 = vpop.f32.mrb[0].mxu0
    %v4547 = vadd.f32 0.0, %v4546
    %v4548 = vpop.f32.mrb[0].mxu0
    %v4549 = vadd.f32 0.0, %v4548
    %v4550 = vpop.f32.mrb[0].mxu0
    %v4551 = vadd.f32 0.0, %v4550
    %4552 = vmatprep.mubr.bf16.mxu0 %v4085
    %4553 = vmatmul.mubr.bf16.gmra.mrb[0].mxu0 %v4084
    %v4554 = vpop.f32.mrb[0].mxu0
    %v4555 = vadd.f32 0.0, %v4554
    %v4556 = vpop.f32.mrb[0].mxu0
    %v4557 = vadd.f32 0.0, %v4556
    %v4558 = vpop.f32.mrb[0].mxu0
    %v4559 = vadd.f32 0.0, %v4558
    %v4560 = vpop.f32.mrb[0].mxu0
    %v4561 = vadd.f32 0.0, %v4560
    %4562 = vmatprep.mubr.bf16.mxu0 %v4088
    %4563 = vmatmul.mubr.bf16.gmra.mrb[0].mxu0 %v4087
    %v4564 = vpop.f32.mrb[0].mxu0
    %v4565 = vadd.f32 0.0, %v4564
    %v4566 = vpop.f32.mrb[0].mxu0
    %v4567 = vadd.f32 0.0, %v4566
    %v4568 = vpop.f32.mrb[0].mxu0
    %v4569 = vadd.f32 0.0, %v4568
    %v4570 = vpop.f32.mrb[0].mxu0
    %v4571 = vadd.f32 0.0, %v4570
    %4572 = vmatprep.mubr.bf16.mxu0 %v4091
    %4573 = vmatmul.mubr.bf16.gmra.mrb[0].mxu0 %v4090
    %v4574 = vpop.f32.mrb[0].mxu0
    %v4575 = vadd.f32 0.0, %v4574
    %v4576 = vpop.f32.mrb[0].mxu0
    %v4577 = vadd.f32 0.0, %v4576
    %v4578 = vpop.f32.mrb[0].mxu0
    %v4579 = vadd.f32 0.0, %v4578
    %v4580 = vpop.f32.mrb[0].mxu0
    %v4581 = vadd.f32 0.0, %v4580
    %4582 = vmatprep.mubr.bf16.mxu0 %v4094
    %4583 = vmatmul.mubr.bf16.gmra.mrb[0].mxu0 %v4093
    %v4584 = vpop.f32.mrb[0].mxu0
    %v4585 = vadd.f32 0.0, %v4584
    %v4586 = vpop.f32.mrb[0].mxu0
    %v4587 = vadd.f32 0.0, %v4586
    %v4588 = vpop.f32.mrb[0].mxu0
    %v4589 = vadd.f32 0.0, %v4588
    %v4590 = vpop.f32.mrb[0].mxu0
    %v4591 = vadd.f32 0.0, %v4590
    %4592 = vdwg.mxu0
    %4593 = vmatprep.subr.bf16.mxu0 %v4385
    %4594 = vmatpush1.bf16.msra.mxu0 %v4384
    %4595 = vmatprep.subr.bf16.mxu0 %v4388
    %4596 = vmatpush1.bf16.msra.mxu0 %v4387
    %4597 = vmatprep.subr.bf16.mxu0 %v4391
    %4598 = vmatpush1.bf16.msra.mxu0 %v4390
    %4599 = vmatprep.subr.bf16.mxu0 %v4394
    %4600 = vmatpush1.bf16.msra.mxu0 %v4393
    %4601 = vmatprep.subr.bf16.mxu0 %v4397
    %4602 = vmatpush1.bf16.msra.mxu0 %v4396
    %4603 = vmatprep.subr.bf16.mxu0 %v4400
    %4604 = vmatpush1.bf16.msra.mxu0 %v4399
    %4605 = vmatprep.subr.bf16.mxu0 %v4403
    %4606 = vmatpush1.bf16.msra.mxu0 %v4402
    %4607 = vmatprep.subr.bf16.mxu0 %v4406
    %4608 = vmatpush1.bf16.msra.mxu0 %v4405
    %4609 = vmatprep.subr.bf16.mxu0 0
    %4610 = vmatpush1.bf16.msra.mxu0 0
    %4611 = vmatprep.subr.bf16.mxu0 0
    %4612 = vmatpush1.bf16.msra.mxu0 0
    %4613 = vmatprep.subr.bf16.mxu0 0
    %4614 = vmatpush1.bf16.msra.mxu0 0
    %4615 = vmatprep.subr.bf16.mxu0 0
    %4616 = vmatpush1.bf16.msra.mxu0 0
    %4617 = vmatprep.subr.bf16.mxu0 0
    %4618 = vmatpush1.bf16.msra.mxu0 0
    %4619 = vmatprep.subr.bf16.mxu0 0
    %4620 = vmatpush1.bf16.msra.mxu0 0
    %4621 = vmatprep.subr.bf16.mxu0 0
    %4622 = vmatpush1.bf16.msra.mxu0 0
    %4623 = vmatprep.subr.bf16.mxu0 0
    %4624 = vmatpush1.bf16.msra.mxu0 0
    %4625 = vmatprep.mubr.bf16.mxu0 0
    %4626 = vmatmul.mubr.bf16.gmra.mrb[0].mxu0 %v4074
    %v4627 = vpop.f32.mrb[0].mxu0
    %v4628 = vadd.f32 %v4515, %v4627
    %v4629 = vpop.f32.mrb[0].mxu0
    %v4630 = vadd.f32 %v4517, %v4629
    %v4631 = vpop.f32.mrb[0].mxu0
    %v4632 = vadd.f32 %v4519, %v4631
    %v4633 = vpop.f32.mrb[0].mxu0
    %v4634 = vadd.f32 %v4521, %v4633
    %4635 = vmatprep.mubr.bf16.mxu0 0
    %4636 = vmatmul.mubr.bf16.gmra.mrb[0].mxu0 %v4077
    %v4637 = vpop.f32.mrb[0].mxu0
    %v4638 = vadd.f32 %v4525, %v4637
    %v4639 = vpop.f32.mrb[0].mxu0
    %v4640 = vadd.f32 %v4527, %v4639
    %v4641 = vpop.f32.mrb[0].mxu0
    %v4642 = vadd.f32 %v4529, %v4641
    %v4643 = vpop.f32.mrb[0].mxu0
    %v4644 = vadd.f32 %v4531, %v4643
    %4645 = vmatprep.mubr.bf16.mxu0 0
    %4646 = vmatmul.mubr.bf16.gmra.mrb[0].mxu0 %v4080
    %v4647 = vpop.f32.mrb[0].mxu0
    %v4648 = vadd.f32 %v4535, %v4647
    %v4649 = vpop.f32.mrb[0].mxu0
    %v4650 = vadd.f32 %v4537, %v4649
    %v4651 = vpop.f32.mrb[0].mxu0
    %v4652 = vadd.f32 %v4539, %v4651
    %v4653 = vpop.f32.mrb[0].mxu0
    %v4654 = vadd.f32 %v4541, %v4653
    %4655 = vmatprep.mubr.bf16.mxu0 0
    %4656 = vmatmul.mubr.bf16.gmra.mrb[0].mxu0 %v4083
    %v4657 = vpop.f32.mrb[0].mxu0
    %v4658 = vadd.f32 %v4545, %v4657
    %v4659 = vpop.f32.mrb[0].mxu0
    %v4660 = vadd.f32 %v4547, %v4659
    %v4661 = vpop.f32.mrb[0].mxu0
    %v4662 = vadd.f32 %v4549, %v4661
    %v4663 = vpop.f32.mrb[0].mxu0
    %v4664 = vadd.f32 %v4551, %v4663
    %4665 = vmatprep.mubr.bf16.mxu0 0
    %4666 = vmatmul.mubr.bf16.gmra.mrb[0].mxu0 %v4086
    %v4667 = vpop.f32.mrb[0].mxu0
    %v4668 = vadd.f32 %v4555, %v4667
    %v4669 = vpop.f32.mrb[0].mxu0
    %v4670 = vadd.f32 %v4557, %v4669
    %v4671 = vpop.f32.mrb[0].mxu0
    %v4672 = vadd.f32 %v4559, %v4671
    %v4673 = vpop.f32.mrb[0].mxu0
    %v4674 = vadd.f32 %v4561, %v4673
    %4675 = vmatprep.mubr.bf16.mxu0 0
    %4676 = vmatmul.mubr.bf16.gmra.mrb[0].mxu0 %v4089
    %v4677 = vpop.f32.mrb[0].mxu0
    %v4678 = vadd.f32 %v4565, %v4677
    %v4679 = vpop.f32.mrb[0].mxu0
    %v4680 = vadd.f32 %v4567, %v4679
    %v4681 = vpop.f32.mrb[0].mxu0
    %v4682 = vadd.f32 %v4569, %v4681
    %v4683 = vpop.f32.mrb[0].mxu0
    %v4684 = vadd.f32 %v4571, %v4683
    %4685 = vmatprep.mubr.bf16.mxu0 0
    %4686 = vmatmul.mubr.bf16.gmra.mrb[0].mxu0 %v4092
    %v4687 = vpop.f32.mrb[0].mxu0
    %v4688 = vadd.f32 %v4575, %v4687
    %v4689 = vpop.f32.mrb[0].mxu0
    %v4690 = vadd.f32 %v4577, %v4689
    %v4691 = vpop.f32.mrb[0].mxu0
    %v4692 = vadd.f32 %v4579, %v4691
    %v4693 = vpop.f32.mrb[0].mxu0
    %v4694 = vadd.f32 %v4581, %v4693
    %4695 = vmatprep.mubr.bf16.mxu0 0
    %4696 = vmatmul.mubr.bf16.gmra.mrb[0].mxu0 %v4095
    %v4697 = vpop.f32.mrb[0].mxu0
    %v4698 = vadd.f32 %v4585, %v4697
    %v4699 = vpop.f32.mrb[0].mxu0
    %v4700 = vadd.f32 %v4587, %v4699
    %v4701 = vpop.f32.mrb[0].mxu0
    %v4702 = vadd.f32 %v4589, %v4701
    %v4703 = vpop.f32.mrb[0].mxu0
    %v4704 = vadd.f32 %v4591, %v4703
    %4705 = vdwg.mxu0
    %4706 = vmatprep.subr.bf16.mxu0 0
    %4707 = vmatpush1.bf16.msra.mxu0 %v4338
    %4708 = vmatprep.subr.bf16.mxu0 0
    %4709 = vmatpush1.bf16.msra.mxu0 %v4341
    %4710 = vmatprep.subr.bf16.mxu0 0
    %4711 = vmatpush1.bf16.msra.mxu0 %v4344
    %4712 = vmatprep.subr.bf16.mxu0 0
    %4713 = vmatpush1.bf16.msra.mxu0 %v4347
    %4714 = vmatprep.subr.bf16.mxu0 0
    %4715 = vmatpush1.bf16.msra.mxu0 %v4350
    %4716 = vmatprep.subr.bf16.mxu0 0
    %4717 = vmatpush1.bf16.msra.mxu0 %v4353
    %4718 = vmatprep.subr.bf16.mxu0 0
    %4719 = vmatpush1.bf16.msra.mxu0 %v4356
    %4720 = vmatprep.subr.bf16.mxu0 0
    %4721 = vmatpush1.bf16.msra.mxu0 %v4359
    %4722 = vmatprep.subr.bf16.mxu0 0
    %4723 = vmatpush1.bf16.msra.mxu0 %v4362
    %4724 = vmatprep.subr.bf16.mxu0 0
    %4725 = vmatpush1.bf16.msra.mxu0 %v4365
    %4726 = vmatprep.subr.bf16.mxu0 0
    %4727 = vmatpush1.bf16.msra.mxu0 %v4368
    %4728 = vmatprep.subr.bf16.mxu0 0
    %4729 = vmatpush1.bf16.msra.mxu0 %v4371
    %4730 = vmatprep.subr.bf16.mxu0 0
    %4731 = vmatpush1.bf16.msra.mxu0 %v4374
    %4732 = vmatprep.subr.bf16.mxu0 0
    %4733 = vmatpush1.bf16.msra.mxu0 %v4377
    %4734 = vmatprep.subr.bf16.mxu0 0
    %4735 = vmatpush1.bf16.msra.mxu0 %v4380
    %4736 = vmatprep.subr.bf16.mxu0 0
    %4737 = vmatpush1.bf16.msra.mxu0 %v4383
    %4738 = vmatprep.mubr.bf16.mxu0 %v4073
    %4739 = vmatmul.mubr.bf16.gmra.mrb[0].mxu0 %v4072
    %v4740 = vpop.f32.mrb[0].mxu0
    %v4741 = vadd.f32 0.0, %v4740
    %v4742 = vpop.f32.mrb[0].mxu0
    %v4743 = vpop.f32.mrb[0].mxu0
    %v4744 = vadd.f32 0.0, %v4743
    %v4745 = vpop.f32.mrb[0].mxu0
    %4746 = vmatprep.mubr.bf16.mxu0 %v4076
    %4747 = vmatmul.mubr.bf16.gmra.mrb[0].mxu0 %v4075
    %v4748 = vpop.f32.mrb[0].mxu0
    %v4749 = vadd.f32 0.0, %v4748
    %v4750 = vpop.f32.mrb[0].mxu0
    %v4751 = vpop.f32.mrb[0].mxu0
    %v4752 = vadd.f32 0.0, %v4751
    %v4753 = vpop.f32.mrb[0].mxu0
    %4754 = vmatprep.mubr.bf16.mxu0 %v4079
    %4755 = vmatmul.mubr.bf16.gmra.mrb[0].mxu0 %v4078
    %v4756 = vpop.f32.mrb[0].mxu0
    %v4757 = vadd.f32 0.0, %v4756
    %v4758 = vpop.f32.mrb[0].mxu0
    %v4759 = vpop.f32.mrb[0].mxu0
    %v4760 = vadd.f32 0.0, %v4759
    %v4761 = vpop.f32.mrb[0].mxu0
    %4762 = vmatprep.mubr.bf16.mxu0 %v4082
    %4763 = vmatmul.mubr.bf16.gmra.mrb[0].mxu0 %v4081
    %v4764 = vpop.f32.mrb[0].mxu0
    %v4765 = vadd.f32 0.0, %v4764
    %v4766 = vpop.f32.mrb[0].mxu0
    %v4767 = vpop.f32.mrb[0].mxu0
    %v4768 = vadd.f32 0.0, %v4767
    %v4769 = vpop.f32.mrb[0].mxu0
    %4770 = vmatprep.mubr.bf16.mxu0 %v4085
    %4771 = vmatmul.mubr.bf16.gmra.mrb[0].mxu0 %v4084
    %v4772 = vpop.f32.mrb[0].mxu0
    %v4773 = vadd.f32 0.0, %v4772
    %v4774 = vpop.f32.mrb[0].mxu0
    %v4775 = vpop.f32.mrb[0].mxu0
    %v4776 = vadd.f32 0.0, %v4775
    %v4777 = vpop.f32.mrb[0].mxu0
    %4778 = vmatprep.mubr.bf16.mxu0 %v4088
    %4779 = vmatmul.mubr.bf16.gmra.mrb[0].mxu0 %v4087
    %v4780 = vpop.f32.mrb[0].mxu0
    %v4781 = vadd.f32 0.0, %v4780
    %v4782 = vpop.f32.mrb[0].mxu0
    %v4783 = vpop.f32.mrb[0].mxu0
    %v4784 = vadd.f32 0.0, %v4783
    %v4785 = vpop.f32.mrb[0].mxu0
    %4786 = vmatprep.mubr.bf16.mxu0 %v4091
    %4787 = vmatmul.mubr.bf16.gmra.mrb[0].mxu0 %v4090
    %v4788 = vpop.f32.mrb[0].mxu0
    %v4789 = vadd.f32 0.0, %v4788
    %v4790 = vpop.f32.mrb[0].mxu0
    %v4791 = vpop.f32.mrb[0].mxu0
    %v4792 = vadd.f32 0.0, %v4791
    %v4793 = vpop.f32.mrb[0].mxu0
    %4794 = vmatprep.mubr.bf16.mxu0 %v4094
    %4795 = vmatmul.mubr.bf16.gmra.mrb[0].mxu0 %v4093
    %v4796 = vpop.f32.mrb[0].mxu0
    %v4797 = vadd.f32 0.0, %v4796
    %v4798 = vpop.f32.mrb[0].mxu0
    %v4799 = vpop.f32.mrb[0].mxu0
    %v4800 = vadd.f32 0.0, %v4799
    %v4801 = vpop.f32.mrb[0].mxu0
    %4802 = vdwg.mxu0
    %4803 = vmatprep.subr.bf16.mxu0 0
    %4804 = vmatpush1.bf16.msra.mxu0 %v4386
    %4805 = vmatprep.subr.bf16.mxu0 0
    %4806 = vmatpush1.bf16.msra.mxu0 %v4389
    %4807 = vmatprep.subr.bf16.mxu0 0
    %4808 = vmatpush1.bf16.msra.mxu0 %v4392
    %4809 = vmatprep.subr.bf16.mxu0 0
    %4810 = vmatpush1.bf16.msra.mxu0 %v4395
    %4811 = vmatprep.subr.bf16.mxu0 0
    %4812 = vmatpush1.bf16.msra.mxu0 %v4398
    %4813 = vmatprep.subr.bf16.mxu0 0
    %4814 = vmatpush1.bf16.msra.mxu0 %v4401
    %4815 = vmatprep.subr.bf16.mxu0 0
    %4816 = vmatpush1.bf16.msra.mxu0 %v4404
    %4817 = vmatprep.subr.bf16.mxu0 0
    %4818 = vmatpush1.bf16.msra.mxu0 %v4407
    %4819 = vmatprep.subr.bf16.mxu0 0
    %4820 = vmatpush1.bf16.msra.mxu0 0
    %4821 = vmatprep.subr.bf16.mxu0 0
    %4822 = vmatpush1.bf16.msra.mxu0 0
    %4823 = vmatprep.subr.bf16.mxu0 0
    %4824 = vmatpush1.bf16.msra.mxu0 0
    %4825 = vmatprep.subr.bf16.mxu0 0
    %4826 = vmatpush1.bf16.msra.mxu0 0
    %4827 = vmatprep.subr.bf16.mxu0 0
    %4828 = vmatpush1.bf16.msra.mxu0 0
    %4829 = vmatprep.subr.bf16.mxu0 0
    %4830 = vmatpush1.bf16.msra.mxu0 0
    %4831 = vmatprep.subr.bf16.mxu0 0
    %4832 = vmatpush1.bf16.msra.mxu0 0
    %4833 = vmatprep.subr.bf16.mxu0 0
    %4834 = vmatpush1.bf16.msra.mxu0 0
    %4835 = vmatprep.mubr.bf16.mxu0 0
    %4836 = vmatmul.mubr.bf16.gmra.mrb[0].mxu0 %v4074
    %v4837 = vpop.f32.mrb[0].mxu0
    %v4838 = vadd.f32 %v4741, %v4837
    %v4839 = vpop.f32.mrb[0].mxu0
    %v4840 = vpop.f32.mrb[0].mxu0
    %v4841 = vadd.f32 %v4744, %v4840
    %v4842 = vpop.f32.mrb[0].mxu0
    %4843 = vmatprep.mubr.bf16.mxu0 0
    %4844 = vmatmul.mubr.bf16.gmra.mrb[0].mxu0 %v4077
    %v4845 = vpop.f32.mrb[0].mxu0
    %v4846 = vadd.f32 %v4749, %v4845
    %v4847 = vpop.f32.mrb[0].mxu0
    %v4848 = vpop.f32.mrb[0].mxu0
    %v4849 = vadd.f32 %v4752, %v4848
    %v4850 = vpop.f32.mrb[0].mxu0
    %4851 = vmatprep.mubr.bf16.mxu0 0
    %4852 = vmatmul.mubr.bf16.gmra.mrb[0].mxu0 %v4080
    %v4853 = vpop.f32.mrb[0].mxu0
    %v4854 = vadd.f32 %v4757, %v4853
    %v4855 = vpop.f32.mrb[0].mxu0
    %v4856 = vpop.f32.mrb[0].mxu0
    %v4857 = vadd.f32 %v4760, %v4856
    %v4858 = vpop.f32.mrb[0].mxu0
    %4859 = vmatprep.mubr.bf16.mxu0 0
    %4860 = vmatmul.mubr.bf16.gmra.mrb[0].mxu0 %v4083
    %v4861 = vpop.f32.mrb[0].mxu0
    %v4862 = vadd.f32 %v4765, %v4861
    %v4863 = vpop.f32.mrb[0].mxu0
    %v4864 = vpop.f32.mrb[0].mxu0
    %v4865 = vadd.f32 %v4768, %v4864
    %v4866 = vpop.f32.mrb[0].mxu0
    %4867 = vmatprep.mubr.bf16.mxu0 0
    %4868 = vmatmul.mubr.bf16.gmra.mrb[0].mxu0 %v4086
    %v4869 = vpop.f32.mrb[0].mxu0
    %v4870 = vadd.f32 %v4773, %v4869
    %v4871 = vpop.f32.mrb[0].mxu0
    %v4872 = vpop.f32.mrb[0].mxu0
    %v4873 = vadd.f32 %v4776, %v4872
    %v4874 = vpop.f32.mrb[0].mxu0
    %4875 = vmatprep.mubr.bf16.mxu0 0
    %4876 = vmatmul.mubr.bf16.gmra.mrb[0].mxu0 %v4089
    %v4877 = vpop.f32.mrb[0].mxu0
    %v4878 = vadd.f32 %v4781, %v4877
    %v4879 = vpop.f32.mrb[0].mxu0
    %v4880 = vpop.f32.mrb[0].mxu0
    %v4881 = vadd.f32 %v4784, %v4880
    %v4882 = vpop.f32.mrb[0].mxu0
    %4883 = vmatprep.mubr.bf16.mxu0 0
    %4884 = vmatmul.mubr.bf16.gmra.mrb[0].mxu0 %v4092
    %v4885 = vpop.f32.mrb[0].mxu0
    %v4886 = vadd.f32 %v4789, %v4885
    %v4887 = vpop.f32.mrb[0].mxu0
    %v4888 = vpop.f32.mrb[0].mxu0
    %v4889 = vadd.f32 %v4792, %v4888
    %v4890 = vpop.f32.mrb[0].mxu0
    %4891 = vmatprep.mubr.bf16.mxu0 0
    %4892 = vmatmul.mubr.bf16.gmra.mrb[0].mxu0 %v4095
    %v4893 = vpop.f32.mrb[0].mxu0
    %v4894 = vadd.f32 %v4797, %v4893
    %v4895 = vpop.f32.mrb[0].mxu0
    %v4896 = vpop.f32.mrb[0].mxu0
    %v4897 = vadd.f32 %v4800, %v4896
    %v4898 = vpop.f32.mrb[0].mxu0
    %4899 = vdwg.mxu0
    %v4900 = vpack.c.bf16 %v4632, %v4628
    %v4901 = vpack.c.bf16 %v4634, %v4630
    %v4902 = vpack.c.bf16 %v4841, %v4838
    %v4903 = vpack.c.bf16 %v4642, %v4638
    %v4904 = vpack.c.bf16 %v4644, %v4640
    %v4905 = vpack.c.bf16 %v4849, %v4846
    %v4906 = vpack.c.bf16 %v4652, %v4648
    %v4907 = vpack.c.bf16 %v4654, %v4650
    %v4908 = vpack.c.bf16 %v4857, %v4854
    %v4909 = vpack.c.bf16 %v4662, %v4658
    %v4910 = vpack.c.bf16 %v4664, %v4660
    %v4911 = vpack.c.bf16 %v4865, %v4862
    %v4912 = vpack.c.bf16 %v4672, %v4668
    %v4913 = vpack.c.bf16 %v4674, %v4670
    %v4914 = vpack.c.bf16 %v4873, %v4870
    %v4915 = vpack.c.bf16 %v4682, %v4678
    %v4916 = vpack.c.bf16 %v4684, %v4680
    %v4917 = vpack.c.bf16 %v4881, %v4878
    %v4918 = vpack.c.bf16 %v4692, %v4688
    %v4919 = vpack.c.bf16 %v4694, %v4690
    %v4920 = vpack.c.bf16 %v4889, %v4886
    %v4921 = vpack.c.bf16 %v4702, %v4698
    %v4922 = vpack.c.bf16 %v4704, %v4700
    %v4923 = vpack.c.bf16 %v4897, %v4894
    %4924 = vmatprep.subr.bf16.mxu0 %v4901
    %4925 = vmatpush1.bf16.msra.mxu0 %v4900
    %4926 = vmatprep.subr.bf16.mxu0 %v4904
    %4927 = vmatpush1.bf16.msra.mxu0 %v4903
    %4928 = vmatprep.subr.bf16.mxu0 %v4907
    %4929 = vmatpush1.bf16.msra.mxu0 %v4906
    %4930 = vmatprep.subr.bf16.mxu0 %v4910
    %4931 = vmatpush1.bf16.msra.mxu0 %v4909
    %4932 = vmatprep.subr.bf16.mxu0 %v4913
    %4933 = vmatpush1.bf16.msra.mxu0 %v4912
    %4934 = vmatprep.subr.bf16.mxu0 %v4916
    %4935 = vmatpush1.bf16.msra.mxu0 %v4915
    %4936 = vmatprep.subr.bf16.mxu0 %v4919
    %4937 = vmatpush1.bf16.msra.mxu0 %v4918
    %4938 = vmatprep.subr.bf16.mxu0 %v4922
    %4939 = vmatpush1.bf16.msra.mxu0 %v4921
    %4940 = vmatprep.subr.bf16.mxu0 0
    %4941 = vmatpush1.bf16.msra.mxu0 0
    %4942 = vmatprep.subr.bf16.mxu0 0
    %4943 = vmatpush1.bf16.msra.mxu0 0
    %4944 = vmatprep.subr.bf16.mxu0 0
    %4945 = vmatpush1.bf16.msra.mxu0 0
    %4946 = vmatprep.subr.bf16.mxu0 0
    %4947 = vmatpush1.bf16.msra.mxu0 0
    %4948 = vmatprep.subr.bf16.mxu0 0
    %4949 = vmatpush1.bf16.msra.mxu0 0
    %4950 = vmatprep.subr.bf16.mxu0 0
    %4951 = vmatpush1.bf16.msra.mxu0 0
    %4952 = vmatprep.subr.bf16.mxu0 0
    %4953 = vmatpush1.bf16.msra.mxu0 0
    %4954 = vmatprep.subr.bf16.mxu0 0
    %4955 = vmatpush1.bf16.msra.mxu0 0
    %4956 = vmatprep.mubr.bf16.mxu0 0
    %4957 = vmatmul.mubr.bf16.gmra.mrb[0].mxu0 %v287
    %v4958 = vpop.f32.mrb[0].mxu0
    %v4959 = vadd.f32 %v3559, %v4958
    %v4960 = vpop.f32.mrb[0].mxu0
    %v4961 = vadd.f32 %v3561, %v4960
    %v4962 = vpop.f32.mrb[0].mxu0
    %v4963 = vadd.f32 %v3563, %v4962
    %v4964 = vpop.f32.mrb[0].mxu0
    %v4965 = vadd.f32 %v3565, %v4964
    %4966 = vmatprep.mubr.bf16.mxu0 0
    %4967 = vmatmul.mubr.bf16.gmra.mrb[0].mxu0 %v288
    %v4968 = vpop.f32.mrb[0].mxu0
    %v4969 = vadd.f32 %v3569, %v4968
    %v4970 = vpop.f32.mrb[0].mxu0
    %v4971 = vadd.f32 %v3571, %v4970
    %v4972 = vpop.f32.mrb[0].mxu0
    %v4973 = vadd.f32 %v3573, %v4972
    %v4974 = vpop.f32.mrb[0].mxu0
    %v4975 = vadd.f32 %v3575, %v4974
    %4976 = vmatprep.mubr.bf16.mxu0 0
    %4977 = vmatmul.mubr.bf16.gmra.mrb[0].mxu0 %v289
    %v4978 = vpop.f32.mrb[0].mxu0
    %v4979 = vadd.f32 %v3579, %v4978
    %v4980 = vpop.f32.mrb[0].mxu0
    %v4981 = vadd.f32 %v3581, %v4980
    %v4982 = vpop.f32.mrb[0].mxu0
    %v4983 = vadd.f32 %v3583, %v4982
    %v4984 = vpop.f32.mrb[0].mxu0
    %v4985 = vadd.f32 %v3585, %v4984
    %4986 = vmatprep.mubr.bf16.mxu0 0
    %4987 = vmatmul.mubr.bf16.gmra.mrb[0].mxu0 %v290
    %v4988 = vpop.f32.mrb[0].mxu0
    %v4989 = vadd.f32 %v3589, %v4988
    %v4990 = vpop.f32.mrb[0].mxu0
    %v4991 = vadd.f32 %v3591, %v4990
    %v4992 = vpop.f32.mrb[0].mxu0
    %v4993 = vadd.f32 %v3593, %v4992
    %v4994 = vpop.f32.mrb[0].mxu0
    %v4995 = vadd.f32 %v3595, %v4994
    %4996 = vmatprep.mubr.bf16.mxu0 0
    %4997 = vmatmul.mubr.bf16.gmra.mrb[0].mxu0 %v291
    %v4998 = vpop.f32.mrb[0].mxu0
    %v4999 = vadd.f32 %v3599, %v4998
    %v5000 = vpop.f32.mrb[0].mxu0
    %v5001 = vadd.f32 %v3601, %v5000
    %v5002 = vpop.f32.mrb[0].mxu0
    %v5003 = vadd.f32 %v3603, %v5002
    %v5004 = vpop.f32.mrb[0].mxu0
    %v5005 = vadd.f32 %v3605, %v5004
    %5006 = vmatprep.mubr.bf16.mxu0 0
    %5007 = vmatmul.mubr.bf16.gmra.mrb[0].mxu0 %v292
    %v5008 = vpop.f32.mrb[0].mxu0
    %v5009 = vadd.f32 %v3609, %v5008
    %v5010 = vpop.f32.mrb[0].mxu0
    %v5011 = vadd.f32 %v3611, %v5010
    %v5012 = vpop.f32.mrb[0].mxu0
    %v5013 = vadd.f32 %v3613, %v5012
    %v5014 = vpop.f32.mrb[0].mxu0
    %v5015 = vadd.f32 %v3615, %v5014
    %5016 = vmatprep.mubr.bf16.mxu0 0
    %5017 = vmatmul.mubr.bf16.gmra.mrb[0].mxu0 %v293
    %v5018 = vpop.f32.mrb[0].mxu0
    %v5019 = vadd.f32 %v3619, %v5018
    %v5020 = vpop.f32.mrb[0].mxu0
    %v5021 = vadd.f32 %v3621, %v5020
    %v5022 = vpop.f32.mrb[0].mxu0
    %v5023 = vadd.f32 %v3623, %v5022
    %v5024 = vpop.f32.mrb[0].mxu0
    %v5025 = vadd.f32 %v3625, %v5024
    %5026 = vmatprep.mubr.bf16.mxu0 0
    %5027 = vmatmul.mubr.bf16.gmra.mrb[0].mxu0 %v294
    %v5028 = vpop.f32.mrb[0].mxu0
    %v5029 = vadd.f32 %v3629, %v5028
    %v5030 = vpop.f32.mrb[0].mxu0
    %v5031 = vadd.f32 %v3631, %v5030
    %v5032 = vpop.f32.mrb[0].mxu0
    %v5033 = vadd.f32 %v3633, %v5032
    %v5034 = vpop.f32.mrb[0].mxu0
    %v5035 = vadd.f32 %v3635, %v5034
    %5036 = vdwg.mxu0
    %5037 = vmatprep.subr.bf16.mxu0 0
    %5038 = vmatpush1.bf16.msra.mxu0 %v4902
    %5039 = vmatprep.subr.bf16.mxu0 0
    %5040 = vmatpush1.bf16.msra.mxu0 %v4905
    %5041 = vmatprep.subr.bf16.mxu0 0
    %5042 = vmatpush1.bf16.msra.mxu0 %v4908
    %5043 = vmatprep.subr.bf16.mxu0 0
    %5044 = vmatpush1.bf16.msra.mxu0 %v4911
    %5045 = vmatprep.subr.bf16.mxu0 0
    %5046 = vmatpush1.bf16.msra.mxu0 %v4914
    %5047 = vmatprep.subr.bf16.mxu0 0
    %5048 = vmatpush1.bf16.msra.mxu0 %v4917
    %5049 = vmatprep.subr.bf16.mxu0 0
    %5050 = vmatpush1.bf16.msra.mxu0 %v4920
    %5051 = vmatprep.subr.bf16.mxu0 0
    %5052 = vmatpush1.bf16.msra.mxu0 %v4923
    %5053 = vmatprep.subr.bf16.mxu0 0
    %5054 = vmatpush1.bf16.msra.mxu0 0
    %5055 = vmatprep.subr.bf16.mxu0 0
    %5056 = vmatpush1.bf16.msra.mxu0 0
    %5057 = vmatprep.subr.bf16.mxu0 0
    %5058 = vmatpush1.bf16.msra.mxu0 0
    %5059 = vmatprep.subr.bf16.mxu0 0
    %5060 = vmatpush1.bf16.msra.mxu0 0
    %5061 = vmatprep.subr.bf16.mxu0 0
    %5062 = vmatpush1.bf16.msra.mxu0 0
    %5063 = vmatprep.subr.bf16.mxu0 0
    %5064 = vmatpush1.bf16.msra.mxu0 0
    %5065 = vmatprep.subr.bf16.mxu0 0
    %5066 = vmatpush1.bf16.msra.mxu0 0
    %5067 = vmatprep.subr.bf16.mxu0 0
    %5068 = vmatpush1.bf16.msra.mxu0 0
    %5069 = vmatprep.mubr.bf16.mxu0 0
    %5070 = vmatmul.mubr.bf16.gmra.mrb[0].mxu0 %v287
    %v5071 = vpop.f32.mrb[0].mxu0
    %v5072 = vadd.f32 %v3672, %v5071
    %v5073 = vpop.f32.mrb[0].mxu0
    %v5074 = vpop.f32.mrb[0].mxu0
    %v5075 = vadd.f32 %v3675, %v5074
    %v5076 = vpop.f32.mrb[0].mxu0
    %5077 = vmatprep.mubr.bf16.mxu0 0
    %5078 = vmatmul.mubr.bf16.gmra.mrb[0].mxu0 %v288
    %v5079 = vpop.f32.mrb[0].mxu0
    %v5080 = vadd.f32 %v3680, %v5079
    %v5081 = vpop.f32.mrb[0].mxu0
    %v5082 = vpop.f32.mrb[0].mxu0
    %v5083 = vadd.f32 %v3683, %v5082
    %v5084 = vpop.f32.mrb[0].mxu0
    %5085 = vmatprep.mubr.bf16.mxu0 0
    %5086 = vmatmul.mubr.bf16.gmra.mrb[0].mxu0 %v289
    %v5087 = vpop.f32.mrb[0].mxu0
    %v5088 = vadd.f32 %v3688, %v5087
    %v5089 = vpop.f32.mrb[0].mxu0
    %v5090 = vpop.f32.mrb[0].mxu0
    %v5091 = vadd.f32 %v3691, %v5090
    %v5092 = vpop.f32.mrb[0].mxu0
    %5093 = vmatprep.mubr.bf16.mxu0 0
    %5094 = vmatmul.mubr.bf16.gmra.mrb[0].mxu0 %v290
    %v5095 = vpop.f32.mrb[0].mxu0
    %v5096 = vadd.f32 %v3696, %v5095
    %v5097 = vpop.f32.mrb[0].mxu0
    %v5098 = vpop.f32.mrb[0].mxu0
    %v5099 = vadd.f32 %v3699, %v5098
    %v5100 = vpop.f32.mrb[0].mxu0
    %5101 = vmatprep.mubr.bf16.mxu0 0
    %5102 = vmatmul.mubr.bf16.gmra.mrb[0].mxu0 %v291
    %v5103 = vpop.f32.mrb[0].mxu0
    %v5104 = vadd.f32 %v3704, %v5103
    %v5105 = vpop.f32.mrb[0].mxu0
    %v5106 = vpop.f32.mrb[0].mxu0
    %v5107 = vadd.f32 %v3707, %v5106
    %v5108 = vpop.f32.mrb[0].mxu0
    %5109 = vmatprep.mubr.bf16.mxu0 0
    %5110 = vmatmul.mubr.bf16.gmra.mrb[0].mxu0 %v292
    %v5111 = vpop.f32.mrb[0].mxu0
    %v5112 = vadd.f32 %v3712, %v5111
    %v5113 = vpop.f32.mrb[0].mxu0
    %v5114 = vpop.f32.mrb[0].mxu0
    %v5115 = vadd.f32 %v3715, %v5114
    %v5116 = vpop.f32.mrb[0].mxu0
    %5117 = vmatprep.mubr.bf16.mxu0 0
    %5118 = vmatmul.mubr.bf16.gmra.mrb[0].mxu0 %v293
    %v5119 = vpop.f32.mrb[0].mxu0
    %v5120 = vadd.f32 %v3720, %v5119
    %v5121 = vpop.f32.mrb[0].mxu0
    %v5122 = vpop.f32.mrb[0].mxu0
    %v5123 = vadd.f32 %v3723, %v5122
    %v5124 = vpop.f32.mrb[0].mxu0
    %5125 = vmatprep.mubr.bf16.mxu0 0
    %5126 = vmatmul.mubr.bf16.gmra.mrb[0].mxu0 %v294
    %v5127 = vpop.f32.mrb[0].mxu0
    %v5128 = vadd.f32 %v3728, %v5127
    %v5129 = vpop.f32.mrb[0].mxu0
    %v5130 = vpop.f32.mrb[0].mxu0
    %v5131 = vadd.f32 %v3731, %v5130
    %v5132 = vpop.f32.mrb[0].mxu0
    %5133 = vdwg.mxu0
    %v5134 = vadd.f32 %v4959, %v4961
    %v5135 = vadd.f32 %v4963, %v4965
    %v5136 = vadd.f32 %v4969, %v4971
    %v5137 = vadd.f32 %v4973, %v4975
    %v5138 = vadd.f32 %v4979, %v4981
    %v5139 = vadd.f32 %v4983, %v4985
    %v5140 = vadd.f32 %v4989, %v4991
    %v5141 = vadd.f32 %v4993, %v4995
    %v5142 = vadd.f32 %v4999, %v5001
    %v5143 = vadd.f32 %v5003, %v5005
    %v5144 = vadd.f32 %v5009, %v5011
    %v5145 = vadd.f32 %v5013, %v5015
    %v5146 = vadd.f32 %v5019, %v5021
    %v5147 = vadd.f32 %v5023, %v5025
    %v5148 = vadd.f32 %v5029, %v5031
    %v5149 = vadd.f32 %v5033, %v5035
    %v5150 = vadd.f32 %v5134, %v5072
    %v5151 = vadd.f32 %v5135, %v5075
    %v5152 = vadd.f32 %v5136, %v5080
    %v5153 = vadd.f32 %v5137, %v5083
    %v5154 = vadd.f32 %v5138, %v5088
    %v5155 = vadd.f32 %v5139, %v5091
    %v5156 = vadd.f32 %v5140, %v5096
    %v5157 = vadd.f32 %v5141, %v5099
    %v5158 = vadd.f32 %v5142, %v5104
    %v5159 = vadd.f32 %v5143, %v5107
    %v5160 = vadd.f32 %v5144, %v5112
    %v5161 = vadd.f32 %v5145, %v5115
    %v5162 = vadd.f32 %v5146, %v5120
    %v5163 = vadd.f32 %v5147, %v5123
    %v5164 = vadd.f32 %v5148, %v5128
    %v5165 = vadd.f32 %v5149, %v5131
    %v5166 = vmul.f32 %v5150, 0.33333334
    %v5167 = vmul.f32 %v5151, 0.33333334
    %v5168 = vmul.f32 %v5152, 0.33333334
    %v5169 = vmul.f32 %v5153, 0.33333334
    %v5170 = vmul.f32 %v5154, 0.33333334
    %v5171 = vmul.f32 %v5155, 0.33333334
    %v5172 = vmul.f32 %v5156, 0.33333334
    %v5173 = vmul.f32 %v5157, 0.33333334
    %v5174 = vmul.f32 %v5158, 0.33333334
    %v5175 = vmul.f32 %v5159, 0.33333334
    %v5176 = vmul.f32 %v5160, 0.33333334
    %v5177 = vmul.f32 %v5161, 0.33333334
    %v5178 = vmul.f32 %v5162, 0.33333334
    %v5179 = vmul.f32 %v5163, 0.33333334
    %v5180 = vmul.f32 %v5164, 0.33333334
    %v5181 = vmul.f32 %v5165, 0.33333334
    %5182 = vst [vmem:[#allocation7] sm:$0xff] %v5166
    %5183 = vst [vmem:[#allocation7 + $0x8] sm:$0xff] %v5167
    %5184 = vst [vmem:[#allocation7 + $0x10] sm:$0xff] %v5168
    %5185 = vst [vmem:[#allocation7 + $0x18] sm:$0xff] %v5169
    %5186 = vst [vmem:[#allocation7 + $0x20] sm:$0xff] %v5170
    %5187 = vst [vmem:[#allocation7 + $0x28] sm:$0xff] %v5171
    %5188 = vst [vmem:[#allocation7 + $0x30] sm:$0xff] %v5172
    %5189 = vst [vmem:[#allocation7 + $0x38] sm:$0xff] %v5173
    %5190 = vst [vmem:[#allocation7 + $0x40] sm:$0xff] %v5174
    %5191 = vst [vmem:[#allocation7 + $0x48] sm:$0xff] %v5175
    %5192 = vst [vmem:[#allocation7 + $0x50] sm:$0xff] %v5176
    %5193 = vst [vmem:[#allocation7 + $0x58] sm:$0xff] %v5177
    %5194 = vst [vmem:[#allocation7 + $0x60] sm:$0xff] %v5178
    %5195 = vst [vmem:[#allocation7 + $0x68] sm:$0xff] %v5179
    %5196 = vst [vmem:[#allocation7 + $0x70] sm:$0xff] %v5180
    %5197 = vst [vmem:[#allocation7 + $0x78] sm:$0xff] %v5181
    // Predicated region
    $region34: #{run.1} parent=1 // pred_check
      _
    $region35: #{run.1} parent=1 // pred_check_branch
      %5199 = sbr.rel (0) target = $region37
    $region36: #{run.1} parent=1 // pred_region
      %s5201 = ssub.s32 2048, 2048
      %5202 = vsyncadd [#allocation4], %s5201
      %s5203 = sshll.u32 [#allocation7], 4
      %s5204 = int_to_ptr.vmem [resolvable:$true] %s5203
      %5209 = dma.vmem_to_hbm [thread:$0]  %s5204, 2048, %s6, [#allocation4], 128, 128, 8
    $region37: #{run.1} parent=1 // pred_fallthru
      _
    // Predicated region
    $region38: #{run.1} parent=1 // pred_check
      _
    $region39: #{run.1} parent=1 // pred_check_branch
      %5211 = sbr.rel (0) target = $region41
    $region40: #{run.1} parent=1 // pred_region
      %5212 = dma.done [#allocation4], 2048
    $region41: #{run.1} parent=1 // pred_fallthru
      _
    %5213 = vsyncpa [#allocation3], 1
    %5214 = vsyncpa [#allocation6], 1
    %5215 = vsyncpa [#allocation4], 1

</llo_original>
